<compile_context>
chip_gen: v7x
topology: tpu7x:2x2x1
jax: 0.10.0
libtpu: 0.0.40
codegen_flags: <defaults>
</compile_context>

<pallas_src>
import functools
import math

import jax
import jax.numpy as jnp
from jax.experimental import pallas as pl
from jax.experimental.pallas import tpu as pltpu

# --- deterministic "parameters": pywt.Wavelet('haar').dec_lo / dec_hi --------------------
_INV_SQRT2 = 1.0 / math.sqrt(2.0)
HAAR_DEC_LO = (_INV_SQRT2, _INV_SQRT2)     # filt_low
HAAR_DEC_HI = (-_INV_SQRT2, _INV_SQRT2)    # filt_high
KERNEL_SIZE = 2
STRIDE = 2

# Tile targets: rows (sublanes, multiple of 8) x input lanes (multiple of 128).
# f32: 2 input tiles (2 MiB each) + 1 fused output tile (4 MiB) = 8 MiB/step, x2 pipeline
# buffers = 16 MiB in flight -> comfortably under the explicit 48 MiB scoped-VMEM limit
# (v5e default is only 16 MiB; v7x physical VMEM is 64 MiB, so we stay well below it).
_ROW_TILE_TARGET = 256
_LANE_TILE_TARGET = 2048
_VMEM_LIMIT_BYTES = 48 << 20


# ------------------------------ kernels --------------------------------------------------
def _fused_kernel_reshape(l_ref, h_ref, out_ref):
    """Polyphase haar synthesis with in-register even/odd lane interleave (stack+reshape)."""
    l = l_ref[...].astype(jnp.float32)     # single upcast per tile (no-op for f32 inputs)
    h = h_ref[...].astype(jnp.float32)
    even = (l + h) * _INV_SQRT2            # dec_lo[1]*L + dec_hi[1]*H
    odd = (l - h) * _INV_SQRT2             # dec_lo[0]*L + dec_hi[0]*H
    tr, tt = even.shape
    out = jnp.stack([even, odd], axis=-1).reshape(tr, 2 * tt)
    out_ref[...] = out.astype(out_ref.dtype)


def _fused_kernel_strided(l_ref, h_ref, out_ref):
    """Same math, interleave expressed as two stride-2 lane stores into the fused block."""
    l = l_ref[...].astype(jnp.float32)
    h = h_ref[...].astype(jnp.float32)
    tt = l.shape[-1]
    out_ref[:, pl.ds(0, tt, stride=2)] = ((l + h) * _INV_SQRT2).astype(out_ref.dtype)
    out_ref[:, pl.ds(1, tt, stride=2)] = ((l - h) * _INV_SQRT2).astype(out_ref.dtype)


def _planes_kernel(l_ref, h_ref, even_ref, odd_ref):
    """Fallback: two separate even/odd planes (interleave happens in the wrapper)."""
    l = l_ref[...].astype(jnp.float32)
    h = h_ref[...].astype(jnp.float32)
    even_ref[...] = ((l + h) * _INV_SQRT2).astype(even_ref.dtype)
    odd_ref[...] = ((l - h) * _INV_SQRT2).astype(odd_ref.dtype)


# ------------------------------ tiling / layout helpers ----------------------------------
def _choose_tile(extent, unit, target):
    """Largest `unit`-aligned tile <= target; full extent if the array is small."""
    if extent <= target:
        return extent                      # full extent always satisfies the (8,128) rule
    return max((target // unit) * unit, unit)


def _maybe_split(rows, lanes, tr, tt):
    """Guarantee >=2 grid blocks along a parallel axis when the problem allows it (v7x: 2 TCs)."""
    if pl.cdiv(rows, tr) * pl.cdiv(lanes, tt) >= 2:
        return tr, tt
    if rows >= 16:
        tr = max(8, ((rows // 2) // 8) * 8)
    elif lanes >= 256:
        tt = max(128, ((lanes // 2) // 128) * 128)
    return tr, tt


def _flat_layout(B, C, T):
    """Lane-dense 2D view of the flattened (B*C*T,) data; the op is fully elementwise."""
    N = B * C * T
    if N % 128 == 0:
        lanes = 128
        for cand in (2048, 1024, 512, 256, 128):
            if N % cand == 0:
                lanes = cand
                break
        return N // lanes, lanes
    # Awkward sizes: keep (B*C, T); boundary lanes are masked but the math is unchanged.
    return B * C, T


def _make_pallas_fn(rows, lanes, dtype, mode):
    """Build the pallas_call over (rows, lanes) L/H inputs for the given interleave mode."""
    tr = _choose_tile(rows, 8, _ROW_TILE_TARGET)
    tt = _choose_tile(lanes, 128, _LANE_TILE_TARGET)
    tr, tt = _maybe_split(rows, lanes, tr, tt)
    grid = (pl.cdiv(rows, tr), pl.cdiv(lanes, tt))
    in_spec = pl.BlockSpec((tr, tt), lambda r, t: (r, t))
    itemsize = jnp.dtype(dtype).itemsize
    cost = pl.CostEstimate(flops=4 * rows * lanes, transcendentals=0,
                           bytes_accessed=4 * rows * lanes * itemsize)
    cparams = pltpu.CompilerParams(dimension_semantics=("parallel", "parallel"),
                                   vmem_limit_bytes=_VMEM_LIMIT_BYTES)

    if mode in ("reshape", "strided"):
        kernel = _fused_kernel_reshape if mode == "reshape" else _fused_kernel_strided
        return pl.pallas_call(
            kernel,
            out_shape=jax.ShapeDtypeStruct((rows, 2 * lanes), dtype),
            grid_spec=pltpu.PrefetchScalarGridSpec(
                num_scalar_prefetch=0, grid=grid,
                in_specs=[in_spec, in_spec],
                out_specs=pl.BlockSpec((tr, 2 * tt), lambda r, t: (r, t))),
            compiler_params=cparams, cost_estimate=cost)

    assert mode == "none"
    out_spec = pl.BlockSpec((tr, tt), lambda r, t: (r, t))
    return pl.pallas_call(
        _planes_kernel,
        out_shape=(jax.ShapeDtypeStruct((rows, lanes), dtype),
                   jax.ShapeDtypeStruct((rows, lanes), dtype)),
        grid_spec=pltpu.PrefetchScalarGridSpec(
            num_scalar_prefetch=0, grid=grid,
            in_specs=[in_spec, in_spec],
            out_specs=(out_spec, out_spec)),
        compiler_params=cparams, cost_estimate=cost)


# ------------------------------ interleave-mode probe ------------------------------------
_INTERLEAVE_MODE = None


def _probe_mode(mode):
    """Compile + run a tiny fused kernel and check the interleaved values exactly."""
    rows, lanes = 8, 256
    l = (jnp.arange(rows * lanes, dtype=jnp.float32) * 0.01).reshape(rows, lanes)
    h = jnp.flip(l, axis=-1) + 1.0
    out = jax.block_until_ready(_make_pallas_fn(rows, lanes, jnp.float32, mode)(l, h))
    want = jnp.stack([(l + h) * _INV_SQRT2, (l - h) * _INV_SQRT2],
                     axis=-1).reshape(rows, 2 * lanes)
    return bool(jnp.allclose(out, want, atol=1e-5, rtol=1e-5))


def _get_interleave_mode():
    global _INTERLEAVE_MODE
    if _INTERLEAVE_MODE is None:
        _INTERLEAVE_MODE = "none"
        for mode in ("reshape", "strided"):
            try:
                if _probe_mode(mode):
                    _INTERLEAVE_MODE = mode
                    break
            except Exception:
                continue
    return _INTERLEAVE_MODE


# ------------------------------ public op ------------------------------------------------
@functools.partial(jax.jit, static_argnames=("mode",))
def _idwt_1d_impl(L, H, *, mode):
    B, C, T = L.shape
    rows, lanes = _flat_layout(B, C, T)
    L2 = L.reshape(rows, lanes)
    H2 = H.reshape(rows, lanes)
    call = _make_pallas_fn(rows, lanes, L.dtype, mode)
    if mode == "none":
        even, odd = call(L2, H2)
        # Fallback only: pair-interleave outside the kernel.
        return jnp.stack([even, odd], axis=-1).reshape(B, C, STRIDE * T)
    out2 = call(L2, H2)                     # (rows, 2*lanes), already pair-interleaved
    return out2.reshape(B, C, STRIDE * T)   # contiguous view -> free


def idwt_1d(L, H, pad_type="reflect"):
    """IDWT_1D.forward equivalent. L, H: (B, C, T) -> (B, C, 2*T)."""
    assert L.ndim == 3 and H.ndim == 3 and L.shape == H.shape
    # reflect / constant / circular all place a (stuffed) zero in the left pad slot, so the
    # haar closed form is exact for all three.
    assert pad_type in ("reflect", "constant", "circular")
    # TODO(synk): 'replicate' pad and non-haar / trainable kernel_size paths need the general
    # K-tap boundary-corrected formulation; not implemented here.
    return _idwt_1d_impl(L, H, mode=_get_interleave_mode())


# ------------------------------ literal reference ----------------------------------------
def _reference_idwt_1d(L, H):
    """Literal re-implementation of the PyTorch forward (upsample -> reflect pad -> corr)."""
    B, C, T = L.shape

    def upsample(x):
        up = jnp.zeros((B, C, T, STRIDE), x.dtype).at[..., 0].set(x)
        return up.reshape(B, C, STRIDE * T)

    pad_cfg = ((0, 0), (0, 0), (KERNEL_SIZE // 2, KERNEL_SIZE // 2 - 1))  # -> (1, 0)
    Lp = jnp.pad(upsample(L), pad_cfg, mode="reflect")
    Hp = jnp.pad(upsample(H), pad_cfg, mode="reflect")
    t_out = STRIDE * T
    out = jnp.zeros((B, C, t_out), jnp.float32)
    for k in range(KERNEL_SIZE):
        out = (out
               + Lp[..., k:k + t_out].astype(jnp.float32) * HAAR_DEC_LO[k]
               + Hp[..., k:k + t_out].astype(jnp.float32) * HAAR_DEC_HI[k])
    return out.astype(L.dtype)


if __name__ == "__main__":
    B, C, T = 2, 4, 16                     # in_channels = out_channels = groups = C
    key = jax.random.PRNGKey(0)
    kL, kH = jax.random.split(key)
    L = jax.random.normal(kL, (B, C, T), dtype=jnp.float32)
    H = jax.random.normal(kH, (B, C, T), dtype=jnp.float32)

    out = jax.block_until_ready(idwt_1d(L, H))
    ref = _reference_idwt_1d(L, H)

    assert out.shape == (B, C, 2 * T)
    assert jnp.allclose(out, ref, atol=1e-5, rtol=1e-5), "mismatch vs reference IDWT"

    print("KERNEL_OK")
</pallas_src>

<mosaic_0001>
module attributes {stable_mosaic.version = 11 : i64} {
  func.func @_fused_kernel_reshape(%arg0: i32, %arg1: i32, %arg2: memref<8x128xf32, #tpu.memory_space<vmem>>, %arg3: memref<8x128xf32, #tpu.memory_space<vmem>>, %arg4: memref<8x256xf32, #tpu.memory_space<vmem>>) attributes {dimension_semantics = [#tpu.dimension_semantics<parallel>, #tpu.dimension_semantics<parallel>], iteration_bounds = array<i64: 1, 2>, scalar_prefetch = 0 : i64, scratch_operands = 0 : i64, tpu.core_type = #tpu.core_type<tc>, window_params = [{transform_indices = @transform_0, window_bounds = array<i64: 8, 128>}, {transform_indices = @transform_1, window_bounds = array<i64: 8, 128>}, {transform_indices = @transform_2, window_bounds = array<i64: 8, 256>}]} {
    %c0 = arith.constant 0 : index
    %c0_0 = arith.constant 0 : index
    %0 = vector.load %arg2[%c0, %c0_0] : memref<8x128xf32, #tpu.memory_space<vmem>>, vector<8x128xf32>
    %c0_1 = arith.constant 0 : index
    %c0_2 = arith.constant 0 : index
    %1 = vector.load %arg3[%c0_1, %c0_2] : memref<8x128xf32, #tpu.memory_space<vmem>>, vector<8x128xf32>
    %2 = arith.addf %0, %1 : vector<8x128xf32>
    %cst = arith.constant 0.707106769 : f32
    %3 = vector.broadcast %cst : f32 to vector<8x128xf32>
    %4 = arith.mulf %2, %3 : vector<8x128xf32>
    %5 = arith.subf %0, %1 : vector<8x128xf32>
    %cst_3 = arith.constant 0.707106769 : f32
    %6 = vector.broadcast %cst_3 : f32 to vector<8x128xf32>
    %7 = arith.mulf %5, %6 : vector<8x128xf32>
    %8 = vector.shape_cast %4 : vector<8x128xf32> to vector<8x128x1xf32>
    %9 = vector.shape_cast %7 : vector<8x128xf32> to vector<8x128x1xf32>
    %10 = tpu.concatenate %8, %9 in 2 : vector<8x128x1xf32>, vector<8x128x1xf32> -> vector<8x128x2xf32>
    %11 = vector.shape_cast %10 : vector<8x128x2xf32> to vector<8x256xf32>
    %c0_4 = arith.constant 0 : index
    %c0_5 = arith.constant 0 : index
    %12 = vector.load %arg4[%c0_4, %c0_5] : memref<8x256xf32, #tpu.memory_space<vmem>>, vector<8x256xf32>
    tpu.vector_store %arg4[%c0_4, %c0_5], %11 {strides = array<i32>} : memref<8x256xf32, #tpu.memory_space<vmem>>, vector<8x256xf32>,
    return
  }
  func.func @transform_0(%arg0: i32, %arg1: i32) -> (i32, i32) {
    %c0_i32 = arith.constant 0 : i32
    return %arg0, %arg1 : i32, i32
  }
  func.func @transform_1(%arg0: i32, %arg1: i32) -> (i32, i32) {
    %c0_i32 = arith.constant 0 : i32
    return %arg0, %arg1 : i32, i32
  }
  func.func @transform_2(%arg0: i32, %arg1: i32) -> (i32, i32) {
    %c0_i32 = arith.constant 0 : i32
    return %arg0, %arg1 : i32, i32
  }
}

module attributes {stable_mosaic.version = 11 : i64} {
  func.func @_fused_kernel_strided(%arg0: i32, %arg1: i32, %arg2: memref<8x128xf32, #tpu.memory_space<vmem>>, %arg3: memref<8x128xf32, #tpu.memory_space<vmem>>, %arg4: memref<8x256xf32, #tpu.memory_space<vmem>>) attributes {dimension_semantics = [#tpu.dimension_semantics<parallel>, #tpu.dimension_semantics<parallel>], iteration_bounds = array<i64: 1, 2>, scalar_prefetch = 0 : i64, scratch_operands = 0 : i64, tpu.core_type = #tpu.core_type<tc>, window_params = [{transform_indices = @transform_0, window_bounds = array<i64: 8, 128>}, {transform_indices = @transform_1, window_bounds = array<i64: 8, 128>}, {transform_indices = @transform_2, window_bounds = array<i64: 8, 256>}]} {
    %c0 = arith.constant 0 : index
    %c0_0 = arith.constant 0 : index
    %0 = vector.load %arg2[%c0, %c0_0] : memref<8x128xf32, #tpu.memory_space<vmem>>, vector<8x128xf32>
    %c0_1 = arith.constant 0 : index
    %c0_2 = arith.constant 0 : index
    %1 = vector.load %arg3[%c0_1, %c0_2] : memref<8x128xf32, #tpu.memory_space<vmem>>, vector<8x128xf32>
    %2 = arith.addf %0, %1 : vector<8x128xf32>
    %cst = arith.constant 0.707106769 : f32
    %3 = vector.broadcast %cst : f32 to vector<8x128xf32>
    %4 = arith.mulf %2, %3 : vector<8x128xf32>
    %c0_3 = arith.constant 0 : index
    %c0_4 = arith.constant 0 : index
    %5 = tpu.strided_load %arg4[%c0_3, %c0_4] {strides = array<i32: 1, 2>} : memref<8x256xf32, #tpu.memory_space<vmem>>, vector<8x128xf32>
    tpu.strided_store %arg4[%c0_3, %c0_4], %4 {strides = array<i32: 1, 2>} : memref<8x256xf32, #tpu.memory_space<vmem>>, vector<8x128xf32>
    %6 = arith.subf %0, %1 : vector<8x128xf32>
    %cst_5 = arith.constant 0.707106769 : f32
    %7 = vector.broadcast %cst_5 : f32 to vector<8x128xf32>
    %8 = arith.mulf %6, %7 : vector<8x128xf32>
    %c0_6 = arith.constant 0 : index
    %c1 = arith.constant 1 : index
    %9 = tpu.strided_load %arg4[%c0_6, %c1] {strides = array<i32: 1, 2>} : memref<8x256xf32, #tpu.memory_space<vmem>>, vector<8x128xf32>
    tpu.strided_store %arg4[%c0_6, %c1], %8 {strides = array<i32: 1, 2>} : memref<8x256xf32, #tpu.memory_space<vmem>>, vector<8x128xf32>
    return
  }
  func.func @transform_0(%arg0: i32, %arg1: i32) -> (i32, i32) {
    %c0_i32 = arith.constant 0 : i32
    return %arg0, %arg1 : i32, i32
  }
  func.func @transform_1(%arg0: i32, %arg1: i32) -> (i32, i32) {
    %c0_i32 = arith.constant 0 : i32
    return %arg0, %arg1 : i32, i32
  }
  func.func @transform_2(%arg0: i32, %arg1: i32) -> (i32, i32) {
    %c0_i32 = arith.constant 0 : i32
    return %arg0, %arg1 : i32, i32
  }
}

module attributes {stable_mosaic.version = 11 : i64} {
  func.func @_planes_kernel(%arg0: i32, %arg1: i32, %arg2: memref<1x128xf32, #tpu.memory_space<vmem>>, %arg3: memref<1x128xf32, #tpu.memory_space<vmem>>, %arg4: memref<1x128xf32, #tpu.memory_space<vmem>>, %arg5: memref<1x128xf32, #tpu.memory_space<vmem>>) attributes {dimension_semantics = [#tpu.dimension_semantics<parallel>, #tpu.dimension_semantics<parallel>], iteration_bounds = array<i64: 1, 1>, scalar_prefetch = 0 : i64, scratch_operands = 0 : i64, tpu.core_type = #tpu.core_type<tc>, window_params = [{transform_indices = @transform_0, window_bounds = array<i64: 1, 128>}, {transform_indices = @transform_1, window_bounds = array<i64: 1, 128>}, {transform_indices = @transform_2, window_bounds = array<i64: 1, 128>}, {transform_indices = @transform_3, window_bounds = array<i64: 1, 128>}]} {
    %c0 = arith.constant 0 : index
    %c0_0 = arith.constant 0 : index
    %0 = vector.load %arg2[%c0, %c0_0] : memref<1x128xf32, #tpu.memory_space<vmem>>, vector<1x128xf32>
    %c0_1 = arith.constant 0 : index
    %c0_2 = arith.constant 0 : index
    %1 = vector.load %arg3[%c0_1, %c0_2] : memref<1x128xf32, #tpu.memory_space<vmem>>, vector<1x128xf32>
    %2 = arith.addf %0, %1 : vector<1x128xf32>
    %cst = arith.constant 0.707106769 : f32
    %3 = vector.broadcast %cst : f32 to vector<1x128xf32>
    %4 = arith.mulf %2, %3 : vector<1x128xf32>
    %c0_3 = arith.constant 0 : index
    %c0_4 = arith.constant 0 : index
    %5 = vector.load %arg4[%c0_3, %c0_4] : memref<1x128xf32, #tpu.memory_space<vmem>>, vector<1x128xf32>
    tpu.vector_store %arg4[%c0_3, %c0_4], %4 {strides = array<i32>} : memref<1x128xf32, #tpu.memory_space<vmem>>, vector<1x128xf32>,
    %6 = arith.subf %0, %1 : vector<1x128xf32>
    %cst_5 = arith.constant 0.707106769 : f32
    %7 = vector.broadcast %cst_5 : f32 to vector<1x128xf32>
    %8 = arith.mulf %6, %7 : vector<1x128xf32>
    %c0_6 = arith.constant 0 : index
    %c0_7 = arith.constant 0 : index
    %9 = vector.load %arg5[%c0_6, %c0_7] : memref<1x128xf32, #tpu.memory_space<vmem>>, vector<1x128xf32>
    tpu.vector_store %arg5[%c0_6, %c0_7], %8 {strides = array<i32>} : memref<1x128xf32, #tpu.memory_space<vmem>>, vector<1x128xf32>,
    return
  }
  func.func @transform_0(%arg0: i32, %arg1: i32) -> (i32, i32) {
    %c0_i32 = arith.constant 0 : i32
    return %arg0, %arg1 : i32, i32
  }
  func.func @transform_1(%arg0: i32, %arg1: i32) -> (i32, i32) {
    %c0_i32 = arith.constant 0 : i32
    return %arg0, %arg1 : i32, i32
  }
  func.func @transform_2(%arg0: i32, %arg1: i32) -> (i32, i32) {
    %c0_i32 = arith.constant 0 : i32
    return %arg0, %arg1 : i32, i32
  }
  func.func @transform_3(%arg0: i32, %arg1: i32) -> (i32, i32) {
    %c0_i32 = arith.constant 0 : i32
    return %arg0, %arg1 : i32, i32
  }
}

</mosaic_0001>

<llo_original>
// kernel: tpu_custom_call.1
$region0: #{tpu_custom_call.1}
  #allocation0 [shape = 'u32[]', space=smem, size = 0x4, offset = 0x4, fixed_abs, tag = 'smem constant byte address 0x4 - core index']
  #allocation1 [shape = 'u32[144,128]{1,0:T(1,128)}', space=vmem, size = 0x12000, scoped, tag = 'internal scratch']
  %s0 = inlined_call_operand.hbm [shape: f32[8,256], index: 0, kind: input, shape index: {}]
  %s1 = inlined_call_operand.hbm [shape: f32[8,256], index: 1, kind: input, shape index: {}]
  %s2 = inlined_call_operand.hbm [shape: f32[8,512], index: 2, kind: output, shape index: {}]
  %s3 = sld [smem:[#allocation0]]
  $region49: #{tpu_custom_call.1} parent=0
    _
  %s5 = ssub.s32 1, %s3
  %s6 = scalar_select 0, %s5, %s3
  $region1: #{tpu_custom_call.1} parent=0
    #allocation2 [shape = 'u8[8192]{0}', space=vmem, size = 0x2000, scoped, tag = 'input window, operand 0']
    #allocation3 [shape = 's32[2]{0}', space=sflag, size = 0x8, scoped, tag = 'scoped memory for tpu_custom_call.1']
    #allocation4 [shape = 's32[2]{0}', space=sflag, size = 0x8, scoped, tag = 'scoped memory for tpu_custom_call.1']
    #allocation5 [shape = 'u8[8192]{0}', space=vmem, size = 0x2000, scoped, tag = 'input window, operand 1']
    #allocation6 [shape = 's32[2]{0}', space=sflag, size = 0x8, scoped, tag = 'scoped memory for tpu_custom_call.1']
    #allocation7 [shape = 'u8[16384]{0}', space=vmem, size = 0x4000, scoped, tag = 'output window, operand 0']
    %7 = vsyncpa [#allocation3], 0
    %s8 = scalar_lea.sflag [#allocation3], 1
    %9 = vsyncpa %s8, 0
    %10 = vsyncpa [#allocation6], 0
    %s11 = scalar_lea.sflag [#allocation6], 1
    %12 = vsyncpa %s11, 0
    %13 = vsyncpa [#allocation4], 0
    %s14 = scalar_lea.sflag [#allocation4], 1
    %15 = vsyncpa %s14, 0
    loop: start=0, step=1, limit=4
    $region2: #{tpu_custom_call.1} parent=1 // loop_pre_header
      _
    $region3: #{tpu_custom_call.1} parent=1 // loop_header
      %s17 = sphi 0, %s21
      %p18 = scmp.ge.s32.totalorder %s17, 4
      %s24 = sphi 0, %s36
      %s25 = sphi 0, %s32
      %s26 = sphi 0, %s24
      %s27 = sphi 0, %s25
      %s28 = sphi 0, %s26
      %s29 = sphi 0, %s27
      %s41 = sphi 0, %s43
      %s44 = sphi 0, %s41
      %s45 = sphi 0, %s44
      %s61 = sphi 0, %s45
      %s69 = sphi 0, %s71
      %s72 = sphi 0, %s69
      %s73 = sphi 0, %s72
      %s89 = sphi 0, %s73
      %s97 = sphi 0, %s99
      %s100 = sphi 0, %s97
      %s101 = sphi 0, %s100
      %s117 = sphi 0, %s101
    $region4: #{tpu_custom_call.1} parent=1 // loop_header_branch
      %20 = sbr.rel (%p18) target = $region8
    $region5: #{tpu_custom_call.1} parent=1 // loop_body
      %s22 = ssub.s32 %s17, 1
      %s23 = ssub.s32 %s17, 2
      %s30 = sadd.s32 1, %s25
      %p31 = scmp.ge.s32.totalorder %s30, 2
      %s32 = scalar_select %p31, 0, %s30
      %s33 = sadd.s32 1, %s24
      %s34 = scalar_select %p31, %s33, %s24
      %p35 = scmp.ge.s32.totalorder %s34, 1
      %s36 = scalar_select %p35, 0, %s34
      %s37 = ssub.s32 %s24, %s36
      %s38 = ssub.s32 %s25, %s32
      %s39 = sor.u32 %s37, %s38
      %p40 = scmp.eq.s32.totalorder %s39, 0
      %s42 = sadd.s32 %s41, 1
      %s43 = scalar_select %p40, %s41, %s42
      %p46 = pneg %p40
      %p47 = scmp.eq.s32.totalorder %s17, 1
      %p48 = por %p46, %p47
      %p49 = scmp.ne.s32.totalorder %s41, %s44
      %p50 = scmp.eq.s32.totalorder %s17, 0
      %p51 = por %p49, %p50
      %p52 = scmp.ne.s32.totalorder %s41, %s44
      %p53 = scmp.eq.s32.totalorder %s22, 1
      %p54 = por %p52, %p53
      %p55 = scmp.ne.s32.totalorder %s44, %s45
      %p56 = scmp.eq.s32.totalorder %s22, 0
      %p57 = por %p55, %p56
      %p58 = scmp.ne.s32.totalorder %s44, %s45
      %p59 = scmp.eq.s32.totalorder %s23, 1
      %p60 = por %p58, %p59
      %p62 = scmp.ne.s32.totalorder %s45, %s61
      %p63 = scmp.eq.s32.totalorder %s23, 0
      %p64 = por %p62, %p63
      %s65 = ssub.s32 %s24, %s36
      %s66 = ssub.s32 %s25, %s32
      %s67 = sor.u32 %s65, %s66
      %p68 = scmp.eq.s32.totalorder %s67, 0
      %s70 = sadd.s32 %s69, 1
      %s71 = scalar_select %p68, %s69, %s70
      %p74 = pneg %p68
      %p75 = scmp.eq.s32.totalorder %s17, 1
      %p76 = por %p74, %p75
      %p77 = scmp.ne.s32.totalorder %s69, %s72
      %p78 = scmp.eq.s32.totalorder %s17, 0
      %p79 = por %p77, %p78
      %p80 = scmp.ne.s32.totalorder %s69, %s72
      %p81 = scmp.eq.s32.totalorder %s22, 1
      %p82 = por %p80, %p81
      %p83 = scmp.ne.s32.totalorder %s72, %s73
      %p84 = scmp.eq.s32.totalorder %s22, 0
      %p85 = por %p83, %p84
      %p86 = scmp.ne.s32.totalorder %s72, %s73
      %p87 = scmp.eq.s32.totalorder %s23, 1
      %p88 = por %p86, %p87
      %p90 = scmp.ne.s32.totalorder %s73, %s89
      %p91 = scmp.eq.s32.totalorder %s23, 0
      %p92 = por %p90, %p91
      %s93 = ssub.s32 %s24, %s36
      %s94 = ssub.s32 %s25, %s32
      %s95 = sor.u32 %s93, %s94
      %p96 = scmp.eq.s32.totalorder %s95, 0
      %s98 = sadd.s32 %s97, 1
      %s99 = scalar_select %p96, %s97, %s98
      %p102 = pneg %p96
      %p103 = scmp.eq.s32.totalorder %s17, 1
      %p104 = por %p102, %p103
      %p105 = scmp.ne.s32.totalorder %s97, %s100
      %p106 = scmp.eq.s32.totalorder %s17, 0
      %p107 = por %p105, %p106
      %p108 = scmp.ne.s32.totalorder %s97, %s100
      %p109 = scmp.eq.s32.totalorder %s22, 1
      %p110 = por %p108, %p109
      %p111 = scmp.ne.s32.totalorder %s100, %s101
      %p112 = scmp.eq.s32.totalorder %s22, 0
      %p113 = por %p111, %p112
      %p114 = scmp.ne.s32.totalorder %s100, %s101
      %p115 = scmp.eq.s32.totalorder %s23, 1
      %p116 = por %p114, %p115
      %p118 = scmp.ne.s32.totalorder %s101, %s117
      %p119 = scmp.eq.s32.totalorder %s23, 0
      %p120 = por %p118, %p119
      %p121 = scmp.le.s32.totalorder 1, %s17
      %p122 = scmp.lt.s32.totalorder %s17, 3
      %p123 = pnand %p121, %p122
      %p124 = pneg %p123
      // Predicated region
      $region9: #{tpu_custom_call.1} parent=5 // pred_check
        _
      $region10: #{tpu_custom_call.1} parent=5 // pred_check_branch
        %126 = sbr.rel (%p123) target = $region12
      $region11: #{tpu_custom_call.1} parent=5 // pred_region
        %s127 = ssub.s32 %s17, 1
      $region12: #{tpu_custom_call.1} parent=5 // pred_fallthru
        _
      %p128 = scmp.lt.s32.totalorder %s17, 2
      // Predicated region
      $region13: #{tpu_custom_call.1} parent=5 // pred_check
        %p129 = pneg %p128
      $region14: #{tpu_custom_call.1} parent=5 // pred_check_branch
        %131 = sbr.rel (%p129) target = $region16
      $region15: #{tpu_custom_call.1} parent=5 // pred_region
        // Predicated region
        $region17: #{tpu_custom_call.1} parent=15 // pred_check
          %p132 = pneg %p51
        $region18: #{tpu_custom_call.1} parent=15 // pred_check_branch
          %134 = sbr.rel (%p132) target = $region20
        $region19: #{tpu_custom_call.1} parent=15 // pred_region
          %s135 = sand.u32 %s41, 1
          %s136 = scalar_lea.sflag [#allocation3], %s135
          %s137 = sand.u32 %s41, 1
          %s138 = smul.addr %s137, 8
          %s139 = scalar_lea.vmem [#allocation2], %s138
          %s141 = ssub.s32 128, 128
          %142 = vsyncadd %s136, %s141
          %s143 = smul.addr %s24, 2
          %s144 = sadd.s32 %s25, %s143
          %s145 = smul.addr %s144, 128
          %s146 = scalar_lea.hbm %s0, %s145
          %s148 = sshll.u32 %s139, 4
          %s149 = int_to_ptr.vmem [resolvable:$true] %s148
          %151 = dma.hbm_to_vmem [thread:$0]  %s146, 128, %s149, %s136
        $region20: #{tpu_custom_call.1} parent=15 // pred_fallthru
          _
        // Predicated region
        $region21: #{tpu_custom_call.1} parent=15 // pred_check
          %p152 = pneg %p79
        $region22: #{tpu_custom_call.1} parent=15 // pred_check_branch
          %154 = sbr.rel (%p152) target = $region24
        $region23: #{tpu_custom_call.1} parent=15 // pred_region
          %s155 = sand.u32 %s69, 1
          %s156 = scalar_lea.sflag [#allocation6], %s155
          %s157 = sand.u32 %s69, 1
          %s158 = smul.addr %s157, 8
          %s159 = scalar_lea.vmem [#allocation5], %s158
          %s161 = ssub.s32 128, 128
          %162 = vsyncadd %s156, %s161
          %s163 = smul.addr %s24, 2
          %s164 = sadd.s32 %s25, %s163
          %s165 = smul.addr %s164, 128
          %s166 = scalar_lea.hbm %s1, %s165
          %s168 = sshll.u32 %s159, 4
          %s169 = int_to_ptr.vmem [resolvable:$true] %s168
          %171 = dma.hbm_to_vmem [thread:$0]  %s166, 128, %s169, %s156
        $region24: #{tpu_custom_call.1} parent=15 // pred_fallthru
          _
      $region16: #{tpu_custom_call.1} parent=5 // pred_fallthru
        _
      %p172 = scmp.le.s32.totalorder 1, %s17
      %p173 = scmp.lt.s32.totalorder %s17, 3
      %p174 = pnand %p172, %p173
      %p175 = pneg %p174
      // Predicated region
      $region25: #{tpu_custom_call.1} parent=5 // pred_check
        _
      $region26: #{tpu_custom_call.1} parent=5 // pred_check_branch
        %177 = sbr.rel (%p174) target = $region28
      $region27: #{tpu_custom_call.1} parent=5 // pred_region
        %s178 = ssub.s32 %s17, 1
        %s179 = sand.u32 %s44, 1
        %s180 = scalar_lea.sflag [#allocation3], %s179
        %s181 = sand.u32 %s44, 1
        %s182 = smul.addr %s181, 8
        %s183 = scalar_lea.vmem [#allocation2], %s182
        // Predicated region
        $region29: #{tpu_custom_call.1} parent=27 // pred_check
          %p184 = pneg %p57
        $region30: #{tpu_custom_call.1} parent=27 // pred_check_branch
          %186 = sbr.rel (%p184) target = $region32
        $region31: #{tpu_custom_call.1} parent=27 // pred_region
          %187 = dma.done %s180, 128
        $region32: #{tpu_custom_call.1} parent=27 // pred_fallthru
          _
        %s188 = sand.u32 %s72, 1
        %s189 = scalar_lea.sflag [#allocation6], %s188
        %s190 = sand.u32 %s72, 1
        %s191 = smul.addr %s190, 8
        %s192 = scalar_lea.vmem [#allocation5], %s191
        // Predicated region
        $region33: #{tpu_custom_call.1} parent=27 // pred_check
          %p193 = pneg %p85
        $region34: #{tpu_custom_call.1} parent=27 // pred_check_branch
          %195 = sbr.rel (%p193) target = $region36
        $region35: #{tpu_custom_call.1} parent=27 // pred_region
          %196 = dma.done %s189, 128
        $region36: #{tpu_custom_call.1} parent=27 // pred_fallthru
          _
        %s197 = sand.u32 %s44, 1
        %s198 = scalar_lea.sflag [#allocation3], %s197
        %s199 = sand.u32 %s44, 1
        %s200 = smul.addr %s199, 8
        %s201 = scalar_lea.vmem [#allocation2], %s200
        %p202 = pneg %p57
        %p203 = pneg %p54
        %s204 = sand.u32 %s72, 1
        %s205 = scalar_lea.sflag [#allocation6], %s204
        %s206 = sand.u32 %s72, 1
        %s207 = smul.addr %s206, 8
        %s208 = scalar_lea.vmem [#allocation5], %s207
        %p209 = pneg %p85
        %p210 = pneg %p82
        %p211 = pneg %p113
        %p212 = pneg %p110
        %s213 = sand.u32 %s100, 1
        %s214 = scalar_lea.sflag [#allocation4], %s213
        %s215 = sand.u32 %s100, 1
        %s216 = smul.addr %s215, 16
        %s217 = scalar_lea.vmem [#allocation7], %s216
        %s218 = smul.u32 2, %s27
        %v219 = vld [vmem:[%s183] sm:$0xff]
        %v220 = vld [vmem:[%s192] sm:$0xff]
        %v221 = vadd.f32 %v219, %v220
        %v222 = vmul.f32 %v221, 0.70710677
        %v223 = vsub.f32 %v219, %v220
        %v224 = vmul.f32 %v223, 0.70710677
        %v225 = vlaneseq
        %v226 = vshrl.u32 %v225, 7
        %v227 = vsub.s32 0, %v226
        %v228 = vrot.slane %v222, %v227
        %230 = vbcast.lane.b32.xlu0 %v228, 256
        %v231 = vpop.permute.xlu0 %230
        %s233 = sor.u32 256, 8
        %234 = vbcast.lane.b32.xlu0 %v228, %s233
        %v235 = vpop.permute.xlu0 %234
        %s237 = sor.u32 256, 16
        %238 = vbcast.lane.b32.xlu0 %v228, %s237
        %v239 = vpop.permute.xlu0 %238
        %s241 = sor.u32 256, 24
        %242 = vbcast.lane.b32.xlu0 %v228, %s241
        %v243 = vpop.permute.xlu0 %242
        %s245 = sor.u32 256, 32
        %246 = vbcast.lane.b32.xlu0 %v228, %s245
        %v247 = vpop.permute.xlu0 %246
        %s249 = sor.u32 256, 40
        %250 = vbcast.lane.b32.xlu0 %v228, %s249
        %v251 = vpop.permute.xlu0 %250
        %s253 = sor.u32 256, 48
        %254 = vbcast.lane.b32.xlu0 %v228, %s253
        %v255 = vpop.permute.xlu0 %254
        %s257 = sor.u32 256, 56
        %258 = vbcast.lane.b32.xlu0 %v228, %s257
        %v259 = vpop.permute.xlu0 %258
        %s261 = sor.u32 256, 64
        %262 = vbcast.lane.b32.xlu0 %v228, %s261
        %v263 = vpop.permute.xlu0 %262
        %s265 = sor.u32 256, 72
        %266 = vbcast.lane.b32.xlu0 %v228, %s265
        %v267 = vpop.permute.xlu0 %266
        %s269 = sor.u32 256, 80
        %270 = vbcast.lane.b32.xlu0 %v228, %s269
        %v271 = vpop.permute.xlu0 %270
        %s273 = sor.u32 256, 88
        %274 = vbcast.lane.b32.xlu0 %v228, %s273
        %v275 = vpop.permute.xlu0 %274
        %s277 = sor.u32 256, 96
        %278 = vbcast.lane.b32.xlu0 %v228, %s277
        %v279 = vpop.permute.xlu0 %278
        %s281 = sor.u32 256, 104
        %282 = vbcast.lane.b32.xlu0 %v228, %s281
        %v283 = vpop.permute.xlu0 %282
        %s285 = sor.u32 256, 112
        %286 = vbcast.lane.b32.xlu0 %v228, %s285
        %v287 = vpop.permute.xlu0 %286
        %s289 = sor.u32 256, 120
        %290 = vbcast.lane.b32.xlu0 %v228, %s289
        %v291 = vpop.permute.xlu0 %290
        %v292 = vlaneseq
        %v293 = vshrl.u32 %v292, 7
        %v294 = vsub.s32 1, %v293
        %v295 = vrot.slane %v222, %v294
        %297 = vbcast.lane.b32.xlu0 %v295, 256
        %v298 = vpop.permute.xlu0 %297
        %s300 = sor.u32 256, 8
        %301 = vbcast.lane.b32.xlu0 %v295, %s300
        %v302 = vpop.permute.xlu0 %301
        %s304 = sor.u32 256, 16
        %305 = vbcast.lane.b32.xlu0 %v295, %s304
        %v306 = vpop.permute.xlu0 %305
        %s308 = sor.u32 256, 24
        %309 = vbcast.lane.b32.xlu0 %v295, %s308
        %v310 = vpop.permute.xlu0 %309
        %s312 = sor.u32 256, 32
        %313 = vbcast.lane.b32.xlu0 %v295, %s312
        %v314 = vpop.permute.xlu0 %313
        %s316 = sor.u32 256, 40
        %317 = vbcast.lane.b32.xlu0 %v295, %s316
        %v318 = vpop.permute.xlu0 %317
        %s320 = sor.u32 256, 48
        %321 = vbcast.lane.b32.xlu0 %v295, %s320
        %v322 = vpop.permute.xlu0 %321
        %s324 = sor.u32 256, 56
        %325 = vbcast.lane.b32.xlu0 %v295, %s324
        %v326 = vpop.permute.xlu0 %325
        %s328 = sor.u32 256, 64
        %329 = vbcast.lane.b32.xlu0 %v295, %s328
        %v330 = vpop.permute.xlu0 %329
        %s332 = sor.u32 256, 72
        %333 = vbcast.lane.b32.xlu0 %v295, %s332
        %v334 = vpop.permute.xlu0 %333
        %s336 = sor.u32 256, 80
        %337 = vbcast.lane.b32.xlu0 %v295, %s336
        %v338 = vpop.permute.xlu0 %337
        %s340 = sor.u32 256, 88
        %341 = vbcast.lane.b32.xlu0 %v295, %s340
        %v342 = vpop.permute.xlu0 %341
        %s344 = sor.u32 256, 96
        %345 = vbcast.lane.b32.xlu0 %v295, %s344
        %v346 = vpop.permute.xlu0 %345
        %s348 = sor.u32 256, 104
        %349 = vbcast.lane.b32.xlu0 %v295, %s348
        %v350 = vpop.permute.xlu0 %349
        %s352 = sor.u32 256, 112
        %353 = vbcast.lane.b32.xlu0 %v295, %s352
        %v354 = vpop.permute.xlu0 %353
        %s356 = sor.u32 256, 120
        %357 = vbcast.lane.b32.xlu0 %v295, %s356
        %v358 = vpop.permute.xlu0 %357
        %v359 = vlaneseq
        %v360 = vshrl.u32 %v359, 7
        %v361 = vsub.s32 2, %v360
        %v362 = vrot.slane %v222, %v361
        %364 = vbcast.lane.b32.xlu0 %v362, 256
        %v365 = vpop.permute.xlu0 %364
        %s367 = sor.u32 256, 8
        %368 = vbcast.lane.b32.xlu0 %v362, %s367
        %v369 = vpop.permute.xlu0 %368
        %s371 = sor.u32 256, 16
        %372 = vbcast.lane.b32.xlu0 %v362, %s371
        %v373 = vpop.permute.xlu0 %372
        %s375 = sor.u32 256, 24
        %376 = vbcast.lane.b32.xlu0 %v362, %s375
        %v377 = vpop.permute.xlu0 %376
        %s379 = sor.u32 256, 32
        %380 = vbcast.lane.b32.xlu0 %v362, %s379
        %v381 = vpop.permute.xlu0 %380
        %s383 = sor.u32 256, 40
        %384 = vbcast.lane.b32.xlu0 %v362, %s383
        %v385 = vpop.permute.xlu0 %384
        %s387 = sor.u32 256, 48
        %388 = vbcast.lane.b32.xlu0 %v362, %s387
        %v389 = vpop.permute.xlu0 %388
        %s391 = sor.u32 256, 56
        %392 = vbcast.lane.b32.xlu0 %v362, %s391
        %v393 = vpop.permute.xlu0 %392
        %s395 = sor.u32 256, 64
        %396 = vbcast.lane.b32.xlu0 %v362, %s395
        %v397 = vpop.permute.xlu0 %396
        %s399 = sor.u32 256, 72
        %400 = vbcast.lane.b32.xlu0 %v362, %s399
        %v401 = vpop.permute.xlu0 %400
        %s403 = sor.u32 256, 80
        %404 = vbcast.lane.b32.xlu0 %v362, %s403
        %v405 = vpop.permute.xlu0 %404
        %s407 = sor.u32 256, 88
        %408 = vbcast.lane.b32.xlu0 %v362, %s407
        %v409 = vpop.permute.xlu0 %408
        %s411 = sor.u32 256, 96
        %412 = vbcast.lane.b32.xlu0 %v362, %s411
        %v413 = vpop.permute.xlu0 %412
        %s415 = sor.u32 256, 104
        %416 = vbcast.lane.b32.xlu0 %v362, %s415
        %v417 = vpop.permute.xlu0 %416
        %s419 = sor.u32 256, 112
        %420 = vbcast.lane.b32.xlu0 %v362, %s419
        %v421 = vpop.permute.xlu0 %420
        %s423 = sor.u32 256, 120
        %424 = vbcast.lane.b32.xlu0 %v362, %s423
        %v425 = vpop.permute.xlu0 %424
        %v426 = vlaneseq
        %v427 = vshrl.u32 %v426, 7
        %v428 = vsub.s32 3, %v427
        %v429 = vrot.slane %v222, %v428
        %431 = vbcast.lane.b32.xlu0 %v429, 256
        %v432 = vpop.permute.xlu0 %431
        %s434 = sor.u32 256, 8
        %435 = vbcast.lane.b32.xlu0 %v429, %s434
        %v436 = vpop.permute.xlu0 %435
        %s438 = sor.u32 256, 16
        %439 = vbcast.lane.b32.xlu0 %v429, %s438
        %v440 = vpop.permute.xlu0 %439
        %s442 = sor.u32 256, 24
        %443 = vbcast.lane.b32.xlu0 %v429, %s442
        %v444 = vpop.permute.xlu0 %443
        %s446 = sor.u32 256, 32
        %447 = vbcast.lane.b32.xlu0 %v429, %s446
        %v448 = vpop.permute.xlu0 %447
        %s450 = sor.u32 256, 40
        %451 = vbcast.lane.b32.xlu0 %v429, %s450
        %v452 = vpop.permute.xlu0 %451
        %s454 = sor.u32 256, 48
        %455 = vbcast.lane.b32.xlu0 %v429, %s454
        %v456 = vpop.permute.xlu0 %455
        %s458 = sor.u32 256, 56
        %459 = vbcast.lane.b32.xlu0 %v429, %s458
        %v460 = vpop.permute.xlu0 %459
        %s462 = sor.u32 256, 64
        %463 = vbcast.lane.b32.xlu0 %v429, %s462
        %v464 = vpop.permute.xlu0 %463
        %s466 = sor.u32 256, 72
        %467 = vbcast.lane.b32.xlu0 %v429, %s466
        %v468 = vpop.permute.xlu0 %467
        %s470 = sor.u32 256, 80
        %471 = vbcast.lane.b32.xlu0 %v429, %s470
        %v472 = vpop.permute.xlu0 %471
        %s474 = sor.u32 256, 88
        %475 = vbcast.lane.b32.xlu0 %v429, %s474
        %v476 = vpop.permute.xlu0 %475
        %s478 = sor.u32 256, 96
        %479 = vbcast.lane.b32.xlu0 %v429, %s478
        %v480 = vpop.permute.xlu0 %479
        %s482 = sor.u32 256, 104
        %483 = vbcast.lane.b32.xlu0 %v429, %s482
        %v484 = vpop.permute.xlu0 %483
        %s486 = sor.u32 256, 112
        %487 = vbcast.lane.b32.xlu0 %v429, %s486
        %v488 = vpop.permute.xlu0 %487
        %s490 = sor.u32 256, 120
        %491 = vbcast.lane.b32.xlu0 %v429, %s490
        %v492 = vpop.permute.xlu0 %491
        %v493 = vlaneseq
        %v494 = vshrl.u32 %v493, 7
        %v495 = vsub.s32 4, %v494
        %v496 = vrot.slane %v222, %v495
        %498 = vbcast.lane.b32.xlu0 %v496, 256
        %v499 = vpop.permute.xlu0 %498
        %s501 = sor.u32 256, 8
        %502 = vbcast.lane.b32.xlu0 %v496, %s501
        %v503 = vpop.permute.xlu0 %502
        %s505 = sor.u32 256, 16
        %506 = vbcast.lane.b32.xlu0 %v496, %s505
        %v507 = vpop.permute.xlu0 %506
        %s509 = sor.u32 256, 24
        %510 = vbcast.lane.b32.xlu0 %v496, %s509
        %v511 = vpop.permute.xlu0 %510
        %s513 = sor.u32 256, 32
        %514 = vbcast.lane.b32.xlu0 %v496, %s513
        %v515 = vpop.permute.xlu0 %514
        %s517 = sor.u32 256, 40
        %518 = vbcast.lane.b32.xlu0 %v496, %s517
        %v519 = vpop.permute.xlu0 %518
        %s521 = sor.u32 256, 48
        %522 = vbcast.lane.b32.xlu0 %v496, %s521
        %v523 = vpop.permute.xlu0 %522
        %s525 = sor.u32 256, 56
        %526 = vbcast.lane.b32.xlu0 %v496, %s525
        %v527 = vpop.permute.xlu0 %526
        %s529 = sor.u32 256, 64
        %530 = vbcast.lane.b32.xlu0 %v496, %s529
        %v531 = vpop.permute.xlu0 %530
        %s533 = sor.u32 256, 72
        %534 = vbcast.lane.b32.xlu0 %v496, %s533
        %v535 = vpop.permute.xlu0 %534
        %s537 = sor.u32 256, 80
        %538 = vbcast.lane.b32.xlu0 %v496, %s537
        %v539 = vpop.permute.xlu0 %538
        %s541 = sor.u32 256, 88
        %542 = vbcast.lane.b32.xlu0 %v496, %s541
        %v543 = vpop.permute.xlu0 %542
        %s545 = sor.u32 256, 96
        %546 = vbcast.lane.b32.xlu0 %v496, %s545
        %v547 = vpop.permute.xlu0 %546
        %s549 = sor.u32 256, 104
        %550 = vbcast.lane.b32.xlu0 %v496, %s549
        %v551 = vpop.permute.xlu0 %550
        %s553 = sor.u32 256, 112
        %554 = vbcast.lane.b32.xlu0 %v496, %s553
        %v555 = vpop.permute.xlu0 %554
        %s557 = sor.u32 256, 120
        %558 = vbcast.lane.b32.xlu0 %v496, %s557
        %v559 = vpop.permute.xlu0 %558
        %v560 = vlaneseq
        %v561 = vshrl.u32 %v560, 7
        %v562 = vsub.s32 5, %v561
        %v563 = vrot.slane %v222, %v562
        %565 = vbcast.lane.b32.xlu0 %v563, 256
        %v566 = vpop.permute.xlu0 %565
        %s568 = sor.u32 256, 8
        %569 = vbcast.lane.b32.xlu0 %v563, %s568
        %v570 = vpop.permute.xlu0 %569
        %s572 = sor.u32 256, 16
        %573 = vbcast.lane.b32.xlu0 %v563, %s572
        %v574 = vpop.permute.xlu0 %573
        %s576 = sor.u32 256, 24
        %577 = vbcast.lane.b32.xlu0 %v563, %s576
        %v578 = vpop.permute.xlu0 %577
        %s580 = sor.u32 256, 32
        %581 = vbcast.lane.b32.xlu0 %v563, %s580
        %v582 = vpop.permute.xlu0 %581
        %s584 = sor.u32 256, 40
        %585 = vbcast.lane.b32.xlu0 %v563, %s584
        %v586 = vpop.permute.xlu0 %585
        %s588 = sor.u32 256, 48
        %589 = vbcast.lane.b32.xlu0 %v563, %s588
        %v590 = vpop.permute.xlu0 %589
        %s592 = sor.u32 256, 56
        %593 = vbcast.lane.b32.xlu0 %v563, %s592
        %v594 = vpop.permute.xlu0 %593
        %s596 = sor.u32 256, 64
        %597 = vbcast.lane.b32.xlu0 %v563, %s596
        %v598 = vpop.permute.xlu0 %597
        %s600 = sor.u32 256, 72
        %601 = vbcast.lane.b32.xlu0 %v563, %s600
        %v602 = vpop.permute.xlu0 %601
        %s604 = sor.u32 256, 80
        %605 = vbcast.lane.b32.xlu0 %v563, %s604
        %v606 = vpop.permute.xlu0 %605
        %s608 = sor.u32 256, 88
        %609 = vbcast.lane.b32.xlu0 %v563, %s608
        %v610 = vpop.permute.xlu0 %609
        %s612 = sor.u32 256, 96
        %613 = vbcast.lane.b32.xlu0 %v563, %s612
        %v614 = vpop.permute.xlu0 %613
        %s616 = sor.u32 256, 104
        %617 = vbcast.lane.b32.xlu0 %v563, %s616
        %v618 = vpop.permute.xlu0 %617
        %s620 = sor.u32 256, 112
        %621 = vbcast.lane.b32.xlu0 %v563, %s620
        %v622 = vpop.permute.xlu0 %621
        %s624 = sor.u32 256, 120
        %625 = vbcast.lane.b32.xlu0 %v563, %s624
        %v626 = vpop.permute.xlu0 %625
        %v627 = vlaneseq
        %v628 = vshrl.u32 %v627, 7
        %v629 = vsub.s32 6, %v628
        %v630 = vrot.slane %v222, %v629
        %632 = vbcast.lane.b32.xlu0 %v630, 256
        %v633 = vpop.permute.xlu0 %632
        %s635 = sor.u32 256, 8
        %636 = vbcast.lane.b32.xlu0 %v630, %s635
        %v637 = vpop.permute.xlu0 %636
        %s639 = sor.u32 256, 16
        %640 = vbcast.lane.b32.xlu0 %v630, %s639
        %v641 = vpop.permute.xlu0 %640
        %s643 = sor.u32 256, 24
        %644 = vbcast.lane.b32.xlu0 %v630, %s643
        %v645 = vpop.permute.xlu0 %644
        %s647 = sor.u32 256, 32
        %648 = vbcast.lane.b32.xlu0 %v630, %s647
        %v649 = vpop.permute.xlu0 %648
        %s651 = sor.u32 256, 40
        %652 = vbcast.lane.b32.xlu0 %v630, %s651
        %v653 = vpop.permute.xlu0 %652
        %s655 = sor.u32 256, 48
        %656 = vbcast.lane.b32.xlu0 %v630, %s655
        %v657 = vpop.permute.xlu0 %656
        %s659 = sor.u32 256, 56
        %660 = vbcast.lane.b32.xlu0 %v630, %s659
        %v661 = vpop.permute.xlu0 %660
        %s663 = sor.u32 256, 64
        %664 = vbcast.lane.b32.xlu0 %v630, %s663
        %v665 = vpop.permute.xlu0 %664
        %s667 = sor.u32 256, 72
        %668 = vbcast.lane.b32.xlu0 %v630, %s667
        %v669 = vpop.permute.xlu0 %668
        %s671 = sor.u32 256, 80
        %672 = vbcast.lane.b32.xlu0 %v630, %s671
        %v673 = vpop.permute.xlu0 %672
        %s675 = sor.u32 256, 88
        %676 = vbcast.lane.b32.xlu0 %v630, %s675
        %v677 = vpop.permute.xlu0 %676
        %s679 = sor.u32 256, 96
        %680 = vbcast.lane.b32.xlu0 %v630, %s679
        %v681 = vpop.permute.xlu0 %680
        %s683 = sor.u32 256, 104
        %684 = vbcast.lane.b32.xlu0 %v630, %s683
        %v685 = vpop.permute.xlu0 %684
        %s687 = sor.u32 256, 112
        %688 = vbcast.lane.b32.xlu0 %v630, %s687
        %v689 = vpop.permute.xlu0 %688
        %s691 = sor.u32 256, 120
        %692 = vbcast.lane.b32.xlu0 %v630, %s691
        %v693 = vpop.permute.xlu0 %692
        %v694 = vlaneseq
        %v695 = vshrl.u32 %v694, 7
        %v696 = vsub.s32 7, %v695
        %v697 = vrot.slane %v222, %v696
        %699 = vbcast.lane.b32.xlu0 %v697, 256
        %v700 = vpop.permute.xlu0 %699
        %s702 = sor.u32 256, 8
        %703 = vbcast.lane.b32.xlu0 %v697, %s702
        %v704 = vpop.permute.xlu0 %703
        %s706 = sor.u32 256, 16
        %707 = vbcast.lane.b32.xlu0 %v697, %s706
        %v708 = vpop.permute.xlu0 %707
        %s710 = sor.u32 256, 24
        %711 = vbcast.lane.b32.xlu0 %v697, %s710
        %v712 = vpop.permute.xlu0 %711
        %s714 = sor.u32 256, 32
        %715 = vbcast.lane.b32.xlu0 %v697, %s714
        %v716 = vpop.permute.xlu0 %715
        %s718 = sor.u32 256, 40
        %719 = vbcast.lane.b32.xlu0 %v697, %s718
        %v720 = vpop.permute.xlu0 %719
        %s722 = sor.u32 256, 48
        %723 = vbcast.lane.b32.xlu0 %v697, %s722
        %v724 = vpop.permute.xlu0 %723
        %s726 = sor.u32 256, 56
        %727 = vbcast.lane.b32.xlu0 %v697, %s726
        %v728 = vpop.permute.xlu0 %727
        %s730 = sor.u32 256, 64
        %731 = vbcast.lane.b32.xlu0 %v697, %s730
        %v732 = vpop.permute.xlu0 %731
        %s734 = sor.u32 256, 72
        %735 = vbcast.lane.b32.xlu0 %v697, %s734
        %v736 = vpop.permute.xlu0 %735
        %s738 = sor.u32 256, 80
        %739 = vbcast.lane.b32.xlu0 %v697, %s738
        %v740 = vpop.permute.xlu0 %739
        %s742 = sor.u32 256, 88
        %743 = vbcast.lane.b32.xlu0 %v697, %s742
        %v744 = vpop.permute.xlu0 %743
        %s746 = sor.u32 256, 96
        %747 = vbcast.lane.b32.xlu0 %v697, %s746
        %v748 = vpop.permute.xlu0 %747
        %s750 = sor.u32 256, 104
        %751 = vbcast.lane.b32.xlu0 %v697, %s750
        %v752 = vpop.permute.xlu0 %751
        %s754 = sor.u32 256, 112
        %755 = vbcast.lane.b32.xlu0 %v697, %s754
        %v756 = vpop.permute.xlu0 %755
        %s758 = sor.u32 256, 120
        %759 = vbcast.lane.b32.xlu0 %v697, %s758
        %v760 = vpop.permute.xlu0 %759
        %v761 = vlaneseq
        %v762 = vshrl.u32 %v761, 7
        %v763 = vsub.s32 0, %v762
        %v764 = vrot.slane %v224, %v763
        %766 = vbcast.lane.b32.xlu0 %v764, 256
        %v767 = vpop.permute.xlu0 %766
        %s769 = sor.u32 256, 8
        %770 = vbcast.lane.b32.xlu0 %v764, %s769
        %v771 = vpop.permute.xlu0 %770
        %s773 = sor.u32 256, 16
        %774 = vbcast.lane.b32.xlu0 %v764, %s773
        %v775 = vpop.permute.xlu0 %774
        %s777 = sor.u32 256, 24
        %778 = vbcast.lane.b32.xlu0 %v764, %s777
        %v779 = vpop.permute.xlu0 %778
        %s781 = sor.u32 256, 32
        %782 = vbcast.lane.b32.xlu0 %v764, %s781
        %v783 = vpop.permute.xlu0 %782
        %s785 = sor.u32 256, 40
        %786 = vbcast.lane.b32.xlu0 %v764, %s785
        %v787 = vpop.permute.xlu0 %786
        %s789 = sor.u32 256, 48
        %790 = vbcast.lane.b32.xlu0 %v764, %s789
        %v791 = vpop.permute.xlu0 %790
        %s793 = sor.u32 256, 56
        %794 = vbcast.lane.b32.xlu0 %v764, %s793
        %v795 = vpop.permute.xlu0 %794
        %s797 = sor.u32 256, 64
        %798 = vbcast.lane.b32.xlu0 %v764, %s797
        %v799 = vpop.permute.xlu0 %798
        %s801 = sor.u32 256, 72
        %802 = vbcast.lane.b32.xlu0 %v764, %s801
        %v803 = vpop.permute.xlu0 %802
        %s805 = sor.u32 256, 80
        %806 = vbcast.lane.b32.xlu0 %v764, %s805
        %v807 = vpop.permute.xlu0 %806
        %s809 = sor.u32 256, 88
        %810 = vbcast.lane.b32.xlu0 %v764, %s809
        %v811 = vpop.permute.xlu0 %810
        %s813 = sor.u32 256, 96
        %814 = vbcast.lane.b32.xlu0 %v764, %s813
        %v815 = vpop.permute.xlu0 %814
        %s817 = sor.u32 256, 104
        %818 = vbcast.lane.b32.xlu0 %v764, %s817
        %v819 = vpop.permute.xlu0 %818
        %s821 = sor.u32 256, 112
        %822 = vbcast.lane.b32.xlu0 %v764, %s821
        %v823 = vpop.permute.xlu0 %822
        %s825 = sor.u32 256, 120
        %826 = vbcast.lane.b32.xlu0 %v764, %s825
        %v827 = vpop.permute.xlu0 %826
        %v828 = vlaneseq
        %v829 = vshrl.u32 %v828, 7
        %v830 = vsub.s32 1, %v829
        %v831 = vrot.slane %v224, %v830
        %833 = vbcast.lane.b32.xlu0 %v831, 256
        %v834 = vpop.permute.xlu0 %833
        %s836 = sor.u32 256, 8
        %837 = vbcast.lane.b32.xlu0 %v831, %s836
        %v838 = vpop.permute.xlu0 %837
        %s840 = sor.u32 256, 16
        %841 = vbcast.lane.b32.xlu0 %v831, %s840
        %v842 = vpop.permute.xlu0 %841
        %s844 = sor.u32 256, 24
        %845 = vbcast.lane.b32.xlu0 %v831, %s844
        %v846 = vpop.permute.xlu0 %845
        %s848 = sor.u32 256, 32
        %849 = vbcast.lane.b32.xlu0 %v831, %s848
        %v850 = vpop.permute.xlu0 %849
        %s852 = sor.u32 256, 40
        %853 = vbcast.lane.b32.xlu0 %v831, %s852
        %v854 = vpop.permute.xlu0 %853
        %s856 = sor.u32 256, 48
        %857 = vbcast.lane.b32.xlu0 %v831, %s856
        %v858 = vpop.permute.xlu0 %857
        %s860 = sor.u32 256, 56
        %861 = vbcast.lane.b32.xlu0 %v831, %s860
        %v862 = vpop.permute.xlu0 %861
        %s864 = sor.u32 256, 64
        %865 = vbcast.lane.b32.xlu0 %v831, %s864
        %v866 = vpop.permute.xlu0 %865
        %s868 = sor.u32 256, 72
        %869 = vbcast.lane.b32.xlu0 %v831, %s868
        %v870 = vpop.permute.xlu0 %869
        %s872 = sor.u32 256, 80
        %873 = vbcast.lane.b32.xlu0 %v831, %s872
        %v874 = vpop.permute.xlu0 %873
        %s876 = sor.u32 256, 88
        %877 = vbcast.lane.b32.xlu0 %v831, %s876
        %v878 = vpop.permute.xlu0 %877
        %s880 = sor.u32 256, 96
        %881 = vbcast.lane.b32.xlu0 %v831, %s880
        %v882 = vpop.permute.xlu0 %881
        %s884 = sor.u32 256, 104
        %885 = vbcast.lane.b32.xlu0 %v831, %s884
        %v886 = vpop.permute.xlu0 %885
        %s888 = sor.u32 256, 112
        %889 = vbcast.lane.b32.xlu0 %v831, %s888
        %v890 = vpop.permute.xlu0 %889
        %s892 = sor.u32 256, 120
        %893 = vbcast.lane.b32.xlu0 %v831, %s892
        %v894 = vpop.permute.xlu0 %893
        %v895 = vlaneseq
        %v896 = vshrl.u32 %v895, 7
        %v897 = vsub.s32 2, %v896
        %v898 = vrot.slane %v224, %v897
        %900 = vbcast.lane.b32.xlu0 %v898, 256
        %v901 = vpop.permute.xlu0 %900
        %s903 = sor.u32 256, 8
        %904 = vbcast.lane.b32.xlu0 %v898, %s903
        %v905 = vpop.permute.xlu0 %904
        %s907 = sor.u32 256, 16
        %908 = vbcast.lane.b32.xlu0 %v898, %s907
        %v909 = vpop.permute.xlu0 %908
        %s911 = sor.u32 256, 24
        %912 = vbcast.lane.b32.xlu0 %v898, %s911
        %v913 = vpop.permute.xlu0 %912
        %s915 = sor.u32 256, 32
        %916 = vbcast.lane.b32.xlu0 %v898, %s915
        %v917 = vpop.permute.xlu0 %916
        %s919 = sor.u32 256, 40
        %920 = vbcast.lane.b32.xlu0 %v898, %s919
        %v921 = vpop.permute.xlu0 %920
        %s923 = sor.u32 256, 48
        %924 = vbcast.lane.b32.xlu0 %v898, %s923
        %v925 = vpop.permute.xlu0 %924
        %s927 = sor.u32 256, 56
        %928 = vbcast.lane.b32.xlu0 %v898, %s927
        %v929 = vpop.permute.xlu0 %928
        %s931 = sor.u32 256, 64
        %932 = vbcast.lane.b32.xlu0 %v898, %s931
        %v933 = vpop.permute.xlu0 %932
        %s935 = sor.u32 256, 72
        %936 = vbcast.lane.b32.xlu0 %v898, %s935
        %v937 = vpop.permute.xlu0 %936
        %s939 = sor.u32 256, 80
        %940 = vbcast.lane.b32.xlu0 %v898, %s939
        %v941 = vpop.permute.xlu0 %940
        %s943 = sor.u32 256, 88
        %944 = vbcast.lane.b32.xlu0 %v898, %s943
        %v945 = vpop.permute.xlu0 %944
        %s947 = sor.u32 256, 96
        %948 = vbcast.lane.b32.xlu0 %v898, %s947
        %v949 = vpop.permute.xlu0 %948
        %s951 = sor.u32 256, 104
        %952 = vbcast.lane.b32.xlu0 %v898, %s951
        %v953 = vpop.permute.xlu0 %952
        %s955 = sor.u32 256, 112
        %956 = vbcast.lane.b32.xlu0 %v898, %s955
        %v957 = vpop.permute.xlu0 %956
        %s959 = sor.u32 256, 120
        %960 = vbcast.lane.b32.xlu0 %v898, %s959
        %v961 = vpop.permute.xlu0 %960
        %v962 = vlaneseq
        %v963 = vshrl.u32 %v962, 7
        %v964 = vsub.s32 3, %v963
        %v965 = vrot.slane %v224, %v964
        %967 = vbcast.lane.b32.xlu0 %v965, 256
        %v968 = vpop.permute.xlu0 %967
        %s970 = sor.u32 256, 8
        %971 = vbcast.lane.b32.xlu0 %v965, %s970
        %v972 = vpop.permute.xlu0 %971
        %s974 = sor.u32 256, 16
        %975 = vbcast.lane.b32.xlu0 %v965, %s974
        %v976 = vpop.permute.xlu0 %975
        %s978 = sor.u32 256, 24
        %979 = vbcast.lane.b32.xlu0 %v965, %s978
        %v980 = vpop.permute.xlu0 %979
        %s982 = sor.u32 256, 32
        %983 = vbcast.lane.b32.xlu0 %v965, %s982
        %v984 = vpop.permute.xlu0 %983
        %s986 = sor.u32 256, 40
        %987 = vbcast.lane.b32.xlu0 %v965, %s986
        %v988 = vpop.permute.xlu0 %987
        %s990 = sor.u32 256, 48
        %991 = vbcast.lane.b32.xlu0 %v965, %s990
        %v992 = vpop.permute.xlu0 %991
        %s994 = sor.u32 256, 56
        %995 = vbcast.lane.b32.xlu0 %v965, %s994
        %v996 = vpop.permute.xlu0 %995
        %s998 = sor.u32 256, 64
        %999 = vbcast.lane.b32.xlu0 %v965, %s998
        %v1000 = vpop.permute.xlu0 %999
        %s1002 = sor.u32 256, 72
        %1003 = vbcast.lane.b32.xlu0 %v965, %s1002
        %v1004 = vpop.permute.xlu0 %1003
        %s1006 = sor.u32 256, 80
        %1007 = vbcast.lane.b32.xlu0 %v965, %s1006
        %v1008 = vpop.permute.xlu0 %1007
        %s1010 = sor.u32 256, 88
        %1011 = vbcast.lane.b32.xlu0 %v965, %s1010
        %v1012 = vpop.permute.xlu0 %1011
        %s1014 = sor.u32 256, 96
        %1015 = vbcast.lane.b32.xlu0 %v965, %s1014
        %v1016 = vpop.permute.xlu0 %1015
        %s1018 = sor.u32 256, 104
        %1019 = vbcast.lane.b32.xlu0 %v965, %s1018
        %v1020 = vpop.permute.xlu0 %1019
        %s1022 = sor.u32 256, 112
        %1023 = vbcast.lane.b32.xlu0 %v965, %s1022
        %v1024 = vpop.permute.xlu0 %1023
        %s1026 = sor.u32 256, 120
        %1027 = vbcast.lane.b32.xlu0 %v965, %s1026
        %v1028 = vpop.permute.xlu0 %1027
        %v1029 = vlaneseq
        %v1030 = vshrl.u32 %v1029, 7
        %v1031 = vsub.s32 4, %v1030
        %v1032 = vrot.slane %v224, %v1031
        %1034 = vbcast.lane.b32.xlu0 %v1032, 256
        %v1035 = vpop.permute.xlu0 %1034
        %s1037 = sor.u32 256, 8
        %1038 = vbcast.lane.b32.xlu0 %v1032, %s1037
        %v1039 = vpop.permute.xlu0 %1038
        %s1041 = sor.u32 256, 16
        %1042 = vbcast.lane.b32.xlu0 %v1032, %s1041
        %v1043 = vpop.permute.xlu0 %1042
        %s1045 = sor.u32 256, 24
        %1046 = vbcast.lane.b32.xlu0 %v1032, %s1045
        %v1047 = vpop.permute.xlu0 %1046
        %s1049 = sor.u32 256, 32
        %1050 = vbcast.lane.b32.xlu0 %v1032, %s1049
        %v1051 = vpop.permute.xlu0 %1050
        %s1053 = sor.u32 256, 40
        %1054 = vbcast.lane.b32.xlu0 %v1032, %s1053
        %v1055 = vpop.permute.xlu0 %1054
        %s1057 = sor.u32 256, 48
        %1058 = vbcast.lane.b32.xlu0 %v1032, %s1057
        %v1059 = vpop.permute.xlu0 %1058
        %s1061 = sor.u32 256, 56
        %1062 = vbcast.lane.b32.xlu0 %v1032, %s1061
        %v1063 = vpop.permute.xlu0 %1062
        %s1065 = sor.u32 256, 64
        %1066 = vbcast.lane.b32.xlu0 %v1032, %s1065
        %v1067 = vpop.permute.xlu0 %1066
        %s1069 = sor.u32 256, 72
        %1070 = vbcast.lane.b32.xlu0 %v1032, %s1069
        %v1071 = vpop.permute.xlu0 %1070
        %s1073 = sor.u32 256, 80
        %1074 = vbcast.lane.b32.xlu0 %v1032, %s1073
        %v1075 = vpop.permute.xlu0 %1074
        %s1077 = sor.u32 256, 88
        %1078 = vbcast.lane.b32.xlu0 %v1032, %s1077
        %v1079 = vpop.permute.xlu0 %1078
        %s1081 = sor.u32 256, 96
        %1082 = vbcast.lane.b32.xlu0 %v1032, %s1081
        %v1083 = vpop.permute.xlu0 %1082
        %s1085 = sor.u32 256, 104
        %1086 = vbcast.lane.b32.xlu0 %v1032, %s1085
        %v1087 = vpop.permute.xlu0 %1086
        %s1089 = sor.u32 256, 112
        %1090 = vbcast.lane.b32.xlu0 %v1032, %s1089
        %v1091 = vpop.permute.xlu0 %1090
        %s1093 = sor.u32 256, 120
        %1094 = vbcast.lane.b32.xlu0 %v1032, %s1093
        %v1095 = vpop.permute.xlu0 %1094
        %v1096 = vlaneseq
        %v1097 = vshrl.u32 %v1096, 7
        %v1098 = vsub.s32 5, %v1097
        %v1099 = vrot.slane %v224, %v1098
        %1101 = vbcast.lane.b32.xlu0 %v1099, 256
        %v1102 = vpop.permute.xlu0 %1101
        %s1104 = sor.u32 256, 8
        %1105 = vbcast.lane.b32.xlu0 %v1099, %s1104
        %v1106 = vpop.permute.xlu0 %1105
        %s1108 = sor.u32 256, 16
        %1109 = vbcast.lane.b32.xlu0 %v1099, %s1108
        %v1110 = vpop.permute.xlu0 %1109
        %s1112 = sor.u32 256, 24
        %1113 = vbcast.lane.b32.xlu0 %v1099, %s1112
        %v1114 = vpop.permute.xlu0 %1113
        %s1116 = sor.u32 256, 32
        %1117 = vbcast.lane.b32.xlu0 %v1099, %s1116
        %v1118 = vpop.permute.xlu0 %1117
        %s1120 = sor.u32 256, 40
        %1121 = vbcast.lane.b32.xlu0 %v1099, %s1120
        %v1122 = vpop.permute.xlu0 %1121
        %s1124 = sor.u32 256, 48
        %1125 = vbcast.lane.b32.xlu0 %v1099, %s1124
        %v1126 = vpop.permute.xlu0 %1125
        %s1128 = sor.u32 256, 56
        %1129 = vbcast.lane.b32.xlu0 %v1099, %s1128
        %v1130 = vpop.permute.xlu0 %1129
        %s1132 = sor.u32 256, 64
        %1133 = vbcast.lane.b32.xlu0 %v1099, %s1132
        %v1134 = vpop.permute.xlu0 %1133
        %s1136 = sor.u32 256, 72
        %1137 = vbcast.lane.b32.xlu0 %v1099, %s1136
        %v1138 = vpop.permute.xlu0 %1137
        %s1140 = sor.u32 256, 80
        %1141 = vbcast.lane.b32.xlu0 %v1099, %s1140
        %v1142 = vpop.permute.xlu0 %1141
        %s1144 = sor.u32 256, 88
        %1145 = vbcast.lane.b32.xlu0 %v1099, %s1144
        %v1146 = vpop.permute.xlu0 %1145
        %s1148 = sor.u32 256, 96
        %1149 = vbcast.lane.b32.xlu0 %v1099, %s1148
        %v1150 = vpop.permute.xlu0 %1149
        %s1152 = sor.u32 256, 104
        %1153 = vbcast.lane.b32.xlu0 %v1099, %s1152
        %v1154 = vpop.permute.xlu0 %1153
        %s1156 = sor.u32 256, 112
        %1157 = vbcast.lane.b32.xlu0 %v1099, %s1156
        %v1158 = vpop.permute.xlu0 %1157
        %s1160 = sor.u32 256, 120
        %1161 = vbcast.lane.b32.xlu0 %v1099, %s1160
        %v1162 = vpop.permute.xlu0 %1161
        %v1163 = vlaneseq
        %v1164 = vshrl.u32 %v1163, 7
        %v1165 = vsub.s32 6, %v1164
        %v1166 = vrot.slane %v224, %v1165
        %1168 = vbcast.lane.b32.xlu0 %v1166, 256
        %v1169 = vpop.permute.xlu0 %1168
        %s1171 = sor.u32 256, 8
        %1172 = vbcast.lane.b32.xlu0 %v1166, %s1171
        %v1173 = vpop.permute.xlu0 %1172
        %s1175 = sor.u32 256, 16
        %1176 = vbcast.lane.b32.xlu0 %v1166, %s1175
        %v1177 = vpop.permute.xlu0 %1176
        %s1179 = sor.u32 256, 24
        %1180 = vbcast.lane.b32.xlu0 %v1166, %s1179
        %v1181 = vpop.permute.xlu0 %1180
        %s1183 = sor.u32 256, 32
        %1184 = vbcast.lane.b32.xlu0 %v1166, %s1183
        %v1185 = vpop.permute.xlu0 %1184
        %s1187 = sor.u32 256, 40
        %1188 = vbcast.lane.b32.xlu0 %v1166, %s1187
        %v1189 = vpop.permute.xlu0 %1188
        %s1191 = sor.u32 256, 48
        %1192 = vbcast.lane.b32.xlu0 %v1166, %s1191
        %v1193 = vpop.permute.xlu0 %1192
        %s1195 = sor.u32 256, 56
        %1196 = vbcast.lane.b32.xlu0 %v1166, %s1195
        %v1197 = vpop.permute.xlu0 %1196
        %s1199 = sor.u32 256, 64
        %1200 = vbcast.lane.b32.xlu0 %v1166, %s1199
        %v1201 = vpop.permute.xlu0 %1200
        %s1203 = sor.u32 256, 72
        %1204 = vbcast.lane.b32.xlu0 %v1166, %s1203
        %v1205 = vpop.permute.xlu0 %1204
        %s1207 = sor.u32 256, 80
        %1208 = vbcast.lane.b32.xlu0 %v1166, %s1207
        %v1209 = vpop.permute.xlu0 %1208
        %s1211 = sor.u32 256, 88
        %1212 = vbcast.lane.b32.xlu0 %v1166, %s1211
        %v1213 = vpop.permute.xlu0 %1212
        %s1215 = sor.u32 256, 96
        %1216 = vbcast.lane.b32.xlu0 %v1166, %s1215
        %v1217 = vpop.permute.xlu0 %1216
        %s1219 = sor.u32 256, 104
        %1220 = vbcast.lane.b32.xlu0 %v1166, %s1219
        %v1221 = vpop.permute.xlu0 %1220
        %s1223 = sor.u32 256, 112
        %1224 = vbcast.lane.b32.xlu0 %v1166, %s1223
        %v1225 = vpop.permute.xlu0 %1224
        %s1227 = sor.u32 256, 120
        %1228 = vbcast.lane.b32.xlu0 %v1166, %s1227
        %v1229 = vpop.permute.xlu0 %1228
        %v1230 = vlaneseq
        %v1231 = vshrl.u32 %v1230, 7
        %v1232 = vsub.s32 7, %v1231
        %v1233 = vrot.slane %v224, %v1232
        %1235 = vbcast.lane.b32.xlu0 %v1233, 256
        %v1236 = vpop.permute.xlu0 %1235
        %s1238 = sor.u32 256, 8
        %1239 = vbcast.lane.b32.xlu0 %v1233, %s1238
        %v1240 = vpop.permute.xlu0 %1239
        %s1242 = sor.u32 256, 16
        %1243 = vbcast.lane.b32.xlu0 %v1233, %s1242
        %v1244 = vpop.permute.xlu0 %1243
        %s1246 = sor.u32 256, 24
        %1247 = vbcast.lane.b32.xlu0 %v1233, %s1246
        %v1248 = vpop.permute.xlu0 %1247
        %s1250 = sor.u32 256, 32
        %1251 = vbcast.lane.b32.xlu0 %v1233, %s1250
        %v1252 = vpop.permute.xlu0 %1251
        %s1254 = sor.u32 256, 40
        %1255 = vbcast.lane.b32.xlu0 %v1233, %s1254
        %v1256 = vpop.permute.xlu0 %1255
        %s1258 = sor.u32 256, 48
        %1259 = vbcast.lane.b32.xlu0 %v1233, %s1258
        %v1260 = vpop.permute.xlu0 %1259
        %s1262 = sor.u32 256, 56
        %1263 = vbcast.lane.b32.xlu0 %v1233, %s1262
        %v1264 = vpop.permute.xlu0 %1263
        %s1266 = sor.u32 256, 64
        %1267 = vbcast.lane.b32.xlu0 %v1233, %s1266
        %v1268 = vpop.permute.xlu0 %1267
        %s1270 = sor.u32 256, 72
        %1271 = vbcast.lane.b32.xlu0 %v1233, %s1270
        %v1272 = vpop.permute.xlu0 %1271
        %s1274 = sor.u32 256, 80
        %1275 = vbcast.lane.b32.xlu0 %v1233, %s1274
        %v1276 = vpop.permute.xlu0 %1275
        %s1278 = sor.u32 256, 88
        %1279 = vbcast.lane.b32.xlu0 %v1233, %s1278
        %v1280 = vpop.permute.xlu0 %1279
        %s1282 = sor.u32 256, 96
        %1283 = vbcast.lane.b32.xlu0 %v1233, %s1282
        %v1284 = vpop.permute.xlu0 %1283
        %s1286 = sor.u32 256, 104
        %1287 = vbcast.lane.b32.xlu0 %v1233, %s1286
        %v1288 = vpop.permute.xlu0 %1287
        %s1290 = sor.u32 256, 112
        %1291 = vbcast.lane.b32.xlu0 %v1233, %s1290
        %v1292 = vpop.permute.xlu0 %1291
        %s1294 = sor.u32 256, 120
        %1295 = vbcast.lane.b32.xlu0 %v1233, %s1294
        %v1296 = vpop.permute.xlu0 %1295
        %vm1297 = vcmask 7168
        %v1298 = vsel %vm1297, %v231, %v767
        %v1299 = vsel %vm1297, %v235, %v771
        %v1300 = vsel %vm1297, %v239, %v775
        %v1301 = vsel %vm1297, %v243, %v779
        %v1302 = vsel %vm1297, %v247, %v783
        %v1303 = vsel %vm1297, %v251, %v787
        %v1304 = vsel %vm1297, %v255, %v791
        %v1305 = vsel %vm1297, %v259, %v795
        %v1306 = vsel %vm1297, %v263, %v799
        %v1307 = vsel %vm1297, %v267, %v803
        %v1308 = vsel %vm1297, %v271, %v807
        %v1309 = vsel %vm1297, %v275, %v811
        %v1310 = vsel %vm1297, %v279, %v815
        %v1311 = vsel %vm1297, %v283, %v819
        %v1312 = vsel %vm1297, %v287, %v823
        %v1313 = vsel %vm1297, %v291, %v827
        %v1314 = vsel %vm1297, %v298, %v834
        %v1315 = vsel %vm1297, %v302, %v838
        %v1316 = vsel %vm1297, %v306, %v842
        %v1317 = vsel %vm1297, %v310, %v846
        %v1318 = vsel %vm1297, %v314, %v850
        %v1319 = vsel %vm1297, %v318, %v854
        %v1320 = vsel %vm1297, %v322, %v858
        %v1321 = vsel %vm1297, %v326, %v862
        %v1322 = vsel %vm1297, %v330, %v866
        %v1323 = vsel %vm1297, %v334, %v870
        %v1324 = vsel %vm1297, %v338, %v874
        %v1325 = vsel %vm1297, %v342, %v878
        %v1326 = vsel %vm1297, %v346, %v882
        %v1327 = vsel %vm1297, %v350, %v886
        %v1328 = vsel %vm1297, %v354, %v890
        %v1329 = vsel %vm1297, %v358, %v894
        %v1330 = vsel %vm1297, %v365, %v901
        %v1331 = vsel %vm1297, %v369, %v905
        %v1332 = vsel %vm1297, %v373, %v909
        %v1333 = vsel %vm1297, %v377, %v913
        %v1334 = vsel %vm1297, %v381, %v917
        %v1335 = vsel %vm1297, %v385, %v921
        %v1336 = vsel %vm1297, %v389, %v925
        %v1337 = vsel %vm1297, %v393, %v929
        %v1338 = vsel %vm1297, %v397, %v933
        %v1339 = vsel %vm1297, %v401, %v937
        %v1340 = vsel %vm1297, %v405, %v941
        %v1341 = vsel %vm1297, %v409, %v945
        %v1342 = vsel %vm1297, %v413, %v949
        %v1343 = vsel %vm1297, %v417, %v953
        %v1344 = vsel %vm1297, %v421, %v957
        %v1345 = vsel %vm1297, %v425, %v961
        %v1346 = vsel %vm1297, %v432, %v968
        %v1347 = vsel %vm1297, %v436, %v972
        %v1348 = vsel %vm1297, %v440, %v976
        %v1349 = vsel %vm1297, %v444, %v980
        %v1350 = vsel %vm1297, %v448, %v984
        %v1351 = vsel %vm1297, %v452, %v988
        %v1352 = vsel %vm1297, %v456, %v992
        %v1353 = vsel %vm1297, %v460, %v996
        %v1354 = vsel %vm1297, %v464, %v1000
        %v1355 = vsel %vm1297, %v468, %v1004
        %v1356 = vsel %vm1297, %v472, %v1008
        %v1357 = vsel %vm1297, %v476, %v1012
        %v1358 = vsel %vm1297, %v480, %v1016
        %v1359 = vsel %vm1297, %v484, %v1020
        %v1360 = vsel %vm1297, %v488, %v1024
        %v1361 = vsel %vm1297, %v492, %v1028
        %v1362 = vsel %vm1297, %v499, %v1035
        %v1363 = vsel %vm1297, %v503, %v1039
        %v1364 = vsel %vm1297, %v507, %v1043
        %v1365 = vsel %vm1297, %v511, %v1047
        %v1366 = vsel %vm1297, %v515, %v1051
        %v1367 = vsel %vm1297, %v519, %v1055
        %v1368 = vsel %vm1297, %v523, %v1059
        %v1369 = vsel %vm1297, %v527, %v1063
        %v1370 = vsel %vm1297, %v531, %v1067
        %v1371 = vsel %vm1297, %v535, %v1071
        %v1372 = vsel %vm1297, %v539, %v1075
        %v1373 = vsel %vm1297, %v543, %v1079
        %v1374 = vsel %vm1297, %v547, %v1083
        %v1375 = vsel %vm1297, %v551, %v1087
        %v1376 = vsel %vm1297, %v555, %v1091
        %v1377 = vsel %vm1297, %v559, %v1095
        %v1378 = vsel %vm1297, %v566, %v1102
        %v1379 = vsel %vm1297, %v570, %v1106
        %v1380 = vsel %vm1297, %v574, %v1110
        %v1381 = vsel %vm1297, %v578, %v1114
        %v1382 = vsel %vm1297, %v582, %v1118
        %v1383 = vsel %vm1297, %v586, %v1122
        %v1384 = vsel %vm1297, %v590, %v1126
        %v1385 = vsel %vm1297, %v594, %v1130
        %v1386 = vsel %vm1297, %v598, %v1134
        %v1387 = vsel %vm1297, %v602, %v1138
        %v1388 = vsel %vm1297, %v606, %v1142
        %v1389 = vsel %vm1297, %v610, %v1146
        %v1390 = vsel %vm1297, %v614, %v1150
        %v1391 = vsel %vm1297, %v618, %v1154
        %v1392 = vsel %vm1297, %v622, %v1158
        %v1393 = vsel %vm1297, %v626, %v1162
        %v1394 = vsel %vm1297, %v633, %v1169
        %v1395 = vsel %vm1297, %v637, %v1173
        %v1396 = vsel %vm1297, %v641, %v1177
        %v1397 = vsel %vm1297, %v645, %v1181
        %v1398 = vsel %vm1297, %v649, %v1185
        %v1399 = vsel %vm1297, %v653, %v1189
        %v1400 = vsel %vm1297, %v657, %v1193
        %v1401 = vsel %vm1297, %v661, %v1197
        %v1402 = vsel %vm1297, %v665, %v1201
        %v1403 = vsel %vm1297, %v669, %v1205
        %v1404 = vsel %vm1297, %v673, %v1209
        %v1405 = vsel %vm1297, %v677, %v1213
        %v1406 = vsel %vm1297, %v681, %v1217
        %v1407 = vsel %vm1297, %v685, %v1221
        %v1408 = vsel %vm1297, %v689, %v1225
        %v1409 = vsel %vm1297, %v693, %v1229
        %v1410 = vsel %vm1297, %v700, %v1236
        %v1411 = vsel %vm1297, %v704, %v1240
        %v1412 = vsel %vm1297, %v708, %v1244
        %v1413 = vsel %vm1297, %v712, %v1248
        %v1414 = vsel %vm1297, %v716, %v1252
        %v1415 = vsel %vm1297, %v720, %v1256
        %v1416 = vsel %vm1297, %v724, %v1260
        %v1417 = vsel %vm1297, %v728, %v1264
        %v1418 = vsel %vm1297, %v732, %v1268
        %v1419 = vsel %vm1297, %v736, %v1272
        %v1420 = vsel %vm1297, %v740, %v1276
        %v1421 = vsel %vm1297, %v744, %v1280
        %v1422 = vsel %vm1297, %v748, %v1284
        %v1423 = vsel %vm1297, %v752, %v1288
        %v1424 = vsel %vm1297, %v756, %v1292
        %v1425 = vsel %vm1297, %v760, %v1296
        %v1426 = vcombine.low %v1298, %v1330
        %v1427 = vcombine.high %v1298, %v1330
        %v1429 = vunpack.c.l.s4 1983009808
        %v1430 = vunpack.c.0.s8 %v1429
        %v1431 = vlaneseq
        %v1432 = vshrl.u32 %v1431, 7
        %v1433 = vsub.s32 %v1430, %v1432
        %v1434 = vrot.slane %v1426, %v1433
        %v1436 = vunpack.c.l.s4 1983009808
        %v1437 = vunpack.c.0.s8 %v1436
        %v1438 = vlaneseq
        %v1439 = vshrl.u32 %v1438, 7
        %v1440 = vsub.s32 %v1437, %v1439
        %v1441 = vrot.slane %v1427, %v1440
        %v1442 = vcombine.low %v1314, %v1346
        %v1443 = vcombine.high %v1314, %v1346
        %v1445 = vunpack.c.l.s4 1983009808
        %v1446 = vunpack.c.0.s8 %v1445
        %v1447 = vlaneseq
        %v1448 = vshrl.u32 %v1447, 7
        %v1449 = vsub.s32 %v1446, %v1448
        %v1450 = vrot.slane %v1442, %v1449
        %v1452 = vunpack.c.l.s4 1983009808
        %v1453 = vunpack.c.0.s8 %v1452
        %v1454 = vlaneseq
        %v1455 = vshrl.u32 %v1454, 7
        %v1456 = vsub.s32 %v1453, %v1455
        %v1457 = vrot.slane %v1443, %v1456
        %v1458 = vcombine.low %v1362, %v1394
        %v1459 = vcombine.high %v1362, %v1394
        %v1461 = vunpack.c.l.s4 1983009808
        %v1462 = vunpack.c.0.s8 %v1461
        %v1463 = vlaneseq
        %v1464 = vshrl.u32 %v1463, 7
        %v1465 = vsub.s32 %v1462, %v1464
        %v1466 = vrot.slane %v1458, %v1465
        %v1468 = vunpack.c.l.s4 1983009808
        %v1469 = vunpack.c.0.s8 %v1468
        %v1470 = vlaneseq
        %v1471 = vshrl.u32 %v1470, 7
        %v1472 = vsub.s32 %v1469, %v1471
        %v1473 = vrot.slane %v1459, %v1472
        %v1474 = vcombine.low %v1378, %v1410
        %v1475 = vcombine.high %v1378, %v1410
        %v1477 = vunpack.c.l.s4 1983009808
        %v1478 = vunpack.c.0.s8 %v1477
        %v1479 = vlaneseq
        %v1480 = vshrl.u32 %v1479, 7
        %v1481 = vsub.s32 %v1478, %v1480
        %v1482 = vrot.slane %v1474, %v1481
        %v1484 = vunpack.c.l.s4 1983009808
        %v1485 = vunpack.c.0.s8 %v1484
        %v1486 = vlaneseq
        %v1487 = vshrl.u32 %v1486, 7
        %v1488 = vsub.s32 %v1485, %v1487
        %v1489 = vrot.slane %v1475, %v1488
        %v1490 = vcombine.low %v1434, %v1450
        %v1491 = vcombine.high %v1434, %v1450
        %v1493 = vunpack.c.l.s4 1934713408
        %v1494 = vunpack.c.0.s8 %v1493
        %v1495 = vlaneseq
        %v1496 = vshrl.u32 %v1495, 7
        %v1497 = vsub.s32 %v1494, %v1496
        %v1498 = vrot.slane %v1490, %v1497
        %v1500 = vunpack.c.l.s4 1934713408
        %v1501 = vunpack.c.0.s8 %v1500
        %v1502 = vlaneseq
        %v1503 = vshrl.u32 %v1502, 7
        %v1504 = vsub.s32 %v1501, %v1503
        %v1505 = vrot.slane %v1491, %v1504
        %v1506 = vcombine.low %v1441, %v1457
        %v1507 = vcombine.high %v1441, %v1457
        %v1509 = vunpack.c.l.s4 1934713408
        %v1510 = vunpack.c.0.s8 %v1509
        %v1511 = vlaneseq
        %v1512 = vshrl.u32 %v1511, 7
        %v1513 = vsub.s32 %v1510, %v1512
        %v1514 = vrot.slane %v1506, %v1513
        %v1516 = vunpack.c.l.s4 1934713408
        %v1517 = vunpack.c.0.s8 %v1516
        %v1518 = vlaneseq
        %v1519 = vshrl.u32 %v1518, 7
        %v1520 = vsub.s32 %v1517, %v1519
        %v1521 = vrot.slane %v1507, %v1520
        %v1522 = vcombine.low %v1466, %v1482
        %v1523 = vcombine.high %v1466, %v1482
        %v1525 = vunpack.c.l.s4 1934713408
        %v1526 = vunpack.c.0.s8 %v1525
        %v1527 = vlaneseq
        %v1528 = vshrl.u32 %v1527, 7
        %v1529 = vsub.s32 %v1526, %v1528
        %v1530 = vrot.slane %v1522, %v1529
        %v1532 = vunpack.c.l.s4 1934713408
        %v1533 = vunpack.c.0.s8 %v1532
        %v1534 = vlaneseq
        %v1535 = vshrl.u32 %v1534, 7
        %v1536 = vsub.s32 %v1533, %v1535
        %v1537 = vrot.slane %v1523, %v1536
        %v1538 = vcombine.low %v1473, %v1489
        %v1539 = vcombine.high %v1473, %v1489
        %v1541 = vunpack.c.l.s4 1934713408
        %v1542 = vunpack.c.0.s8 %v1541
        %v1543 = vlaneseq
        %v1544 = vshrl.u32 %v1543, 7
        %v1545 = vsub.s32 %v1542, %v1544
        %v1546 = vrot.slane %v1538, %v1545
        %v1548 = vunpack.c.l.s4 1934713408
        %v1549 = vunpack.c.0.s8 %v1548
        %v1550 = vlaneseq
        %v1551 = vshrl.u32 %v1550, 7
        %v1552 = vsub.s32 %v1549, %v1551
        %v1553 = vrot.slane %v1539, %v1552
        %v1554 = vcombine.low %v1498, %v1530
        %v1555 = vcombine.high %v1498, %v1530
        %v1556 = vcombine.low %v1505, %v1537
        %v1557 = vcombine.high %v1505, %v1537
        %v1558 = vcombine.low %v1514, %v1546
        %v1559 = vcombine.high %v1514, %v1546
        %v1560 = vcombine.low %v1521, %v1553
        %v1561 = vcombine.high %v1521, %v1553
        %v1562 = vcombine.low %v1299, %v1331
        %v1563 = vcombine.high %v1299, %v1331
        %v1565 = vunpack.c.l.s4 1983009808
        %v1566 = vunpack.c.0.s8 %v1565
        %v1567 = vlaneseq
        %v1568 = vshrl.u32 %v1567, 7
        %v1569 = vsub.s32 %v1566, %v1568
        %v1570 = vrot.slane %v1562, %v1569
        %v1572 = vunpack.c.l.s4 1983009808
        %v1573 = vunpack.c.0.s8 %v1572
        %v1574 = vlaneseq
        %v1575 = vshrl.u32 %v1574, 7
        %v1576 = vsub.s32 %v1573, %v1575
        %v1577 = vrot.slane %v1563, %v1576
        %v1578 = vcombine.low %v1315, %v1347
        %v1579 = vcombine.high %v1315, %v1347
        %v1581 = vunpack.c.l.s4 1983009808
        %v1582 = vunpack.c.0.s8 %v1581
        %v1583 = vlaneseq
        %v1584 = vshrl.u32 %v1583, 7
        %v1585 = vsub.s32 %v1582, %v1584
        %v1586 = vrot.slane %v1578, %v1585
        %v1588 = vunpack.c.l.s4 1983009808
        %v1589 = vunpack.c.0.s8 %v1588
        %v1590 = vlaneseq
        %v1591 = vshrl.u32 %v1590, 7
        %v1592 = vsub.s32 %v1589, %v1591
        %v1593 = vrot.slane %v1579, %v1592
        %v1594 = vcombine.low %v1363, %v1395
        %v1595 = vcombine.high %v1363, %v1395
        %v1597 = vunpack.c.l.s4 1983009808
        %v1598 = vunpack.c.0.s8 %v1597
        %v1599 = vlaneseq
        %v1600 = vshrl.u32 %v1599, 7
        %v1601 = vsub.s32 %v1598, %v1600
        %v1602 = vrot.slane %v1594, %v1601
        %v1604 = vunpack.c.l.s4 1983009808
        %v1605 = vunpack.c.0.s8 %v1604
        %v1606 = vlaneseq
        %v1607 = vshrl.u32 %v1606, 7
        %v1608 = vsub.s32 %v1605, %v1607
        %v1609 = vrot.slane %v1595, %v1608
        %v1610 = vcombine.low %v1379, %v1411
        %v1611 = vcombine.high %v1379, %v1411
        %v1613 = vunpack.c.l.s4 1983009808
        %v1614 = vunpack.c.0.s8 %v1613
        %v1615 = vlaneseq
        %v1616 = vshrl.u32 %v1615, 7
        %v1617 = vsub.s32 %v1614, %v1616
        %v1618 = vrot.slane %v1610, %v1617
        %v1620 = vunpack.c.l.s4 1983009808
        %v1621 = vunpack.c.0.s8 %v1620
        %v1622 = vlaneseq
        %v1623 = vshrl.u32 %v1622, 7
        %v1624 = vsub.s32 %v1621, %v1623
        %v1625 = vrot.slane %v1611, %v1624
        %v1626 = vcombine.low %v1570, %v1586
        %v1627 = vcombine.high %v1570, %v1586
        %v1629 = vunpack.c.l.s4 1934713408
        %v1630 = vunpack.c.0.s8 %v1629
        %v1631 = vlaneseq
        %v1632 = vshrl.u32 %v1631, 7
        %v1633 = vsub.s32 %v1630, %v1632
        %v1634 = vrot.slane %v1626, %v1633
        %v1636 = vunpack.c.l.s4 1934713408
        %v1637 = vunpack.c.0.s8 %v1636
        %v1638 = vlaneseq
        %v1639 = vshrl.u32 %v1638, 7
        %v1640 = vsub.s32 %v1637, %v1639
        %v1641 = vrot.slane %v1627, %v1640
        %v1642 = vcombine.low %v1577, %v1593
        %v1643 = vcombine.high %v1577, %v1593
        %v1645 = vunpack.c.l.s4 1934713408
        %v1646 = vunpack.c.0.s8 %v1645
        %v1647 = vlaneseq
        %v1648 = vshrl.u32 %v1647, 7
        %v1649 = vsub.s32 %v1646, %v1648
        %v1650 = vrot.slane %v1642, %v1649
        %v1652 = vunpack.c.l.s4 1934713408
        %v1653 = vunpack.c.0.s8 %v1652
        %v1654 = vlaneseq
        %v1655 = vshrl.u32 %v1654, 7
        %v1656 = vsub.s32 %v1653, %v1655
        %v1657 = vrot.slane %v1643, %v1656
        %v1658 = vcombine.low %v1602, %v1618
        %v1659 = vcombine.high %v1602, %v1618
        %v1661 = vunpack.c.l.s4 1934713408
        %v1662 = vunpack.c.0.s8 %v1661
        %v1663 = vlaneseq
        %v1664 = vshrl.u32 %v1663, 7
        %v1665 = vsub.s32 %v1662, %v1664
        %v1666 = vrot.slane %v1658, %v1665
        %v1668 = vunpack.c.l.s4 1934713408
        %v1669 = vunpack.c.0.s8 %v1668
        %v1670 = vlaneseq
        %v1671 = vshrl.u32 %v1670, 7
        %v1672 = vsub.s32 %v1669, %v1671
        %v1673 = vrot.slane %v1659, %v1672
        %v1674 = vcombine.low %v1609, %v1625
        %v1675 = vcombine.high %v1609, %v1625
        %v1677 = vunpack.c.l.s4 1934713408
        %v1678 = vunpack.c.0.s8 %v1677
        %v1679 = vlaneseq
        %v1680 = vshrl.u32 %v1679, 7
        %v1681 = vsub.s32 %v1678, %v1680
        %v1682 = vrot.slane %v1674, %v1681
        %v1684 = vunpack.c.l.s4 1934713408
        %v1685 = vunpack.c.0.s8 %v1684
        %v1686 = vlaneseq
        %v1687 = vshrl.u32 %v1686, 7
        %v1688 = vsub.s32 %v1685, %v1687
        %v1689 = vrot.slane %v1675, %v1688
        %v1690 = vcombine.low %v1634, %v1666
        %v1691 = vcombine.high %v1634, %v1666
        %v1692 = vcombine.low %v1641, %v1673
        %v1693 = vcombine.high %v1641, %v1673
        %v1694 = vcombine.low %v1650, %v1682
        %v1695 = vcombine.high %v1650, %v1682
        %v1696 = vcombine.low %v1657, %v1689
        %v1697 = vcombine.high %v1657, %v1689
        %v1698 = vcombine.low %v1300, %v1332
        %v1699 = vcombine.high %v1300, %v1332
        %v1701 = vunpack.c.l.s4 1983009808
        %v1702 = vunpack.c.0.s8 %v1701
        %v1703 = vlaneseq
        %v1704 = vshrl.u32 %v1703, 7
        %v1705 = vsub.s32 %v1702, %v1704
        %v1706 = vrot.slane %v1698, %v1705
        %v1708 = vunpack.c.l.s4 1983009808
        %v1709 = vunpack.c.0.s8 %v1708
        %v1710 = vlaneseq
        %v1711 = vshrl.u32 %v1710, 7
        %v1712 = vsub.s32 %v1709, %v1711
        %v1713 = vrot.slane %v1699, %v1712
        %v1714 = vcombine.low %v1316, %v1348
        %v1715 = vcombine.high %v1316, %v1348
        %v1717 = vunpack.c.l.s4 1983009808
        %v1718 = vunpack.c.0.s8 %v1717
        %v1719 = vlaneseq
        %v1720 = vshrl.u32 %v1719, 7
        %v1721 = vsub.s32 %v1718, %v1720
        %v1722 = vrot.slane %v1714, %v1721
        %v1724 = vunpack.c.l.s4 1983009808
        %v1725 = vunpack.c.0.s8 %v1724
        %v1726 = vlaneseq
        %v1727 = vshrl.u32 %v1726, 7
        %v1728 = vsub.s32 %v1725, %v1727
        %v1729 = vrot.slane %v1715, %v1728
        %v1730 = vcombine.low %v1364, %v1396
        %v1731 = vcombine.high %v1364, %v1396
        %v1733 = vunpack.c.l.s4 1983009808
        %v1734 = vunpack.c.0.s8 %v1733
        %v1735 = vlaneseq
        %v1736 = vshrl.u32 %v1735, 7
        %v1737 = vsub.s32 %v1734, %v1736
        %v1738 = vrot.slane %v1730, %v1737
        %v1740 = vunpack.c.l.s4 1983009808
        %v1741 = vunpack.c.0.s8 %v1740
        %v1742 = vlaneseq
        %v1743 = vshrl.u32 %v1742, 7
        %v1744 = vsub.s32 %v1741, %v1743
        %v1745 = vrot.slane %v1731, %v1744
        %v1746 = vcombine.low %v1380, %v1412
        %v1747 = vcombine.high %v1380, %v1412
        %v1749 = vunpack.c.l.s4 1983009808
        %v1750 = vunpack.c.0.s8 %v1749
        %v1751 = vlaneseq
        %v1752 = vshrl.u32 %v1751, 7
        %v1753 = vsub.s32 %v1750, %v1752
        %v1754 = vrot.slane %v1746, %v1753
        %v1756 = vunpack.c.l.s4 1983009808
        %v1757 = vunpack.c.0.s8 %v1756
        %v1758 = vlaneseq
        %v1759 = vshrl.u32 %v1758, 7
        %v1760 = vsub.s32 %v1757, %v1759
        %v1761 = vrot.slane %v1747, %v1760
        %v1762 = vcombine.low %v1706, %v1722
        %v1763 = vcombine.high %v1706, %v1722
        %v1765 = vunpack.c.l.s4 1934713408
        %v1766 = vunpack.c.0.s8 %v1765
        %v1767 = vlaneseq
        %v1768 = vshrl.u32 %v1767, 7
        %v1769 = vsub.s32 %v1766, %v1768
        %v1770 = vrot.slane %v1762, %v1769
        %v1772 = vunpack.c.l.s4 1934713408
        %v1773 = vunpack.c.0.s8 %v1772
        %v1774 = vlaneseq
        %v1775 = vshrl.u32 %v1774, 7
        %v1776 = vsub.s32 %v1773, %v1775
        %v1777 = vrot.slane %v1763, %v1776
        %v1778 = vcombine.low %v1713, %v1729
        %v1779 = vcombine.high %v1713, %v1729
        %v1781 = vunpack.c.l.s4 1934713408
        %v1782 = vunpack.c.0.s8 %v1781
        %v1783 = vlaneseq
        %v1784 = vshrl.u32 %v1783, 7
        %v1785 = vsub.s32 %v1782, %v1784
        %v1786 = vrot.slane %v1778, %v1785
        %v1788 = vunpack.c.l.s4 1934713408
        %v1789 = vunpack.c.0.s8 %v1788
        %v1790 = vlaneseq
        %v1791 = vshrl.u32 %v1790, 7
        %v1792 = vsub.s32 %v1789, %v1791
        %v1793 = vrot.slane %v1779, %v1792
        %v1794 = vcombine.low %v1738, %v1754
        %v1795 = vcombine.high %v1738, %v1754
        %v1797 = vunpack.c.l.s4 1934713408
        %v1798 = vunpack.c.0.s8 %v1797
        %v1799 = vlaneseq
        %v1800 = vshrl.u32 %v1799, 7
        %v1801 = vsub.s32 %v1798, %v1800
        %v1802 = vrot.slane %v1794, %v1801
        %v1804 = vunpack.c.l.s4 1934713408
        %v1805 = vunpack.c.0.s8 %v1804
        %v1806 = vlaneseq
        %v1807 = vshrl.u32 %v1806, 7
        %v1808 = vsub.s32 %v1805, %v1807
        %v1809 = vrot.slane %v1795, %v1808
        %v1810 = vcombine.low %v1745, %v1761
        %v1811 = vcombine.high %v1745, %v1761
        %v1813 = vunpack.c.l.s4 1934713408
        %v1814 = vunpack.c.0.s8 %v1813
        %v1815 = vlaneseq
        %v1816 = vshrl.u32 %v1815, 7
        %v1817 = vsub.s32 %v1814, %v1816
        %v1818 = vrot.slane %v1810, %v1817
        %v1820 = vunpack.c.l.s4 1934713408
        %v1821 = vunpack.c.0.s8 %v1820
        %v1822 = vlaneseq
        %v1823 = vshrl.u32 %v1822, 7
        %v1824 = vsub.s32 %v1821, %v1823
        %v1825 = vrot.slane %v1811, %v1824
        %v1826 = vcombine.low %v1770, %v1802
        %v1827 = vcombine.high %v1770, %v1802
        %v1828 = vcombine.low %v1777, %v1809
        %v1829 = vcombine.high %v1777, %v1809
        %v1830 = vcombine.low %v1786, %v1818
        %v1831 = vcombine.high %v1786, %v1818
        %v1832 = vcombine.low %v1793, %v1825
        %v1833 = vcombine.high %v1793, %v1825
        %v1834 = vcombine.low %v1301, %v1333
        %v1835 = vcombine.high %v1301, %v1333
        %v1837 = vunpack.c.l.s4 1983009808
        %v1838 = vunpack.c.0.s8 %v1837
        %v1839 = vlaneseq
        %v1840 = vshrl.u32 %v1839, 7
        %v1841 = vsub.s32 %v1838, %v1840
        %v1842 = vrot.slane %v1834, %v1841
        %v1844 = vunpack.c.l.s4 1983009808
        %v1845 = vunpack.c.0.s8 %v1844
        %v1846 = vlaneseq
        %v1847 = vshrl.u32 %v1846, 7
        %v1848 = vsub.s32 %v1845, %v1847
        %v1849 = vrot.slane %v1835, %v1848
        %v1850 = vcombine.low %v1317, %v1349
        %v1851 = vcombine.high %v1317, %v1349
        %v1853 = vunpack.c.l.s4 1983009808
        %v1854 = vunpack.c.0.s8 %v1853
        %v1855 = vlaneseq
        %v1856 = vshrl.u32 %v1855, 7
        %v1857 = vsub.s32 %v1854, %v1856
        %v1858 = vrot.slane %v1850, %v1857
        %v1860 = vunpack.c.l.s4 1983009808
        %v1861 = vunpack.c.0.s8 %v1860
        %v1862 = vlaneseq
        %v1863 = vshrl.u32 %v1862, 7
        %v1864 = vsub.s32 %v1861, %v1863
        %v1865 = vrot.slane %v1851, %v1864
        %v1866 = vcombine.low %v1365, %v1397
        %v1867 = vcombine.high %v1365, %v1397
        %v1869 = vunpack.c.l.s4 1983009808
        %v1870 = vunpack.c.0.s8 %v1869
        %v1871 = vlaneseq
        %v1872 = vshrl.u32 %v1871, 7
        %v1873 = vsub.s32 %v1870, %v1872
        %v1874 = vrot.slane %v1866, %v1873
        %v1876 = vunpack.c.l.s4 1983009808
        %v1877 = vunpack.c.0.s8 %v1876
        %v1878 = vlaneseq
        %v1879 = vshrl.u32 %v1878, 7
        %v1880 = vsub.s32 %v1877, %v1879
        %v1881 = vrot.slane %v1867, %v1880
        %v1882 = vcombine.low %v1381, %v1413
        %v1883 = vcombine.high %v1381, %v1413
        %v1885 = vunpack.c.l.s4 1983009808
        %v1886 = vunpack.c.0.s8 %v1885
        %v1887 = vlaneseq
        %v1888 = vshrl.u32 %v1887, 7
        %v1889 = vsub.s32 %v1886, %v1888
        %v1890 = vrot.slane %v1882, %v1889
        %v1892 = vunpack.c.l.s4 1983009808
        %v1893 = vunpack.c.0.s8 %v1892
        %v1894 = vlaneseq
        %v1895 = vshrl.u32 %v1894, 7
        %v1896 = vsub.s32 %v1893, %v1895
        %v1897 = vrot.slane %v1883, %v1896
        %v1898 = vcombine.low %v1842, %v1858
        %v1899 = vcombine.high %v1842, %v1858
        %v1901 = vunpack.c.l.s4 1934713408
        %v1902 = vunpack.c.0.s8 %v1901
        %v1903 = vlaneseq
        %v1904 = vshrl.u32 %v1903, 7
        %v1905 = vsub.s32 %v1902, %v1904
        %v1906 = vrot.slane %v1898, %v1905
        %v1908 = vunpack.c.l.s4 1934713408
        %v1909 = vunpack.c.0.s8 %v1908
        %v1910 = vlaneseq
        %v1911 = vshrl.u32 %v1910, 7
        %v1912 = vsub.s32 %v1909, %v1911
        %v1913 = vrot.slane %v1899, %v1912
        %v1914 = vcombine.low %v1849, %v1865
        %v1915 = vcombine.high %v1849, %v1865
        %v1917 = vunpack.c.l.s4 1934713408
        %v1918 = vunpack.c.0.s8 %v1917
        %v1919 = vlaneseq
        %v1920 = vshrl.u32 %v1919, 7
        %v1921 = vsub.s32 %v1918, %v1920
        %v1922 = vrot.slane %v1914, %v1921
        %v1924 = vunpack.c.l.s4 1934713408
        %v1925 = vunpack.c.0.s8 %v1924
        %v1926 = vlaneseq
        %v1927 = vshrl.u32 %v1926, 7
        %v1928 = vsub.s32 %v1925, %v1927
        %v1929 = vrot.slane %v1915, %v1928
        %v1930 = vcombine.low %v1874, %v1890
        %v1931 = vcombine.high %v1874, %v1890
        %v1933 = vunpack.c.l.s4 1934713408
        %v1934 = vunpack.c.0.s8 %v1933
        %v1935 = vlaneseq
        %v1936 = vshrl.u32 %v1935, 7
        %v1937 = vsub.s32 %v1934, %v1936
        %v1938 = vrot.slane %v1930, %v1937
        %v1940 = vunpack.c.l.s4 1934713408
        %v1941 = vunpack.c.0.s8 %v1940
        %v1942 = vlaneseq
        %v1943 = vshrl.u32 %v1942, 7
        %v1944 = vsub.s32 %v1941, %v1943
        %v1945 = vrot.slane %v1931, %v1944
        %v1946 = vcombine.low %v1881, %v1897
        %v1947 = vcombine.high %v1881, %v1897
        %v1949 = vunpack.c.l.s4 1934713408
        %v1950 = vunpack.c.0.s8 %v1949
        %v1951 = vlaneseq
        %v1952 = vshrl.u32 %v1951, 7
        %v1953 = vsub.s32 %v1950, %v1952
        %v1954 = vrot.slane %v1946, %v1953
        %v1956 = vunpack.c.l.s4 1934713408
        %v1957 = vunpack.c.0.s8 %v1956
        %v1958 = vlaneseq
        %v1959 = vshrl.u32 %v1958, 7
        %v1960 = vsub.s32 %v1957, %v1959
        %v1961 = vrot.slane %v1947, %v1960
        %v1962 = vcombine.low %v1906, %v1938
        %v1963 = vcombine.high %v1906, %v1938
        %v1964 = vcombine.low %v1913, %v1945
        %v1965 = vcombine.high %v1913, %v1945
        %v1966 = vcombine.low %v1922, %v1954
        %v1967 = vcombine.high %v1922, %v1954
        %v1968 = vcombine.low %v1929, %v1961
        %v1969 = vcombine.high %v1929, %v1961
        %v1970 = vcombine.low %v1302, %v1334
        %v1971 = vcombine.high %v1302, %v1334
        %v1973 = vunpack.c.l.s4 1983009808
        %v1974 = vunpack.c.0.s8 %v1973
        %v1975 = vlaneseq
        %v1976 = vshrl.u32 %v1975, 7
        %v1977 = vsub.s32 %v1974, %v1976
        %v1978 = vrot.slane %v1970, %v1977
        %v1980 = vunpack.c.l.s4 1983009808
        %v1981 = vunpack.c.0.s8 %v1980
        %v1982 = vlaneseq
        %v1983 = vshrl.u32 %v1982, 7
        %v1984 = vsub.s32 %v1981, %v1983
        %v1985 = vrot.slane %v1971, %v1984
        %v1986 = vcombine.low %v1318, %v1350
        %v1987 = vcombine.high %v1318, %v1350
        %v1989 = vunpack.c.l.s4 1983009808
        %v1990 = vunpack.c.0.s8 %v1989
        %v1991 = vlaneseq
        %v1992 = vshrl.u32 %v1991, 7
        %v1993 = vsub.s32 %v1990, %v1992
        %v1994 = vrot.slane %v1986, %v1993
        %v1996 = vunpack.c.l.s4 1983009808
        %v1997 = vunpack.c.0.s8 %v1996
        %v1998 = vlaneseq
        %v1999 = vshrl.u32 %v1998, 7
        %v2000 = vsub.s32 %v1997, %v1999
        %v2001 = vrot.slane %v1987, %v2000
        %v2002 = vcombine.low %v1366, %v1398
        %v2003 = vcombine.high %v1366, %v1398
        %v2005 = vunpack.c.l.s4 1983009808
        %v2006 = vunpack.c.0.s8 %v2005
        %v2007 = vlaneseq
        %v2008 = vshrl.u32 %v2007, 7
        %v2009 = vsub.s32 %v2006, %v2008
        %v2010 = vrot.slane %v2002, %v2009
        %v2012 = vunpack.c.l.s4 1983009808
        %v2013 = vunpack.c.0.s8 %v2012
        %v2014 = vlaneseq
        %v2015 = vshrl.u32 %v2014, 7
        %v2016 = vsub.s32 %v2013, %v2015
        %v2017 = vrot.slane %v2003, %v2016
        %v2018 = vcombine.low %v1382, %v1414
        %v2019 = vcombine.high %v1382, %v1414
        %v2021 = vunpack.c.l.s4 1983009808
        %v2022 = vunpack.c.0.s8 %v2021
        %v2023 = vlaneseq
        %v2024 = vshrl.u32 %v2023, 7
        %v2025 = vsub.s32 %v2022, %v2024
        %v2026 = vrot.slane %v2018, %v2025
        %v2028 = vunpack.c.l.s4 1983009808
        %v2029 = vunpack.c.0.s8 %v2028
        %v2030 = vlaneseq
        %v2031 = vshrl.u32 %v2030, 7
        %v2032 = vsub.s32 %v2029, %v2031
        %v2033 = vrot.slane %v2019, %v2032
        %v2034 = vcombine.low %v1978, %v1994
        %v2035 = vcombine.high %v1978, %v1994
        %v2037 = vunpack.c.l.s4 1934713408
        %v2038 = vunpack.c.0.s8 %v2037
        %v2039 = vlaneseq
        %v2040 = vshrl.u32 %v2039, 7
        %v2041 = vsub.s32 %v2038, %v2040
        %v2042 = vrot.slane %v2034, %v2041
        %v2044 = vunpack.c.l.s4 1934713408
        %v2045 = vunpack.c.0.s8 %v2044
        %v2046 = vlaneseq
        %v2047 = vshrl.u32 %v2046, 7
        %v2048 = vsub.s32 %v2045, %v2047
        %v2049 = vrot.slane %v2035, %v2048
        %v2050 = vcombine.low %v1985, %v2001
        %v2051 = vcombine.high %v1985, %v2001
        %v2053 = vunpack.c.l.s4 1934713408
        %v2054 = vunpack.c.0.s8 %v2053
        %v2055 = vlaneseq
        %v2056 = vshrl.u32 %v2055, 7
        %v2057 = vsub.s32 %v2054, %v2056
        %v2058 = vrot.slane %v2050, %v2057
        %v2060 = vunpack.c.l.s4 1934713408
        %v2061 = vunpack.c.0.s8 %v2060
        %v2062 = vlaneseq
        %v2063 = vshrl.u32 %v2062, 7
        %v2064 = vsub.s32 %v2061, %v2063
        %v2065 = vrot.slane %v2051, %v2064
        %v2066 = vcombine.low %v2010, %v2026
        %v2067 = vcombine.high %v2010, %v2026
        %v2069 = vunpack.c.l.s4 1934713408
        %v2070 = vunpack.c.0.s8 %v2069
        %v2071 = vlaneseq
        %v2072 = vshrl.u32 %v2071, 7
        %v2073 = vsub.s32 %v2070, %v2072
        %v2074 = vrot.slane %v2066, %v2073
        %v2076 = vunpack.c.l.s4 1934713408
        %v2077 = vunpack.c.0.s8 %v2076
        %v2078 = vlaneseq
        %v2079 = vshrl.u32 %v2078, 7
        %v2080 = vsub.s32 %v2077, %v2079
        %v2081 = vrot.slane %v2067, %v2080
        %v2082 = vcombine.low %v2017, %v2033
        %v2083 = vcombine.high %v2017, %v2033
        %v2085 = vunpack.c.l.s4 1934713408
        %v2086 = vunpack.c.0.s8 %v2085
        %v2087 = vlaneseq
        %v2088 = vshrl.u32 %v2087, 7
        %v2089 = vsub.s32 %v2086, %v2088
        %v2090 = vrot.slane %v2082, %v2089
        %v2092 = vunpack.c.l.s4 1934713408
        %v2093 = vunpack.c.0.s8 %v2092
        %v2094 = vlaneseq
        %v2095 = vshrl.u32 %v2094, 7
        %v2096 = vsub.s32 %v2093, %v2095
        %v2097 = vrot.slane %v2083, %v2096
        %v2098 = vcombine.low %v2042, %v2074
        %v2099 = vcombine.high %v2042, %v2074
        %v2100 = vcombine.low %v2049, %v2081
        %v2101 = vcombine.high %v2049, %v2081
        %v2102 = vcombine.low %v2058, %v2090
        %v2103 = vcombine.high %v2058, %v2090
        %v2104 = vcombine.low %v2065, %v2097
        %v2105 = vcombine.high %v2065, %v2097
        %v2106 = vcombine.low %v1303, %v1335
        %v2107 = vcombine.high %v1303, %v1335
        %v2109 = vunpack.c.l.s4 1983009808
        %v2110 = vunpack.c.0.s8 %v2109
        %v2111 = vlaneseq
        %v2112 = vshrl.u32 %v2111, 7
        %v2113 = vsub.s32 %v2110, %v2112
        %v2114 = vrot.slane %v2106, %v2113
        %v2116 = vunpack.c.l.s4 1983009808
        %v2117 = vunpack.c.0.s8 %v2116
        %v2118 = vlaneseq
        %v2119 = vshrl.u32 %v2118, 7
        %v2120 = vsub.s32 %v2117, %v2119
        %v2121 = vrot.slane %v2107, %v2120
        %v2122 = vcombine.low %v1319, %v1351
        %v2123 = vcombine.high %v1319, %v1351
        %v2125 = vunpack.c.l.s4 1983009808
        %v2126 = vunpack.c.0.s8 %v2125
        %v2127 = vlaneseq
        %v2128 = vshrl.u32 %v2127, 7
        %v2129 = vsub.s32 %v2126, %v2128
        %v2130 = vrot.slane %v2122, %v2129
        %v2132 = vunpack.c.l.s4 1983009808
        %v2133 = vunpack.c.0.s8 %v2132
        %v2134 = vlaneseq
        %v2135 = vshrl.u32 %v2134, 7
        %v2136 = vsub.s32 %v2133, %v2135
        %v2137 = vrot.slane %v2123, %v2136
        %v2138 = vcombine.low %v1367, %v1399
        %v2139 = vcombine.high %v1367, %v1399
        %v2141 = vunpack.c.l.s4 1983009808
        %v2142 = vunpack.c.0.s8 %v2141
        %v2143 = vlaneseq
        %v2144 = vshrl.u32 %v2143, 7
        %v2145 = vsub.s32 %v2142, %v2144
        %v2146 = vrot.slane %v2138, %v2145
        %v2148 = vunpack.c.l.s4 1983009808
        %v2149 = vunpack.c.0.s8 %v2148
        %v2150 = vlaneseq
        %v2151 = vshrl.u32 %v2150, 7
        %v2152 = vsub.s32 %v2149, %v2151
        %v2153 = vrot.slane %v2139, %v2152
        %v2154 = vcombine.low %v1383, %v1415
        %v2155 = vcombine.high %v1383, %v1415
        %v2157 = vunpack.c.l.s4 1983009808
        %v2158 = vunpack.c.0.s8 %v2157
        %v2159 = vlaneseq
        %v2160 = vshrl.u32 %v2159, 7
        %v2161 = vsub.s32 %v2158, %v2160
        %v2162 = vrot.slane %v2154, %v2161
        %v2164 = vunpack.c.l.s4 1983009808
        %v2165 = vunpack.c.0.s8 %v2164
        %v2166 = vlaneseq
        %v2167 = vshrl.u32 %v2166, 7
        %v2168 = vsub.s32 %v2165, %v2167
        %v2169 = vrot.slane %v2155, %v2168
        %v2170 = vcombine.low %v2114, %v2130
        %v2171 = vcombine.high %v2114, %v2130
        %v2173 = vunpack.c.l.s4 1934713408
        %v2174 = vunpack.c.0.s8 %v2173
        %v2175 = vlaneseq
        %v2176 = vshrl.u32 %v2175, 7
        %v2177 = vsub.s32 %v2174, %v2176
        %v2178 = vrot.slane %v2170, %v2177
        %v2180 = vunpack.c.l.s4 1934713408
        %v2181 = vunpack.c.0.s8 %v2180
        %v2182 = vlaneseq
        %v2183 = vshrl.u32 %v2182, 7
        %v2184 = vsub.s32 %v2181, %v2183
        %v2185 = vrot.slane %v2171, %v2184
        %v2186 = vcombine.low %v2121, %v2137
        %v2187 = vcombine.high %v2121, %v2137
        %v2189 = vunpack.c.l.s4 1934713408
        %v2190 = vunpack.c.0.s8 %v2189
        %v2191 = vlaneseq
        %v2192 = vshrl.u32 %v2191, 7
        %v2193 = vsub.s32 %v2190, %v2192
        %v2194 = vrot.slane %v2186, %v2193
        %v2196 = vunpack.c.l.s4 1934713408
        %v2197 = vunpack.c.0.s8 %v2196
        %v2198 = vlaneseq
        %v2199 = vshrl.u32 %v2198, 7
        %v2200 = vsub.s32 %v2197, %v2199
        %v2201 = vrot.slane %v2187, %v2200
        %v2202 = vcombine.low %v2146, %v2162
        %v2203 = vcombine.high %v2146, %v2162
        %v2205 = vunpack.c.l.s4 1934713408
        %v2206 = vunpack.c.0.s8 %v2205
        %v2207 = vlaneseq
        %v2208 = vshrl.u32 %v2207, 7
        %v2209 = vsub.s32 %v2206, %v2208
        %v2210 = vrot.slane %v2202, %v2209
        %v2212 = vunpack.c.l.s4 1934713408
        %v2213 = vunpack.c.0.s8 %v2212
        %v2214 = vlaneseq
        %v2215 = vshrl.u32 %v2214, 7
        %v2216 = vsub.s32 %v2213, %v2215
        %v2217 = vrot.slane %v2203, %v2216
        %v2218 = vcombine.low %v2153, %v2169
        %v2219 = vcombine.high %v2153, %v2169
        %v2221 = vunpack.c.l.s4 1934713408
        %v2222 = vunpack.c.0.s8 %v2221
        %v2223 = vlaneseq
        %v2224 = vshrl.u32 %v2223, 7
        %v2225 = vsub.s32 %v2222, %v2224
        %v2226 = vrot.slane %v2218, %v2225
        %v2228 = vunpack.c.l.s4 1934713408
        %v2229 = vunpack.c.0.s8 %v2228
        %v2230 = vlaneseq
        %v2231 = vshrl.u32 %v2230, 7
        %v2232 = vsub.s32 %v2229, %v2231
        %v2233 = vrot.slane %v2219, %v2232
        %v2234 = vcombine.low %v2178, %v2210
        %v2235 = vcombine.high %v2178, %v2210
        %v2236 = vcombine.low %v2185, %v2217
        %v2237 = vcombine.high %v2185, %v2217
        %v2238 = vcombine.low %v2194, %v2226
        %v2239 = vcombine.high %v2194, %v2226
        %v2240 = vcombine.low %v2201, %v2233
        %v2241 = vcombine.high %v2201, %v2233
        %v2242 = vcombine.low %v1304, %v1336
        %v2243 = vcombine.high %v1304, %v1336
        %v2245 = vunpack.c.l.s4 1983009808
        %v2246 = vunpack.c.0.s8 %v2245
        %v2247 = vlaneseq
        %v2248 = vshrl.u32 %v2247, 7
        %v2249 = vsub.s32 %v2246, %v2248
        %v2250 = vrot.slane %v2242, %v2249
        %v2252 = vunpack.c.l.s4 1983009808
        %v2253 = vunpack.c.0.s8 %v2252
        %v2254 = vlaneseq
        %v2255 = vshrl.u32 %v2254, 7
        %v2256 = vsub.s32 %v2253, %v2255
        %v2257 = vrot.slane %v2243, %v2256
        %v2258 = vcombine.low %v1320, %v1352
        %v2259 = vcombine.high %v1320, %v1352
        %v2261 = vunpack.c.l.s4 1983009808
        %v2262 = vunpack.c.0.s8 %v2261
        %v2263 = vlaneseq
        %v2264 = vshrl.u32 %v2263, 7
        %v2265 = vsub.s32 %v2262, %v2264
        %v2266 = vrot.slane %v2258, %v2265
        %v2268 = vunpack.c.l.s4 1983009808
        %v2269 = vunpack.c.0.s8 %v2268
        %v2270 = vlaneseq
        %v2271 = vshrl.u32 %v2270, 7
        %v2272 = vsub.s32 %v2269, %v2271
        %v2273 = vrot.slane %v2259, %v2272
        %v2274 = vcombine.low %v1368, %v1400
        %v2275 = vcombine.high %v1368, %v1400
        %v2277 = vunpack.c.l.s4 1983009808
        %v2278 = vunpack.c.0.s8 %v2277
        %v2279 = vlaneseq
        %v2280 = vshrl.u32 %v2279, 7
        %v2281 = vsub.s32 %v2278, %v2280
        %v2282 = vrot.slane %v2274, %v2281
        %v2284 = vunpack.c.l.s4 1983009808
        %v2285 = vunpack.c.0.s8 %v2284
        %v2286 = vlaneseq
        %v2287 = vshrl.u32 %v2286, 7
        %v2288 = vsub.s32 %v2285, %v2287
        %v2289 = vrot.slane %v2275, %v2288
        %v2290 = vcombine.low %v1384, %v1416
        %v2291 = vcombine.high %v1384, %v1416
        %v2293 = vunpack.c.l.s4 1983009808
        %v2294 = vunpack.c.0.s8 %v2293
        %v2295 = vlaneseq
        %v2296 = vshrl.u32 %v2295, 7
        %v2297 = vsub.s32 %v2294, %v2296
        %v2298 = vrot.slane %v2290, %v2297
        %v2300 = vunpack.c.l.s4 1983009808
        %v2301 = vunpack.c.0.s8 %v2300
        %v2302 = vlaneseq
        %v2303 = vshrl.u32 %v2302, 7
        %v2304 = vsub.s32 %v2301, %v2303
        %v2305 = vrot.slane %v2291, %v2304
        %v2306 = vcombine.low %v2250, %v2266
        %v2307 = vcombine.high %v2250, %v2266
        %v2309 = vunpack.c.l.s4 1934713408
        %v2310 = vunpack.c.0.s8 %v2309
        %v2311 = vlaneseq
        %v2312 = vshrl.u32 %v2311, 7
        %v2313 = vsub.s32 %v2310, %v2312
        %v2314 = vrot.slane %v2306, %v2313
        %v2316 = vunpack.c.l.s4 1934713408
        %v2317 = vunpack.c.0.s8 %v2316
        %v2318 = vlaneseq
        %v2319 = vshrl.u32 %v2318, 7
        %v2320 = vsub.s32 %v2317, %v2319
        %v2321 = vrot.slane %v2307, %v2320
        %v2322 = vcombine.low %v2257, %v2273
        %v2323 = vcombine.high %v2257, %v2273
        %v2325 = vunpack.c.l.s4 1934713408
        %v2326 = vunpack.c.0.s8 %v2325
        %v2327 = vlaneseq
        %v2328 = vshrl.u32 %v2327, 7
        %v2329 = vsub.s32 %v2326, %v2328
        %v2330 = vrot.slane %v2322, %v2329
        %v2332 = vunpack.c.l.s4 1934713408
        %v2333 = vunpack.c.0.s8 %v2332
        %v2334 = vlaneseq
        %v2335 = vshrl.u32 %v2334, 7
        %v2336 = vsub.s32 %v2333, %v2335
        %v2337 = vrot.slane %v2323, %v2336
        %v2338 = vcombine.low %v2282, %v2298
        %v2339 = vcombine.high %v2282, %v2298
        %v2341 = vunpack.c.l.s4 1934713408
        %v2342 = vunpack.c.0.s8 %v2341
        %v2343 = vlaneseq
        %v2344 = vshrl.u32 %v2343, 7
        %v2345 = vsub.s32 %v2342, %v2344
        %v2346 = vrot.slane %v2338, %v2345
        %v2348 = vunpack.c.l.s4 1934713408
        %v2349 = vunpack.c.0.s8 %v2348
        %v2350 = vlaneseq
        %v2351 = vshrl.u32 %v2350, 7
        %v2352 = vsub.s32 %v2349, %v2351
        %v2353 = vrot.slane %v2339, %v2352
        %v2354 = vcombine.low %v2289, %v2305
        %v2355 = vcombine.high %v2289, %v2305
        %v2357 = vunpack.c.l.s4 1934713408
        %v2358 = vunpack.c.0.s8 %v2357
        %v2359 = vlaneseq
        %v2360 = vshrl.u32 %v2359, 7
        %v2361 = vsub.s32 %v2358, %v2360
        %v2362 = vrot.slane %v2354, %v2361
        %v2364 = vunpack.c.l.s4 1934713408
        %v2365 = vunpack.c.0.s8 %v2364
        %v2366 = vlaneseq
        %v2367 = vshrl.u32 %v2366, 7
        %v2368 = vsub.s32 %v2365, %v2367
        %v2369 = vrot.slane %v2355, %v2368
        %v2370 = vcombine.low %v2314, %v2346
        %v2371 = vcombine.high %v2314, %v2346
        %v2372 = vcombine.low %v2321, %v2353
        %v2373 = vcombine.high %v2321, %v2353
        %v2374 = vcombine.low %v2330, %v2362
        %v2375 = vcombine.high %v2330, %v2362
        %v2376 = vcombine.low %v2337, %v2369
        %v2377 = vcombine.high %v2337, %v2369
        %v2378 = vcombine.low %v1305, %v1337
        %v2379 = vcombine.high %v1305, %v1337
        %v2381 = vunpack.c.l.s4 1983009808
        %v2382 = vunpack.c.0.s8 %v2381
        %v2383 = vlaneseq
        %v2384 = vshrl.u32 %v2383, 7
        %v2385 = vsub.s32 %v2382, %v2384
        %v2386 = vrot.slane %v2378, %v2385
        %v2388 = vunpack.c.l.s4 1983009808
        %v2389 = vunpack.c.0.s8 %v2388
        %v2390 = vlaneseq
        %v2391 = vshrl.u32 %v2390, 7
        %v2392 = vsub.s32 %v2389, %v2391
        %v2393 = vrot.slane %v2379, %v2392
        %v2394 = vcombine.low %v1321, %v1353
        %v2395 = vcombine.high %v1321, %v1353
        %v2397 = vunpack.c.l.s4 1983009808
        %v2398 = vunpack.c.0.s8 %v2397
        %v2399 = vlaneseq
        %v2400 = vshrl.u32 %v2399, 7
        %v2401 = vsub.s32 %v2398, %v2400
        %v2402 = vrot.slane %v2394, %v2401
        %v2404 = vunpack.c.l.s4 1983009808
        %v2405 = vunpack.c.0.s8 %v2404
        %v2406 = vlaneseq
        %v2407 = vshrl.u32 %v2406, 7
        %v2408 = vsub.s32 %v2405, %v2407
        %v2409 = vrot.slane %v2395, %v2408
        %v2410 = vcombine.low %v1369, %v1401
        %v2411 = vcombine.high %v1369, %v1401
        %v2413 = vunpack.c.l.s4 1983009808
        %v2414 = vunpack.c.0.s8 %v2413
        %v2415 = vlaneseq
        %v2416 = vshrl.u32 %v2415, 7
        %v2417 = vsub.s32 %v2414, %v2416
        %v2418 = vrot.slane %v2410, %v2417
        %v2420 = vunpack.c.l.s4 1983009808
        %v2421 = vunpack.c.0.s8 %v2420
        %v2422 = vlaneseq
        %v2423 = vshrl.u32 %v2422, 7
        %v2424 = vsub.s32 %v2421, %v2423
        %v2425 = vrot.slane %v2411, %v2424
        %v2426 = vcombine.low %v1385, %v1417
        %v2427 = vcombine.high %v1385, %v1417
        %v2429 = vunpack.c.l.s4 1983009808
        %v2430 = vunpack.c.0.s8 %v2429
        %v2431 = vlaneseq
        %v2432 = vshrl.u32 %v2431, 7
        %v2433 = vsub.s32 %v2430, %v2432
        %v2434 = vrot.slane %v2426, %v2433
        %v2436 = vunpack.c.l.s4 1983009808
        %v2437 = vunpack.c.0.s8 %v2436
        %v2438 = vlaneseq
        %v2439 = vshrl.u32 %v2438, 7
        %v2440 = vsub.s32 %v2437, %v2439
        %v2441 = vrot.slane %v2427, %v2440
        %v2442 = vcombine.low %v2386, %v2402
        %v2443 = vcombine.high %v2386, %v2402
        %v2445 = vunpack.c.l.s4 1934713408
        %v2446 = vunpack.c.0.s8 %v2445
        %v2447 = vlaneseq
        %v2448 = vshrl.u32 %v2447, 7
        %v2449 = vsub.s32 %v2446, %v2448
        %v2450 = vrot.slane %v2442, %v2449
        %v2452 = vunpack.c.l.s4 1934713408
        %v2453 = vunpack.c.0.s8 %v2452
        %v2454 = vlaneseq
        %v2455 = vshrl.u32 %v2454, 7
        %v2456 = vsub.s32 %v2453, %v2455
        %v2457 = vrot.slane %v2443, %v2456
        %v2458 = vcombine.low %v2393, %v2409
        %v2459 = vcombine.high %v2393, %v2409
        %v2461 = vunpack.c.l.s4 1934713408
        %v2462 = vunpack.c.0.s8 %v2461
        %v2463 = vlaneseq
        %v2464 = vshrl.u32 %v2463, 7
        %v2465 = vsub.s32 %v2462, %v2464
        %v2466 = vrot.slane %v2458, %v2465
        %v2468 = vunpack.c.l.s4 1934713408
        %v2469 = vunpack.c.0.s8 %v2468
        %v2470 = vlaneseq
        %v2471 = vshrl.u32 %v2470, 7
        %v2472 = vsub.s32 %v2469, %v2471
        %v2473 = vrot.slane %v2459, %v2472
        %v2474 = vcombine.low %v2418, %v2434
        %v2475 = vcombine.high %v2418, %v2434
        %v2477 = vunpack.c.l.s4 1934713408
        %v2478 = vunpack.c.0.s8 %v2477
        %v2479 = vlaneseq
        %v2480 = vshrl.u32 %v2479, 7
        %v2481 = vsub.s32 %v2478, %v2480
        %v2482 = vrot.slane %v2474, %v2481
        %v2484 = vunpack.c.l.s4 1934713408
        %v2485 = vunpack.c.0.s8 %v2484
        %v2486 = vlaneseq
        %v2487 = vshrl.u32 %v2486, 7
        %v2488 = vsub.s32 %v2485, %v2487
        %v2489 = vrot.slane %v2475, %v2488
        %v2490 = vcombine.low %v2425, %v2441
        %v2491 = vcombine.high %v2425, %v2441
        %v2493 = vunpack.c.l.s4 1934713408
        %v2494 = vunpack.c.0.s8 %v2493
        %v2495 = vlaneseq
        %v2496 = vshrl.u32 %v2495, 7
        %v2497 = vsub.s32 %v2494, %v2496
        %v2498 = vrot.slane %v2490, %v2497
        %v2500 = vunpack.c.l.s4 1934713408
        %v2501 = vunpack.c.0.s8 %v2500
        %v2502 = vlaneseq
        %v2503 = vshrl.u32 %v2502, 7
        %v2504 = vsub.s32 %v2501, %v2503
        %v2505 = vrot.slane %v2491, %v2504
        %v2506 = vcombine.low %v2450, %v2482
        %v2507 = vcombine.high %v2450, %v2482
        %v2508 = vcombine.low %v2457, %v2489
        %v2509 = vcombine.high %v2457, %v2489
        %v2510 = vcombine.low %v2466, %v2498
        %v2511 = vcombine.high %v2466, %v2498
        %v2512 = vcombine.low %v2473, %v2505
        %v2513 = vcombine.high %v2473, %v2505
        %v2514 = vcombine.low %v1306, %v1338
        %v2515 = vcombine.high %v1306, %v1338
        %v2517 = vunpack.c.l.s4 1983009808
        %v2518 = vunpack.c.0.s8 %v2517
        %v2519 = vlaneseq
        %v2520 = vshrl.u32 %v2519, 7
        %v2521 = vsub.s32 %v2518, %v2520
        %v2522 = vrot.slane %v2514, %v2521
        %v2524 = vunpack.c.l.s4 1983009808
        %v2525 = vunpack.c.0.s8 %v2524
        %v2526 = vlaneseq
        %v2527 = vshrl.u32 %v2526, 7
        %v2528 = vsub.s32 %v2525, %v2527
        %v2529 = vrot.slane %v2515, %v2528
        %v2530 = vcombine.low %v1322, %v1354
        %v2531 = vcombine.high %v1322, %v1354
        %v2533 = vunpack.c.l.s4 1983009808
        %v2534 = vunpack.c.0.s8 %v2533
        %v2535 = vlaneseq
        %v2536 = vshrl.u32 %v2535, 7
        %v2537 = vsub.s32 %v2534, %v2536
        %v2538 = vrot.slane %v2530, %v2537
        %v2540 = vunpack.c.l.s4 1983009808
        %v2541 = vunpack.c.0.s8 %v2540
        %v2542 = vlaneseq
        %v2543 = vshrl.u32 %v2542, 7
        %v2544 = vsub.s32 %v2541, %v2543
        %v2545 = vrot.slane %v2531, %v2544
        %v2546 = vcombine.low %v1370, %v1402
        %v2547 = vcombine.high %v1370, %v1402
        %v2549 = vunpack.c.l.s4 1983009808
        %v2550 = vunpack.c.0.s8 %v2549
        %v2551 = vlaneseq
        %v2552 = vshrl.u32 %v2551, 7
        %v2553 = vsub.s32 %v2550, %v2552
        %v2554 = vrot.slane %v2546, %v2553
        %v2556 = vunpack.c.l.s4 1983009808
        %v2557 = vunpack.c.0.s8 %v2556
        %v2558 = vlaneseq
        %v2559 = vshrl.u32 %v2558, 7
        %v2560 = vsub.s32 %v2557, %v2559
        %v2561 = vrot.slane %v2547, %v2560
        %v2562 = vcombine.low %v1386, %v1418
        %v2563 = vcombine.high %v1386, %v1418
        %v2565 = vunpack.c.l.s4 1983009808
        %v2566 = vunpack.c.0.s8 %v2565
        %v2567 = vlaneseq
        %v2568 = vshrl.u32 %v2567, 7
        %v2569 = vsub.s32 %v2566, %v2568
        %v2570 = vrot.slane %v2562, %v2569
        %v2572 = vunpack.c.l.s4 1983009808
        %v2573 = vunpack.c.0.s8 %v2572
        %v2574 = vlaneseq
        %v2575 = vshrl.u32 %v2574, 7
        %v2576 = vsub.s32 %v2573, %v2575
        %v2577 = vrot.slane %v2563, %v2576
        %v2578 = vcombine.low %v2522, %v2538
        %v2579 = vcombine.high %v2522, %v2538
        %v2581 = vunpack.c.l.s4 1934713408
        %v2582 = vunpack.c.0.s8 %v2581
        %v2583 = vlaneseq
        %v2584 = vshrl.u32 %v2583, 7
        %v2585 = vsub.s32 %v2582, %v2584
        %v2586 = vrot.slane %v2578, %v2585
        %v2588 = vunpack.c.l.s4 1934713408
        %v2589 = vunpack.c.0.s8 %v2588
        %v2590 = vlaneseq
        %v2591 = vshrl.u32 %v2590, 7
        %v2592 = vsub.s32 %v2589, %v2591
        %v2593 = vrot.slane %v2579, %v2592
        %v2594 = vcombine.low %v2529, %v2545
        %v2595 = vcombine.high %v2529, %v2545
        %v2597 = vunpack.c.l.s4 1934713408
        %v2598 = vunpack.c.0.s8 %v2597
        %v2599 = vlaneseq
        %v2600 = vshrl.u32 %v2599, 7
        %v2601 = vsub.s32 %v2598, %v2600
        %v2602 = vrot.slane %v2594, %v2601
        %v2604 = vunpack.c.l.s4 1934713408
        %v2605 = vunpack.c.0.s8 %v2604
        %v2606 = vlaneseq
        %v2607 = vshrl.u32 %v2606, 7
        %v2608 = vsub.s32 %v2605, %v2607
        %v2609 = vrot.slane %v2595, %v2608
        %v2610 = vcombine.low %v2554, %v2570
        %v2611 = vcombine.high %v2554, %v2570
        %v2613 = vunpack.c.l.s4 1934713408
        %v2614 = vunpack.c.0.s8 %v2613
        %v2615 = vlaneseq
        %v2616 = vshrl.u32 %v2615, 7
        %v2617 = vsub.s32 %v2614, %v2616
        %v2618 = vrot.slane %v2610, %v2617
        %v2620 = vunpack.c.l.s4 1934713408
        %v2621 = vunpack.c.0.s8 %v2620
        %v2622 = vlaneseq
        %v2623 = vshrl.u32 %v2622, 7
        %v2624 = vsub.s32 %v2621, %v2623
        %v2625 = vrot.slane %v2611, %v2624
        %v2626 = vcombine.low %v2561, %v2577
        %v2627 = vcombine.high %v2561, %v2577
        %v2629 = vunpack.c.l.s4 1934713408
        %v2630 = vunpack.c.0.s8 %v2629
        %v2631 = vlaneseq
        %v2632 = vshrl.u32 %v2631, 7
        %v2633 = vsub.s32 %v2630, %v2632
        %v2634 = vrot.slane %v2626, %v2633
        %v2636 = vunpack.c.l.s4 1934713408
        %v2637 = vunpack.c.0.s8 %v2636
        %v2638 = vlaneseq
        %v2639 = vshrl.u32 %v2638, 7
        %v2640 = vsub.s32 %v2637, %v2639
        %v2641 = vrot.slane %v2627, %v2640
        %v2642 = vcombine.low %v2586, %v2618
        %v2643 = vcombine.high %v2586, %v2618
        %v2644 = vcombine.low %v2593, %v2625
        %v2645 = vcombine.high %v2593, %v2625
        %v2646 = vcombine.low %v2602, %v2634
        %v2647 = vcombine.high %v2602, %v2634
        %v2648 = vcombine.low %v2609, %v2641
        %v2649 = vcombine.high %v2609, %v2641
        %v2650 = vcombine.low %v1307, %v1339
        %v2651 = vcombine.high %v1307, %v1339
        %v2653 = vunpack.c.l.s4 1983009808
        %v2654 = vunpack.c.0.s8 %v2653
        %v2655 = vlaneseq
        %v2656 = vshrl.u32 %v2655, 7
        %v2657 = vsub.s32 %v2654, %v2656
        %v2658 = vrot.slane %v2650, %v2657
        %v2660 = vunpack.c.l.s4 1983009808
        %v2661 = vunpack.c.0.s8 %v2660
        %v2662 = vlaneseq
        %v2663 = vshrl.u32 %v2662, 7
        %v2664 = vsub.s32 %v2661, %v2663
        %v2665 = vrot.slane %v2651, %v2664
        %v2666 = vcombine.low %v1323, %v1355
        %v2667 = vcombine.high %v1323, %v1355
        %v2669 = vunpack.c.l.s4 1983009808
        %v2670 = vunpack.c.0.s8 %v2669
        %v2671 = vlaneseq
        %v2672 = vshrl.u32 %v2671, 7
        %v2673 = vsub.s32 %v2670, %v2672
        %v2674 = vrot.slane %v2666, %v2673
        %v2676 = vunpack.c.l.s4 1983009808
        %v2677 = vunpack.c.0.s8 %v2676
        %v2678 = vlaneseq
        %v2679 = vshrl.u32 %v2678, 7
        %v2680 = vsub.s32 %v2677, %v2679
        %v2681 = vrot.slane %v2667, %v2680
        %v2682 = vcombine.low %v1371, %v1403
        %v2683 = vcombine.high %v1371, %v1403
        %v2685 = vunpack.c.l.s4 1983009808
        %v2686 = vunpack.c.0.s8 %v2685
        %v2687 = vlaneseq
        %v2688 = vshrl.u32 %v2687, 7
        %v2689 = vsub.s32 %v2686, %v2688
        %v2690 = vrot.slane %v2682, %v2689
        %v2692 = vunpack.c.l.s4 1983009808
        %v2693 = vunpack.c.0.s8 %v2692
        %v2694 = vlaneseq
        %v2695 = vshrl.u32 %v2694, 7
        %v2696 = vsub.s32 %v2693, %v2695
        %v2697 = vrot.slane %v2683, %v2696
        %v2698 = vcombine.low %v1387, %v1419
        %v2699 = vcombine.high %v1387, %v1419
        %v2701 = vunpack.c.l.s4 1983009808
        %v2702 = vunpack.c.0.s8 %v2701
        %v2703 = vlaneseq
        %v2704 = vshrl.u32 %v2703, 7
        %v2705 = vsub.s32 %v2702, %v2704
        %v2706 = vrot.slane %v2698, %v2705
        %v2708 = vunpack.c.l.s4 1983009808
        %v2709 = vunpack.c.0.s8 %v2708
        %v2710 = vlaneseq
        %v2711 = vshrl.u32 %v2710, 7
        %v2712 = vsub.s32 %v2709, %v2711
        %v2713 = vrot.slane %v2699, %v2712
        %v2714 = vcombine.low %v2658, %v2674
        %v2715 = vcombine.high %v2658, %v2674
        %v2717 = vunpack.c.l.s4 1934713408
        %v2718 = vunpack.c.0.s8 %v2717
        %v2719 = vlaneseq
        %v2720 = vshrl.u32 %v2719, 7
        %v2721 = vsub.s32 %v2718, %v2720
        %v2722 = vrot.slane %v2714, %v2721
        %v2724 = vunpack.c.l.s4 1934713408
        %v2725 = vunpack.c.0.s8 %v2724
        %v2726 = vlaneseq
        %v2727 = vshrl.u32 %v2726, 7
        %v2728 = vsub.s32 %v2725, %v2727
        %v2729 = vrot.slane %v2715, %v2728
        %v2730 = vcombine.low %v2665, %v2681
        %v2731 = vcombine.high %v2665, %v2681
        %v2733 = vunpack.c.l.s4 1934713408
        %v2734 = vunpack.c.0.s8 %v2733
        %v2735 = vlaneseq
        %v2736 = vshrl.u32 %v2735, 7
        %v2737 = vsub.s32 %v2734, %v2736
        %v2738 = vrot.slane %v2730, %v2737
        %v2740 = vunpack.c.l.s4 1934713408
        %v2741 = vunpack.c.0.s8 %v2740
        %v2742 = vlaneseq
        %v2743 = vshrl.u32 %v2742, 7
        %v2744 = vsub.s32 %v2741, %v2743
        %v2745 = vrot.slane %v2731, %v2744
        %v2746 = vcombine.low %v2690, %v2706
        %v2747 = vcombine.high %v2690, %v2706
        %v2749 = vunpack.c.l.s4 1934713408
        %v2750 = vunpack.c.0.s8 %v2749
        %v2751 = vlaneseq
        %v2752 = vshrl.u32 %v2751, 7
        %v2753 = vsub.s32 %v2750, %v2752
        %v2754 = vrot.slane %v2746, %v2753
        %v2756 = vunpack.c.l.s4 1934713408
        %v2757 = vunpack.c.0.s8 %v2756
        %v2758 = vlaneseq
        %v2759 = vshrl.u32 %v2758, 7
        %v2760 = vsub.s32 %v2757, %v2759
        %v2761 = vrot.slane %v2747, %v2760
        %v2762 = vcombine.low %v2697, %v2713
        %v2763 = vcombine.high %v2697, %v2713
        %v2765 = vunpack.c.l.s4 1934713408
        %v2766 = vunpack.c.0.s8 %v2765
        %v2767 = vlaneseq
        %v2768 = vshrl.u32 %v2767, 7
        %v2769 = vsub.s32 %v2766, %v2768
        %v2770 = vrot.slane %v2762, %v2769
        %v2772 = vunpack.c.l.s4 1934713408
        %v2773 = vunpack.c.0.s8 %v2772
        %v2774 = vlaneseq
        %v2775 = vshrl.u32 %v2774, 7
        %v2776 = vsub.s32 %v2773, %v2775
        %v2777 = vrot.slane %v2763, %v2776
        %v2778 = vcombine.low %v2722, %v2754
        %v2779 = vcombine.high %v2722, %v2754
        %v2780 = vcombine.low %v2729, %v2761
        %v2781 = vcombine.high %v2729, %v2761
        %v2782 = vcombine.low %v2738, %v2770
        %v2783 = vcombine.high %v2738, %v2770
        %v2784 = vcombine.low %v2745, %v2777
        %v2785 = vcombine.high %v2745, %v2777
        %v2786 = vcombine.low %v1308, %v1340
        %v2787 = vcombine.high %v1308, %v1340
        %v2789 = vunpack.c.l.s4 1983009808
        %v2790 = vunpack.c.0.s8 %v2789
        %v2791 = vlaneseq
        %v2792 = vshrl.u32 %v2791, 7
        %v2793 = vsub.s32 %v2790, %v2792
        %v2794 = vrot.slane %v2786, %v2793
        %v2796 = vunpack.c.l.s4 1983009808
        %v2797 = vunpack.c.0.s8 %v2796
        %v2798 = vlaneseq
        %v2799 = vshrl.u32 %v2798, 7
        %v2800 = vsub.s32 %v2797, %v2799
        %v2801 = vrot.slane %v2787, %v2800
        %v2802 = vcombine.low %v1324, %v1356
        %v2803 = vcombine.high %v1324, %v1356
        %v2805 = vunpack.c.l.s4 1983009808
        %v2806 = vunpack.c.0.s8 %v2805
        %v2807 = vlaneseq
        %v2808 = vshrl.u32 %v2807, 7
        %v2809 = vsub.s32 %v2806, %v2808
        %v2810 = vrot.slane %v2802, %v2809
        %v2812 = vunpack.c.l.s4 1983009808
        %v2813 = vunpack.c.0.s8 %v2812
        %v2814 = vlaneseq
        %v2815 = vshrl.u32 %v2814, 7
        %v2816 = vsub.s32 %v2813, %v2815
        %v2817 = vrot.slane %v2803, %v2816
        %v2818 = vcombine.low %v1372, %v1404
        %v2819 = vcombine.high %v1372, %v1404
        %v2821 = vunpack.c.l.s4 1983009808
        %v2822 = vunpack.c.0.s8 %v2821
        %v2823 = vlaneseq
        %v2824 = vshrl.u32 %v2823, 7
        %v2825 = vsub.s32 %v2822, %v2824
        %v2826 = vrot.slane %v2818, %v2825
        %v2828 = vunpack.c.l.s4 1983009808
        %v2829 = vunpack.c.0.s8 %v2828
        %v2830 = vlaneseq
        %v2831 = vshrl.u32 %v2830, 7
        %v2832 = vsub.s32 %v2829, %v2831
        %v2833 = vrot.slane %v2819, %v2832
        %v2834 = vcombine.low %v1388, %v1420
        %v2835 = vcombine.high %v1388, %v1420
        %v2837 = vunpack.c.l.s4 1983009808
        %v2838 = vunpack.c.0.s8 %v2837
        %v2839 = vlaneseq
        %v2840 = vshrl.u32 %v2839, 7
        %v2841 = vsub.s32 %v2838, %v2840
        %v2842 = vrot.slane %v2834, %v2841
        %v2844 = vunpack.c.l.s4 1983009808
        %v2845 = vunpack.c.0.s8 %v2844
        %v2846 = vlaneseq
        %v2847 = vshrl.u32 %v2846, 7
        %v2848 = vsub.s32 %v2845, %v2847
        %v2849 = vrot.slane %v2835, %v2848
        %v2850 = vcombine.low %v2794, %v2810
        %v2851 = vcombine.high %v2794, %v2810
        %v2853 = vunpack.c.l.s4 1934713408
        %v2854 = vunpack.c.0.s8 %v2853
        %v2855 = vlaneseq
        %v2856 = vshrl.u32 %v2855, 7
        %v2857 = vsub.s32 %v2854, %v2856
        %v2858 = vrot.slane %v2850, %v2857
        %v2860 = vunpack.c.l.s4 1934713408
        %v2861 = vunpack.c.0.s8 %v2860
        %v2862 = vlaneseq
        %v2863 = vshrl.u32 %v2862, 7
        %v2864 = vsub.s32 %v2861, %v2863
        %v2865 = vrot.slane %v2851, %v2864
        %v2866 = vcombine.low %v2801, %v2817
        %v2867 = vcombine.high %v2801, %v2817
        %v2869 = vunpack.c.l.s4 1934713408
        %v2870 = vunpack.c.0.s8 %v2869
        %v2871 = vlaneseq
        %v2872 = vshrl.u32 %v2871, 7
        %v2873 = vsub.s32 %v2870, %v2872
        %v2874 = vrot.slane %v2866, %v2873
        %v2876 = vunpack.c.l.s4 1934713408
        %v2877 = vunpack.c.0.s8 %v2876
        %v2878 = vlaneseq
        %v2879 = vshrl.u32 %v2878, 7
        %v2880 = vsub.s32 %v2877, %v2879
        %v2881 = vrot.slane %v2867, %v2880
        %v2882 = vcombine.low %v2826, %v2842
        %v2883 = vcombine.high %v2826, %v2842
        %v2885 = vunpack.c.l.s4 1934713408
        %v2886 = vunpack.c.0.s8 %v2885
        %v2887 = vlaneseq
        %v2888 = vshrl.u32 %v2887, 7
        %v2889 = vsub.s32 %v2886, %v2888
        %v2890 = vrot.slane %v2882, %v2889
        %v2892 = vunpack.c.l.s4 1934713408
        %v2893 = vunpack.c.0.s8 %v2892
        %v2894 = vlaneseq
        %v2895 = vshrl.u32 %v2894, 7
        %v2896 = vsub.s32 %v2893, %v2895
        %v2897 = vrot.slane %v2883, %v2896
        %v2898 = vcombine.low %v2833, %v2849
        %v2899 = vcombine.high %v2833, %v2849
        %v2901 = vunpack.c.l.s4 1934713408
        %v2902 = vunpack.c.0.s8 %v2901
        %v2903 = vlaneseq
        %v2904 = vshrl.u32 %v2903, 7
        %v2905 = vsub.s32 %v2902, %v2904
        %v2906 = vrot.slane %v2898, %v2905
        %v2908 = vunpack.c.l.s4 1934713408
        %v2909 = vunpack.c.0.s8 %v2908
        %v2910 = vlaneseq
        %v2911 = vshrl.u32 %v2910, 7
        %v2912 = vsub.s32 %v2909, %v2911
        %v2913 = vrot.slane %v2899, %v2912
        %v2914 = vcombine.low %v2858, %v2890
        %v2915 = vcombine.high %v2858, %v2890
        %v2916 = vcombine.low %v2865, %v2897
        %v2917 = vcombine.high %v2865, %v2897
        %v2918 = vcombine.low %v2874, %v2906
        %v2919 = vcombine.high %v2874, %v2906
        %v2920 = vcombine.low %v2881, %v2913
        %v2921 = vcombine.high %v2881, %v2913
        %v2922 = vcombine.low %v1309, %v1341
        %v2923 = vcombine.high %v1309, %v1341
        %v2925 = vunpack.c.l.s4 1983009808
        %v2926 = vunpack.c.0.s8 %v2925
        %v2927 = vlaneseq
        %v2928 = vshrl.u32 %v2927, 7
        %v2929 = vsub.s32 %v2926, %v2928
        %v2930 = vrot.slane %v2922, %v2929
        %v2932 = vunpack.c.l.s4 1983009808
        %v2933 = vunpack.c.0.s8 %v2932
        %v2934 = vlaneseq
        %v2935 = vshrl.u32 %v2934, 7
        %v2936 = vsub.s32 %v2933, %v2935
        %v2937 = vrot.slane %v2923, %v2936
        %v2938 = vcombine.low %v1325, %v1357
        %v2939 = vcombine.high %v1325, %v1357
        %v2941 = vunpack.c.l.s4 1983009808
        %v2942 = vunpack.c.0.s8 %v2941
        %v2943 = vlaneseq
        %v2944 = vshrl.u32 %v2943, 7
        %v2945 = vsub.s32 %v2942, %v2944
        %v2946 = vrot.slane %v2938, %v2945
        %v2948 = vunpack.c.l.s4 1983009808
        %v2949 = vunpack.c.0.s8 %v2948
        %v2950 = vlaneseq
        %v2951 = vshrl.u32 %v2950, 7
        %v2952 = vsub.s32 %v2949, %v2951
        %v2953 = vrot.slane %v2939, %v2952
        %v2954 = vcombine.low %v1373, %v1405
        %v2955 = vcombine.high %v1373, %v1405
        %v2957 = vunpack.c.l.s4 1983009808
        %v2958 = vunpack.c.0.s8 %v2957
        %v2959 = vlaneseq
        %v2960 = vshrl.u32 %v2959, 7
        %v2961 = vsub.s32 %v2958, %v2960
        %v2962 = vrot.slane %v2954, %v2961
        %v2964 = vunpack.c.l.s4 1983009808
        %v2965 = vunpack.c.0.s8 %v2964
        %v2966 = vlaneseq
        %v2967 = vshrl.u32 %v2966, 7
        %v2968 = vsub.s32 %v2965, %v2967
        %v2969 = vrot.slane %v2955, %v2968
        %v2970 = vcombine.low %v1389, %v1421
        %v2971 = vcombine.high %v1389, %v1421
        %v2973 = vunpack.c.l.s4 1983009808
        %v2974 = vunpack.c.0.s8 %v2973
        %v2975 = vlaneseq
        %v2976 = vshrl.u32 %v2975, 7
        %v2977 = vsub.s32 %v2974, %v2976
        %v2978 = vrot.slane %v2970, %v2977
        %v2980 = vunpack.c.l.s4 1983009808
        %v2981 = vunpack.c.0.s8 %v2980
        %v2982 = vlaneseq
        %v2983 = vshrl.u32 %v2982, 7
        %v2984 = vsub.s32 %v2981, %v2983
        %v2985 = vrot.slane %v2971, %v2984
        %v2986 = vcombine.low %v2930, %v2946
        %v2987 = vcombine.high %v2930, %v2946
        %v2989 = vunpack.c.l.s4 1934713408
        %v2990 = vunpack.c.0.s8 %v2989
        %v2991 = vlaneseq
        %v2992 = vshrl.u32 %v2991, 7
        %v2993 = vsub.s32 %v2990, %v2992
        %v2994 = vrot.slane %v2986, %v2993
        %v2996 = vunpack.c.l.s4 1934713408
        %v2997 = vunpack.c.0.s8 %v2996
        %v2998 = vlaneseq
        %v2999 = vshrl.u32 %v2998, 7
        %v3000 = vsub.s32 %v2997, %v2999
        %v3001 = vrot.slane %v2987, %v3000
        %v3002 = vcombine.low %v2937, %v2953
        %v3003 = vcombine.high %v2937, %v2953
        %v3005 = vunpack.c.l.s4 1934713408
        %v3006 = vunpack.c.0.s8 %v3005
        %v3007 = vlaneseq
        %v3008 = vshrl.u32 %v3007, 7
        %v3009 = vsub.s32 %v3006, %v3008
        %v3010 = vrot.slane %v3002, %v3009
        %v3012 = vunpack.c.l.s4 1934713408
        %v3013 = vunpack.c.0.s8 %v3012
        %v3014 = vlaneseq
        %v3015 = vshrl.u32 %v3014, 7
        %v3016 = vsub.s32 %v3013, %v3015
        %v3017 = vrot.slane %v3003, %v3016
        %v3018 = vcombine.low %v2962, %v2978
        %v3019 = vcombine.high %v2962, %v2978
        %v3021 = vunpack.c.l.s4 1934713408
        %v3022 = vunpack.c.0.s8 %v3021
        %v3023 = vlaneseq
        %v3024 = vshrl.u32 %v3023, 7
        %v3025 = vsub.s32 %v3022, %v3024
        %v3026 = vrot.slane %v3018, %v3025
        %v3028 = vunpack.c.l.s4 1934713408
        %v3029 = vunpack.c.0.s8 %v3028
        %v3030 = vlaneseq
        %v3031 = vshrl.u32 %v3030, 7
        %v3032 = vsub.s32 %v3029, %v3031
        %v3033 = vrot.slane %v3019, %v3032
        %v3034 = vcombine.low %v2969, %v2985
        %v3035 = vcombine.high %v2969, %v2985
        %v3037 = vunpack.c.l.s4 1934713408
        %v3038 = vunpack.c.0.s8 %v3037
        %v3039 = vlaneseq
        %v3040 = vshrl.u32 %v3039, 7
        %v3041 = vsub.s32 %v3038, %v3040
        %v3042 = vrot.slane %v3034, %v3041
        %v3044 = vunpack.c.l.s4 1934713408
        %v3045 = vunpack.c.0.s8 %v3044
        %v3046 = vlaneseq
        %v3047 = vshrl.u32 %v3046, 7
        %v3048 = vsub.s32 %v3045, %v3047
        %v3049 = vrot.slane %v3035, %v3048
        %v3050 = vcombine.low %v2994, %v3026
        %v3051 = vcombine.high %v2994, %v3026
        %v3052 = vcombine.low %v3001, %v3033
        %v3053 = vcombine.high %v3001, %v3033
        %v3054 = vcombine.low %v3010, %v3042
        %v3055 = vcombine.high %v3010, %v3042
        %v3056 = vcombine.low %v3017, %v3049
        %v3057 = vcombine.high %v3017, %v3049
        %v3058 = vcombine.low %v1310, %v1342
        %v3059 = vcombine.high %v1310, %v1342
        %v3061 = vunpack.c.l.s4 1983009808
        %v3062 = vunpack.c.0.s8 %v3061
        %v3063 = vlaneseq
        %v3064 = vshrl.u32 %v3063, 7
        %v3065 = vsub.s32 %v3062, %v3064
        %v3066 = vrot.slane %v3058, %v3065
        %v3068 = vunpack.c.l.s4 1983009808
        %v3069 = vunpack.c.0.s8 %v3068
        %v3070 = vlaneseq
        %v3071 = vshrl.u32 %v3070, 7
        %v3072 = vsub.s32 %v3069, %v3071
        %v3073 = vrot.slane %v3059, %v3072
        %v3074 = vcombine.low %v1326, %v1358
        %v3075 = vcombine.high %v1326, %v1358
        %v3077 = vunpack.c.l.s4 1983009808
        %v3078 = vunpack.c.0.s8 %v3077
        %v3079 = vlaneseq
        %v3080 = vshrl.u32 %v3079, 7
        %v3081 = vsub.s32 %v3078, %v3080
        %v3082 = vrot.slane %v3074, %v3081
        %v3084 = vunpack.c.l.s4 1983009808
        %v3085 = vunpack.c.0.s8 %v3084
        %v3086 = vlaneseq
        %v3087 = vshrl.u32 %v3086, 7
        %v3088 = vsub.s32 %v3085, %v3087
        %v3089 = vrot.slane %v3075, %v3088
        %v3090 = vcombine.low %v1374, %v1406
        %v3091 = vcombine.high %v1374, %v1406
        %v3093 = vunpack.c.l.s4 1983009808
        %v3094 = vunpack.c.0.s8 %v3093
        %v3095 = vlaneseq
        %v3096 = vshrl.u32 %v3095, 7
        %v3097 = vsub.s32 %v3094, %v3096
        %v3098 = vrot.slane %v3090, %v3097
        %v3100 = vunpack.c.l.s4 1983009808
        %v3101 = vunpack.c.0.s8 %v3100
        %v3102 = vlaneseq
        %v3103 = vshrl.u32 %v3102, 7
        %v3104 = vsub.s32 %v3101, %v3103
        %v3105 = vrot.slane %v3091, %v3104
        %v3106 = vcombine.low %v1390, %v1422
        %v3107 = vcombine.high %v1390, %v1422
        %v3109 = vunpack.c.l.s4 1983009808
        %v3110 = vunpack.c.0.s8 %v3109
        %v3111 = vlaneseq
        %v3112 = vshrl.u32 %v3111, 7
        %v3113 = vsub.s32 %v3110, %v3112
        %v3114 = vrot.slane %v3106, %v3113
        %v3116 = vunpack.c.l.s4 1983009808
        %v3117 = vunpack.c.0.s8 %v3116
        %v3118 = vlaneseq
        %v3119 = vshrl.u32 %v3118, 7
        %v3120 = vsub.s32 %v3117, %v3119
        %v3121 = vrot.slane %v3107, %v3120
        %v3122 = vcombine.low %v3066, %v3082
        %v3123 = vcombine.high %v3066, %v3082
        %v3125 = vunpack.c.l.s4 1934713408
        %v3126 = vunpack.c.0.s8 %v3125
        %v3127 = vlaneseq
        %v3128 = vshrl.u32 %v3127, 7
        %v3129 = vsub.s32 %v3126, %v3128
        %v3130 = vrot.slane %v3122, %v3129
        %v3132 = vunpack.c.l.s4 1934713408
        %v3133 = vunpack.c.0.s8 %v3132
        %v3134 = vlaneseq
        %v3135 = vshrl.u32 %v3134, 7
        %v3136 = vsub.s32 %v3133, %v3135
        %v3137 = vrot.slane %v3123, %v3136
        %v3138 = vcombine.low %v3073, %v3089
        %v3139 = vcombine.high %v3073, %v3089
        %v3141 = vunpack.c.l.s4 1934713408
        %v3142 = vunpack.c.0.s8 %v3141
        %v3143 = vlaneseq
        %v3144 = vshrl.u32 %v3143, 7
        %v3145 = vsub.s32 %v3142, %v3144
        %v3146 = vrot.slane %v3138, %v3145
        %v3148 = vunpack.c.l.s4 1934713408
        %v3149 = vunpack.c.0.s8 %v3148
        %v3150 = vlaneseq
        %v3151 = vshrl.u32 %v3150, 7
        %v3152 = vsub.s32 %v3149, %v3151
        %v3153 = vrot.slane %v3139, %v3152
        %v3154 = vcombine.low %v3098, %v3114
        %v3155 = vcombine.high %v3098, %v3114
        %v3157 = vunpack.c.l.s4 1934713408
        %v3158 = vunpack.c.0.s8 %v3157
        %v3159 = vlaneseq
        %v3160 = vshrl.u32 %v3159, 7
        %v3161 = vsub.s32 %v3158, %v3160
        %v3162 = vrot.slane %v3154, %v3161
        %v3164 = vunpack.c.l.s4 1934713408
        %v3165 = vunpack.c.0.s8 %v3164
        %v3166 = vlaneseq
        %v3167 = vshrl.u32 %v3166, 7
        %v3168 = vsub.s32 %v3165, %v3167
        %v3169 = vrot.slane %v3155, %v3168
        %v3170 = vcombine.low %v3105, %v3121
        %v3171 = vcombine.high %v3105, %v3121
        %v3173 = vunpack.c.l.s4 1934713408
        %v3174 = vunpack.c.0.s8 %v3173
        %v3175 = vlaneseq
        %v3176 = vshrl.u32 %v3175, 7
        %v3177 = vsub.s32 %v3174, %v3176
        %v3178 = vrot.slane %v3170, %v3177
        %v3180 = vunpack.c.l.s4 1934713408
        %v3181 = vunpack.c.0.s8 %v3180
        %v3182 = vlaneseq
        %v3183 = vshrl.u32 %v3182, 7
        %v3184 = vsub.s32 %v3181, %v3183
        %v3185 = vrot.slane %v3171, %v3184
        %v3186 = vcombine.low %v3130, %v3162
        %v3187 = vcombine.high %v3130, %v3162
        %v3188 = vcombine.low %v3137, %v3169
        %v3189 = vcombine.high %v3137, %v3169
        %v3190 = vcombine.low %v3146, %v3178
        %v3191 = vcombine.high %v3146, %v3178
        %v3192 = vcombine.low %v3153, %v3185
        %v3193 = vcombine.high %v3153, %v3185
        %v3194 = vcombine.low %v1311, %v1343
        %v3195 = vcombine.high %v1311, %v1343
        %v3197 = vunpack.c.l.s4 1983009808
        %v3198 = vunpack.c.0.s8 %v3197
        %v3199 = vlaneseq
        %v3200 = vshrl.u32 %v3199, 7
        %v3201 = vsub.s32 %v3198, %v3200
        %v3202 = vrot.slane %v3194, %v3201
        %v3204 = vunpack.c.l.s4 1983009808
        %v3205 = vunpack.c.0.s8 %v3204
        %v3206 = vlaneseq
        %v3207 = vshrl.u32 %v3206, 7
        %v3208 = vsub.s32 %v3205, %v3207
        %v3209 = vrot.slane %v3195, %v3208
        %v3210 = vcombine.low %v1327, %v1359
        %v3211 = vcombine.high %v1327, %v1359
        %v3213 = vunpack.c.l.s4 1983009808
        %v3214 = vunpack.c.0.s8 %v3213
        %v3215 = vlaneseq
        %v3216 = vshrl.u32 %v3215, 7
        %v3217 = vsub.s32 %v3214, %v3216
        %v3218 = vrot.slane %v3210, %v3217
        %v3220 = vunpack.c.l.s4 1983009808
        %v3221 = vunpack.c.0.s8 %v3220
        %v3222 = vlaneseq
        %v3223 = vshrl.u32 %v3222, 7
        %v3224 = vsub.s32 %v3221, %v3223
        %v3225 = vrot.slane %v3211, %v3224
        %v3226 = vcombine.low %v1375, %v1407
        %v3227 = vcombine.high %v1375, %v1407
        %v3229 = vunpack.c.l.s4 1983009808
        %v3230 = vunpack.c.0.s8 %v3229
        %v3231 = vlaneseq
        %v3232 = vshrl.u32 %v3231, 7
        %v3233 = vsub.s32 %v3230, %v3232
        %v3234 = vrot.slane %v3226, %v3233
        %v3236 = vunpack.c.l.s4 1983009808
        %v3237 = vunpack.c.0.s8 %v3236
        %v3238 = vlaneseq
        %v3239 = vshrl.u32 %v3238, 7
        %v3240 = vsub.s32 %v3237, %v3239
        %v3241 = vrot.slane %v3227, %v3240
        %v3242 = vcombine.low %v1391, %v1423
        %v3243 = vcombine.high %v1391, %v1423
        %v3245 = vunpack.c.l.s4 1983009808
        %v3246 = vunpack.c.0.s8 %v3245
        %v3247 = vlaneseq
        %v3248 = vshrl.u32 %v3247, 7
        %v3249 = vsub.s32 %v3246, %v3248
        %v3250 = vrot.slane %v3242, %v3249
        %v3252 = vunpack.c.l.s4 1983009808
        %v3253 = vunpack.c.0.s8 %v3252
        %v3254 = vlaneseq
        %v3255 = vshrl.u32 %v3254, 7
        %v3256 = vsub.s32 %v3253, %v3255
        %v3257 = vrot.slane %v3243, %v3256
        %v3258 = vcombine.low %v3202, %v3218
        %v3259 = vcombine.high %v3202, %v3218
        %v3261 = vunpack.c.l.s4 1934713408
        %v3262 = vunpack.c.0.s8 %v3261
        %v3263 = vlaneseq
        %v3264 = vshrl.u32 %v3263, 7
        %v3265 = vsub.s32 %v3262, %v3264
        %v3266 = vrot.slane %v3258, %v3265
        %v3268 = vunpack.c.l.s4 1934713408
        %v3269 = vunpack.c.0.s8 %v3268
        %v3270 = vlaneseq
        %v3271 = vshrl.u32 %v3270, 7
        %v3272 = vsub.s32 %v3269, %v3271
        %v3273 = vrot.slane %v3259, %v3272
        %v3274 = vcombine.low %v3209, %v3225
        %v3275 = vcombine.high %v3209, %v3225
        %v3277 = vunpack.c.l.s4 1934713408
        %v3278 = vunpack.c.0.s8 %v3277
        %v3279 = vlaneseq
        %v3280 = vshrl.u32 %v3279, 7
        %v3281 = vsub.s32 %v3278, %v3280
        %v3282 = vrot.slane %v3274, %v3281
        %v3284 = vunpack.c.l.s4 1934713408
        %v3285 = vunpack.c.0.s8 %v3284
        %v3286 = vlaneseq
        %v3287 = vshrl.u32 %v3286, 7
        %v3288 = vsub.s32 %v3285, %v3287
        %v3289 = vrot.slane %v3275, %v3288
        %v3290 = vcombine.low %v3234, %v3250
        %v3291 = vcombine.high %v3234, %v3250
        %v3293 = vunpack.c.l.s4 1934713408
        %v3294 = vunpack.c.0.s8 %v3293
        %v3295 = vlaneseq
        %v3296 = vshrl.u32 %v3295, 7
        %v3297 = vsub.s32 %v3294, %v3296
        %v3298 = vrot.slane %v3290, %v3297
        %v3300 = vunpack.c.l.s4 1934713408
        %v3301 = vunpack.c.0.s8 %v3300
        %v3302 = vlaneseq
        %v3303 = vshrl.u32 %v3302, 7
        %v3304 = vsub.s32 %v3301, %v3303
        %v3305 = vrot.slane %v3291, %v3304
        %v3306 = vcombine.low %v3241, %v3257
        %v3307 = vcombine.high %v3241, %v3257
        %v3309 = vunpack.c.l.s4 1934713408
        %v3310 = vunpack.c.0.s8 %v3309
        %v3311 = vlaneseq
        %v3312 = vshrl.u32 %v3311, 7
        %v3313 = vsub.s32 %v3310, %v3312
        %v3314 = vrot.slane %v3306, %v3313
        %v3316 = vunpack.c.l.s4 1934713408
        %v3317 = vunpack.c.0.s8 %v3316
        %v3318 = vlaneseq
        %v3319 = vshrl.u32 %v3318, 7
        %v3320 = vsub.s32 %v3317, %v3319
        %v3321 = vrot.slane %v3307, %v3320
        %v3322 = vcombine.low %v3266, %v3298
        %v3323 = vcombine.high %v3266, %v3298
        %v3324 = vcombine.low %v3273, %v3305
        %v3325 = vcombine.high %v3273, %v3305
        %v3326 = vcombine.low %v3282, %v3314
        %v3327 = vcombine.high %v3282, %v3314
        %v3328 = vcombine.low %v3289, %v3321
        %v3329 = vcombine.high %v3289, %v3321
        %v3330 = vcombine.low %v1312, %v1344
        %v3331 = vcombine.high %v1312, %v1344
        %v3333 = vunpack.c.l.s4 1983009808
        %v3334 = vunpack.c.0.s8 %v3333
        %v3335 = vlaneseq
        %v3336 = vshrl.u32 %v3335, 7
        %v3337 = vsub.s32 %v3334, %v3336
        %v3338 = vrot.slane %v3330, %v3337
        %v3340 = vunpack.c.l.s4 1983009808
        %v3341 = vunpack.c.0.s8 %v3340
        %v3342 = vlaneseq
        %v3343 = vshrl.u32 %v3342, 7
        %v3344 = vsub.s32 %v3341, %v3343
        %v3345 = vrot.slane %v3331, %v3344
        %v3346 = vcombine.low %v1328, %v1360
        %v3347 = vcombine.high %v1328, %v1360
        %v3349 = vunpack.c.l.s4 1983009808
        %v3350 = vunpack.c.0.s8 %v3349
        %v3351 = vlaneseq
        %v3352 = vshrl.u32 %v3351, 7
        %v3353 = vsub.s32 %v3350, %v3352
        %v3354 = vrot.slane %v3346, %v3353
        %v3356 = vunpack.c.l.s4 1983009808
        %v3357 = vunpack.c.0.s8 %v3356
        %v3358 = vlaneseq
        %v3359 = vshrl.u32 %v3358, 7
        %v3360 = vsub.s32 %v3357, %v3359
        %v3361 = vrot.slane %v3347, %v3360
        %v3362 = vcombine.low %v1376, %v1408
        %v3363 = vcombine.high %v1376, %v1408
        %v3365 = vunpack.c.l.s4 1983009808
        %v3366 = vunpack.c.0.s8 %v3365
        %v3367 = vlaneseq
        %v3368 = vshrl.u32 %v3367, 7
        %v3369 = vsub.s32 %v3366, %v3368
        %v3370 = vrot.slane %v3362, %v3369
        %v3372 = vunpack.c.l.s4 1983009808
        %v3373 = vunpack.c.0.s8 %v3372
        %v3374 = vlaneseq
        %v3375 = vshrl.u32 %v3374, 7
        %v3376 = vsub.s32 %v3373, %v3375
        %v3377 = vrot.slane %v3363, %v3376
        %v3378 = vcombine.low %v1392, %v1424
        %v3379 = vcombine.high %v1392, %v1424
        %v3381 = vunpack.c.l.s4 1983009808
        %v3382 = vunpack.c.0.s8 %v3381
        %v3383 = vlaneseq
        %v3384 = vshrl.u32 %v3383, 7
        %v3385 = vsub.s32 %v3382, %v3384
        %v3386 = vrot.slane %v3378, %v3385
        %v3388 = vunpack.c.l.s4 1983009808
        %v3389 = vunpack.c.0.s8 %v3388
        %v3390 = vlaneseq
        %v3391 = vshrl.u32 %v3390, 7
        %v3392 = vsub.s32 %v3389, %v3391
        %v3393 = vrot.slane %v3379, %v3392
        %v3394 = vcombine.low %v3338, %v3354
        %v3395 = vcombine.high %v3338, %v3354
        %v3397 = vunpack.c.l.s4 1934713408
        %v3398 = vunpack.c.0.s8 %v3397
        %v3399 = vlaneseq
        %v3400 = vshrl.u32 %v3399, 7
        %v3401 = vsub.s32 %v3398, %v3400
        %v3402 = vrot.slane %v3394, %v3401
        %v3404 = vunpack.c.l.s4 1934713408
        %v3405 = vunpack.c.0.s8 %v3404
        %v3406 = vlaneseq
        %v3407 = vshrl.u32 %v3406, 7
        %v3408 = vsub.s32 %v3405, %v3407
        %v3409 = vrot.slane %v3395, %v3408
        %v3410 = vcombine.low %v3345, %v3361
        %v3411 = vcombine.high %v3345, %v3361
        %v3413 = vunpack.c.l.s4 1934713408
        %v3414 = vunpack.c.0.s8 %v3413
        %v3415 = vlaneseq
        %v3416 = vshrl.u32 %v3415, 7
        %v3417 = vsub.s32 %v3414, %v3416
        %v3418 = vrot.slane %v3410, %v3417
        %v3420 = vunpack.c.l.s4 1934713408
        %v3421 = vunpack.c.0.s8 %v3420
        %v3422 = vlaneseq
        %v3423 = vshrl.u32 %v3422, 7
        %v3424 = vsub.s32 %v3421, %v3423
        %v3425 = vrot.slane %v3411, %v3424
        %v3426 = vcombine.low %v3370, %v3386
        %v3427 = vcombine.high %v3370, %v3386
        %v3429 = vunpack.c.l.s4 1934713408
        %v3430 = vunpack.c.0.s8 %v3429
        %v3431 = vlaneseq
        %v3432 = vshrl.u32 %v3431, 7
        %v3433 = vsub.s32 %v3430, %v3432
        %v3434 = vrot.slane %v3426, %v3433
        %v3436 = vunpack.c.l.s4 1934713408
        %v3437 = vunpack.c.0.s8 %v3436
        %v3438 = vlaneseq
        %v3439 = vshrl.u32 %v3438, 7
        %v3440 = vsub.s32 %v3437, %v3439
        %v3441 = vrot.slane %v3427, %v3440
        %v3442 = vcombine.low %v3377, %v3393
        %v3443 = vcombine.high %v3377, %v3393
        %v3445 = vunpack.c.l.s4 1934713408
        %v3446 = vunpack.c.0.s8 %v3445
        %v3447 = vlaneseq
        %v3448 = vshrl.u32 %v3447, 7
        %v3449 = vsub.s32 %v3446, %v3448
        %v3450 = vrot.slane %v3442, %v3449
        %v3452 = vunpack.c.l.s4 1934713408
        %v3453 = vunpack.c.0.s8 %v3452
        %v3454 = vlaneseq
        %v3455 = vshrl.u32 %v3454, 7
        %v3456 = vsub.s32 %v3453, %v3455
        %v3457 = vrot.slane %v3443, %v3456
        %v3458 = vcombine.low %v3402, %v3434
        %v3459 = vcombine.high %v3402, %v3434
        %v3460 = vcombine.low %v3409, %v3441
        %v3461 = vcombine.high %v3409, %v3441
        %v3462 = vcombine.low %v3418, %v3450
        %v3463 = vcombine.high %v3418, %v3450
        %v3464 = vcombine.low %v3425, %v3457
        %v3465 = vcombine.high %v3425, %v3457
        %v3466 = vcombine.low %v1313, %v1345
        %v3467 = vcombine.high %v1313, %v1345
        %v3469 = vunpack.c.l.s4 1983009808
        %v3470 = vunpack.c.0.s8 %v3469
        %v3471 = vlaneseq
        %v3472 = vshrl.u32 %v3471, 7
        %v3473 = vsub.s32 %v3470, %v3472
        %v3474 = vrot.slane %v3466, %v3473
        %v3476 = vunpack.c.l.s4 1983009808
        %v3477 = vunpack.c.0.s8 %v3476
        %v3478 = vlaneseq
        %v3479 = vshrl.u32 %v3478, 7
        %v3480 = vsub.s32 %v3477, %v3479
        %v3481 = vrot.slane %v3467, %v3480
        %v3482 = vcombine.low %v1329, %v1361
        %v3483 = vcombine.high %v1329, %v1361
        %v3485 = vunpack.c.l.s4 1983009808
        %v3486 = vunpack.c.0.s8 %v3485
        %v3487 = vlaneseq
        %v3488 = vshrl.u32 %v3487, 7
        %v3489 = vsub.s32 %v3486, %v3488
        %v3490 = vrot.slane %v3482, %v3489
        %v3492 = vunpack.c.l.s4 1983009808
        %v3493 = vunpack.c.0.s8 %v3492
        %v3494 = vlaneseq
        %v3495 = vshrl.u32 %v3494, 7
        %v3496 = vsub.s32 %v3493, %v3495
        %v3497 = vrot.slane %v3483, %v3496
        %v3498 = vcombine.low %v1377, %v1409
        %v3499 = vcombine.high %v1377, %v1409
        %v3501 = vunpack.c.l.s4 1983009808
        %v3502 = vunpack.c.0.s8 %v3501
        %v3503 = vlaneseq
        %v3504 = vshrl.u32 %v3503, 7
        %v3505 = vsub.s32 %v3502, %v3504
        %v3506 = vrot.slane %v3498, %v3505
        %v3508 = vunpack.c.l.s4 1983009808
        %v3509 = vunpack.c.0.s8 %v3508
        %v3510 = vlaneseq
        %v3511 = vshrl.u32 %v3510, 7
        %v3512 = vsub.s32 %v3509, %v3511
        %v3513 = vrot.slane %v3499, %v3512
        %v3514 = vcombine.low %v1393, %v1425
        %v3515 = vcombine.high %v1393, %v1425
        %v3517 = vunpack.c.l.s4 1983009808
        %v3518 = vunpack.c.0.s8 %v3517
        %v3519 = vlaneseq
        %v3520 = vshrl.u32 %v3519, 7
        %v3521 = vsub.s32 %v3518, %v3520
        %v3522 = vrot.slane %v3514, %v3521
        %v3524 = vunpack.c.l.s4 1983009808
        %v3525 = vunpack.c.0.s8 %v3524
        %v3526 = vlaneseq
        %v3527 = vshrl.u32 %v3526, 7
        %v3528 = vsub.s32 %v3525, %v3527
        %v3529 = vrot.slane %v3515, %v3528
        %v3530 = vcombine.low %v3474, %v3490
        %v3531 = vcombine.high %v3474, %v3490
        %v3533 = vunpack.c.l.s4 1934713408
        %v3534 = vunpack.c.0.s8 %v3533
        %v3535 = vlaneseq
        %v3536 = vshrl.u32 %v3535, 7
        %v3537 = vsub.s32 %v3534, %v3536
        %v3538 = vrot.slane %v3530, %v3537
        %v3540 = vunpack.c.l.s4 1934713408
        %v3541 = vunpack.c.0.s8 %v3540
        %v3542 = vlaneseq
        %v3543 = vshrl.u32 %v3542, 7
        %v3544 = vsub.s32 %v3541, %v3543
        %v3545 = vrot.slane %v3531, %v3544
        %v3546 = vcombine.low %v3481, %v3497
        %v3547 = vcombine.high %v3481, %v3497
        %v3549 = vunpack.c.l.s4 1934713408
        %v3550 = vunpack.c.0.s8 %v3549
        %v3551 = vlaneseq
        %v3552 = vshrl.u32 %v3551, 7
        %v3553 = vsub.s32 %v3550, %v3552
        %v3554 = vrot.slane %v3546, %v3553
        %v3556 = vunpack.c.l.s4 1934713408
        %v3557 = vunpack.c.0.s8 %v3556
        %v3558 = vlaneseq
        %v3559 = vshrl.u32 %v3558, 7
        %v3560 = vsub.s32 %v3557, %v3559
        %v3561 = vrot.slane %v3547, %v3560
        %v3562 = vcombine.low %v3506, %v3522
        %v3563 = vcombine.high %v3506, %v3522
        %v3565 = vunpack.c.l.s4 1934713408
        %v3566 = vunpack.c.0.s8 %v3565
        %v3567 = vlaneseq
        %v3568 = vshrl.u32 %v3567, 7
        %v3569 = vsub.s32 %v3566, %v3568
        %v3570 = vrot.slane %v3562, %v3569
        %v3572 = vunpack.c.l.s4 1934713408
        %v3573 = vunpack.c.0.s8 %v3572
        %v3574 = vlaneseq
        %v3575 = vshrl.u32 %v3574, 7
        %v3576 = vsub.s32 %v3573, %v3575
        %v3577 = vrot.slane %v3563, %v3576
        %v3578 = vcombine.low %v3513, %v3529
        %v3579 = vcombine.high %v3513, %v3529
        %v3581 = vunpack.c.l.s4 1934713408
        %v3582 = vunpack.c.0.s8 %v3581
        %v3583 = vlaneseq
        %v3584 = vshrl.u32 %v3583, 7
        %v3585 = vsub.s32 %v3582, %v3584
        %v3586 = vrot.slane %v3578, %v3585
        %v3588 = vunpack.c.l.s4 1934713408
        %v3589 = vunpack.c.0.s8 %v3588
        %v3590 = vlaneseq
        %v3591 = vshrl.u32 %v3590, 7
        %v3592 = vsub.s32 %v3589, %v3591
        %v3593 = vrot.slane %v3579, %v3592
        %v3594 = vcombine.low %v3538, %v3570
        %v3595 = vcombine.high %v3538, %v3570
        %v3596 = vcombine.low %v3545, %v3577
        %v3597 = vcombine.high %v3545, %v3577
        %v3598 = vcombine.low %v3554, %v3586
        %v3599 = vcombine.high %v3554, %v3586
        %v3600 = vcombine.low %v3561, %v3593
        %v3601 = vcombine.high %v3561, %v3593
        %3603 = vrot.lane.b32.xlu0 %v1555, 2
        %v3604 = vpop.permute.xlu0 %3603
        %3607 = vrot.lane.b32.xlu0 %v1556, 4
        %v3608 = vpop.permute.xlu0 %3607
        %3611 = vrot.lane.b32.xlu0 %v1557, 6
        %v3612 = vpop.permute.xlu0 %3611
        %3615 = vrot.lane.b32.xlu0 %v1558, 8
        %v3616 = vpop.permute.xlu0 %3615
        %3619 = vrot.lane.b32.xlu0 %v1559, 10
        %v3620 = vpop.permute.xlu0 %3619
        %3623 = vrot.lane.b32.xlu0 %v1560, 12
        %v3624 = vpop.permute.xlu0 %3623
        %3627 = vrot.lane.b32.xlu0 %v1561, 14
        %v3628 = vpop.permute.xlu0 %3627
        %3631 = vrot.lane.b32.xlu0 %v1690, 16
        %v3632 = vpop.permute.xlu0 %3631
        %3635 = vrot.lane.b32.xlu0 %v1691, 18
        %v3636 = vpop.permute.xlu0 %3635
        %3639 = vrot.lane.b32.xlu0 %v1692, 20
        %v3640 = vpop.permute.xlu0 %3639
        %3643 = vrot.lane.b32.xlu0 %v1693, 22
        %v3644 = vpop.permute.xlu0 %3643
        %3647 = vrot.lane.b32.xlu0 %v1694, 24
        %v3648 = vpop.permute.xlu0 %3647
        %3651 = vrot.lane.b32.xlu0 %v1695, 26
        %v3652 = vpop.permute.xlu0 %3651
        %3655 = vrot.lane.b32.xlu0 %v1696, 28
        %v3656 = vpop.permute.xlu0 %3655
        %3659 = vrot.lane.b32.xlu0 %v1697, 30
        %v3660 = vpop.permute.xlu0 %3659
        %3663 = vrot.lane.b32.xlu0 %v1826, 32
        %v3664 = vpop.permute.xlu0 %3663
        %3667 = vrot.lane.b32.xlu0 %v1827, 34
        %v3668 = vpop.permute.xlu0 %3667
        %3671 = vrot.lane.b32.xlu0 %v1828, 36
        %v3672 = vpop.permute.xlu0 %3671
        %3675 = vrot.lane.b32.xlu0 %v1829, 38
        %v3676 = vpop.permute.xlu0 %3675
        %3679 = vrot.lane.b32.xlu0 %v1830, 40
        %v3680 = vpop.permute.xlu0 %3679
        %3683 = vrot.lane.b32.xlu0 %v1831, 42
        %v3684 = vpop.permute.xlu0 %3683
        %3687 = vrot.lane.b32.xlu0 %v1832, 44
        %v3688 = vpop.permute.xlu0 %3687
        %3691 = vrot.lane.b32.xlu0 %v1833, 46
        %v3692 = vpop.permute.xlu0 %3691
        %3695 = vrot.lane.b32.xlu0 %v1962, 48
        %v3696 = vpop.permute.xlu0 %3695
        %3699 = vrot.lane.b32.xlu0 %v1963, 50
        %v3700 = vpop.permute.xlu0 %3699
        %3703 = vrot.lane.b32.xlu0 %v1964, 52
        %v3704 = vpop.permute.xlu0 %3703
        %3707 = vrot.lane.b32.xlu0 %v1965, 54
        %v3708 = vpop.permute.xlu0 %3707
        %3711 = vrot.lane.b32.xlu0 %v1966, 56
        %v3712 = vpop.permute.xlu0 %3711
        %3715 = vrot.lane.b32.xlu0 %v1967, 58
        %v3716 = vpop.permute.xlu0 %3715
        %3719 = vrot.lane.b32.xlu0 %v1968, 60
        %v3720 = vpop.permute.xlu0 %3719
        %3723 = vrot.lane.b32.xlu0 %v1969, 62
        %v3724 = vpop.permute.xlu0 %3723
        %3727 = vrot.lane.b32.xlu0 %v2098, 64
        %v3728 = vpop.permute.xlu0 %3727
        %3731 = vrot.lane.b32.xlu0 %v2099, 66
        %v3732 = vpop.permute.xlu0 %3731
        %3735 = vrot.lane.b32.xlu0 %v2100, 68
        %v3736 = vpop.permute.xlu0 %3735
        %3739 = vrot.lane.b32.xlu0 %v2101, 70
        %v3740 = vpop.permute.xlu0 %3739
        %3743 = vrot.lane.b32.xlu0 %v2102, 72
        %v3744 = vpop.permute.xlu0 %3743
        %3747 = vrot.lane.b32.xlu0 %v2103, 74
        %v3748 = vpop.permute.xlu0 %3747
        %3751 = vrot.lane.b32.xlu0 %v2104, 76
        %v3752 = vpop.permute.xlu0 %3751
        %3755 = vrot.lane.b32.xlu0 %v2105, 78
        %v3756 = vpop.permute.xlu0 %3755
        %3759 = vrot.lane.b32.xlu0 %v2234, 80
        %v3760 = vpop.permute.xlu0 %3759
        %3763 = vrot.lane.b32.xlu0 %v2235, 82
        %v3764 = vpop.permute.xlu0 %3763
        %3767 = vrot.lane.b32.xlu0 %v2236, 84
        %v3768 = vpop.permute.xlu0 %3767
        %3771 = vrot.lane.b32.xlu0 %v2237, 86
        %v3772 = vpop.permute.xlu0 %3771
        %3775 = vrot.lane.b32.xlu0 %v2238, 88
        %v3776 = vpop.permute.xlu0 %3775
        %3779 = vrot.lane.b32.xlu0 %v2239, 90
        %v3780 = vpop.permute.xlu0 %3779
        %3783 = vrot.lane.b32.xlu0 %v2240, 92
        %v3784 = vpop.permute.xlu0 %3783
        %3787 = vrot.lane.b32.xlu0 %v2241, 94
        %v3788 = vpop.permute.xlu0 %3787
        %3791 = vrot.lane.b32.xlu0 %v2370, 96
        %v3792 = vpop.permute.xlu0 %3791
        %3795 = vrot.lane.b32.xlu0 %v2371, 98
        %v3796 = vpop.permute.xlu0 %3795
        %3799 = vrot.lane.b32.xlu0 %v2372, 100
        %v3800 = vpop.permute.xlu0 %3799
        %3803 = vrot.lane.b32.xlu0 %v2373, 102
        %v3804 = vpop.permute.xlu0 %3803
        %3807 = vrot.lane.b32.xlu0 %v2374, 104
        %v3808 = vpop.permute.xlu0 %3807
        %3811 = vrot.lane.b32.xlu0 %v2375, 106
        %v3812 = vpop.permute.xlu0 %3811
        %3815 = vrot.lane.b32.xlu0 %v2376, 108
        %v3816 = vpop.permute.xlu0 %3815
        %3819 = vrot.lane.b32.xlu0 %v2377, 110
        %v3820 = vpop.permute.xlu0 %3819
        %3823 = vrot.lane.b32.xlu0 %v2506, 112
        %v3824 = vpop.permute.xlu0 %3823
        %3827 = vrot.lane.b32.xlu0 %v2507, 114
        %v3828 = vpop.permute.xlu0 %3827
        %3831 = vrot.lane.b32.xlu0 %v2508, 116
        %v3832 = vpop.permute.xlu0 %3831
        %3835 = vrot.lane.b32.xlu0 %v2509, 118
        %v3836 = vpop.permute.xlu0 %3835
        %3839 = vrot.lane.b32.xlu0 %v2510, 120
        %v3840 = vpop.permute.xlu0 %3839
        %3843 = vrot.lane.b32.xlu0 %v2511, 122
        %v3844 = vpop.permute.xlu0 %3843
        %3847 = vrot.lane.b32.xlu0 %v2512, 124
        %v3848 = vpop.permute.xlu0 %3847
        %3851 = vrot.lane.b32.xlu0 %v2513, 126
        %v3852 = vpop.permute.xlu0 %3851
        %3855 = vrot.lane.b32.xlu0 %v2643, 2
        %v3856 = vpop.permute.xlu0 %3855
        %3859 = vrot.lane.b32.xlu0 %v2644, 4
        %v3860 = vpop.permute.xlu0 %3859
        %3863 = vrot.lane.b32.xlu0 %v2645, 6
        %v3864 = vpop.permute.xlu0 %3863
        %3867 = vrot.lane.b32.xlu0 %v2646, 8
        %v3868 = vpop.permute.xlu0 %3867
        %3871 = vrot.lane.b32.xlu0 %v2647, 10
        %v3872 = vpop.permute.xlu0 %3871
        %3875 = vrot.lane.b32.xlu0 %v2648, 12
        %v3876 = vpop.permute.xlu0 %3875
        %3879 = vrot.lane.b32.xlu0 %v2649, 14
        %v3880 = vpop.permute.xlu0 %3879
        %3883 = vrot.lane.b32.xlu0 %v2778, 16
        %v3884 = vpop.permute.xlu0 %3883
        %3887 = vrot.lane.b32.xlu0 %v2779, 18
        %v3888 = vpop.permute.xlu0 %3887
        %3891 = vrot.lane.b32.xlu0 %v2780, 20
        %v3892 = vpop.permute.xlu0 %3891
        %3895 = vrot.lane.b32.xlu0 %v2781, 22
        %v3896 = vpop.permute.xlu0 %3895
        %3899 = vrot.lane.b32.xlu0 %v2782, 24
        %v3900 = vpop.permute.xlu0 %3899
        %3903 = vrot.lane.b32.xlu0 %v2783, 26
        %v3904 = vpop.permute.xlu0 %3903
        %3907 = vrot.lane.b32.xlu0 %v2784, 28
        %v3908 = vpop.permute.xlu0 %3907
        %3911 = vrot.lane.b32.xlu0 %v2785, 30
        %v3912 = vpop.permute.xlu0 %3911
        %3915 = vrot.lane.b32.xlu0 %v2914, 32
        %v3916 = vpop.permute.xlu0 %3915
        %3919 = vrot.lane.b32.xlu0 %v2915, 34
        %v3920 = vpop.permute.xlu0 %3919
        %3923 = vrot.lane.b32.xlu0 %v2916, 36
        %v3924 = vpop.permute.xlu0 %3923
        %3927 = vrot.lane.b32.xlu0 %v2917, 38
        %v3928 = vpop.permute.xlu0 %3927
        %3931 = vrot.lane.b32.xlu0 %v2918, 40
        %v3932 = vpop.permute.xlu0 %3931
        %3935 = vrot.lane.b32.xlu0 %v2919, 42
        %v3936 = vpop.permute.xlu0 %3935
        %3939 = vrot.lane.b32.xlu0 %v2920, 44
        %v3940 = vpop.permute.xlu0 %3939
        %3943 = vrot.lane.b32.xlu0 %v2921, 46
        %v3944 = vpop.permute.xlu0 %3943
        %3947 = vrot.lane.b32.xlu0 %v3050, 48
        %v3948 = vpop.permute.xlu0 %3947
        %3951 = vrot.lane.b32.xlu0 %v3051, 50
        %v3952 = vpop.permute.xlu0 %3951
        %3955 = vrot.lane.b32.xlu0 %v3052, 52
        %v3956 = vpop.permute.xlu0 %3955
        %3959 = vrot.lane.b32.xlu0 %v3053, 54
        %v3960 = vpop.permute.xlu0 %3959
        %3963 = vrot.lane.b32.xlu0 %v3054, 56
        %v3964 = vpop.permute.xlu0 %3963
        %3967 = vrot.lane.b32.xlu0 %v3055, 58
        %v3968 = vpop.permute.xlu0 %3967
        %3971 = vrot.lane.b32.xlu0 %v3056, 60
        %v3972 = vpop.permute.xlu0 %3971
        %3975 = vrot.lane.b32.xlu0 %v3057, 62
        %v3976 = vpop.permute.xlu0 %3975
        %3979 = vrot.lane.b32.xlu0 %v3186, 64
        %v3980 = vpop.permute.xlu0 %3979
        %3983 = vrot.lane.b32.xlu0 %v3187, 66
        %v3984 = vpop.permute.xlu0 %3983
        %3987 = vrot.lane.b32.xlu0 %v3188, 68
        %v3988 = vpop.permute.xlu0 %3987
        %3991 = vrot.lane.b32.xlu0 %v3189, 70
        %v3992 = vpop.permute.xlu0 %3991
        %3995 = vrot.lane.b32.xlu0 %v3190, 72
        %v3996 = vpop.permute.xlu0 %3995
        %3999 = vrot.lane.b32.xlu0 %v3191, 74
        %v4000 = vpop.permute.xlu0 %3999
        %4003 = vrot.lane.b32.xlu0 %v3192, 76
        %v4004 = vpop.permute.xlu0 %4003
        %4007 = vrot.lane.b32.xlu0 %v3193, 78
        %v4008 = vpop.permute.xlu0 %4007
        %4011 = vrot.lane.b32.xlu0 %v3322, 80
        %v4012 = vpop.permute.xlu0 %4011
        %4015 = vrot.lane.b32.xlu0 %v3323, 82
        %v4016 = vpop.permute.xlu0 %4015
        %4019 = vrot.lane.b32.xlu0 %v3324, 84
        %v4020 = vpop.permute.xlu0 %4019
        %4023 = vrot.lane.b32.xlu0 %v3325, 86
        %v4024 = vpop.permute.xlu0 %4023
        %4027 = vrot.lane.b32.xlu0 %v3326, 88
        %v4028 = vpop.permute.xlu0 %4027
        %4031 = vrot.lane.b32.xlu0 %v3327, 90
        %v4032 = vpop.permute.xlu0 %4031
        %4035 = vrot.lane.b32.xlu0 %v3328, 92
        %v4036 = vpop.permute.xlu0 %4035
        %4039 = vrot.lane.b32.xlu0 %v3329, 94
        %v4040 = vpop.permute.xlu0 %4039
        %4043 = vrot.lane.b32.xlu0 %v3458, 96
        %v4044 = vpop.permute.xlu0 %4043
        %4047 = vrot.lane.b32.xlu0 %v3459, 98
        %v4048 = vpop.permute.xlu0 %4047
        %4051 = vrot.lane.b32.xlu0 %v3460, 100
        %v4052 = vpop.permute.xlu0 %4051
        %4055 = vrot.lane.b32.xlu0 %v3461, 102
        %v4056 = vpop.permute.xlu0 %4055
        %4059 = vrot.lane.b32.xlu0 %v3462, 104
        %v4060 = vpop.permute.xlu0 %4059
        %4063 = vrot.lane.b32.xlu0 %v3463, 106
        %v4064 = vpop.permute.xlu0 %4063
        %4067 = vrot.lane.b32.xlu0 %v3464, 108
        %v4068 = vpop.permute.xlu0 %4067
        %4071 = vrot.lane.b32.xlu0 %v3465, 110
        %v4072 = vpop.permute.xlu0 %4071
        %4075 = vrot.lane.b32.xlu0 %v3594, 112
        %v4076 = vpop.permute.xlu0 %4075
        %4079 = vrot.lane.b32.xlu0 %v3595, 114
        %v4080 = vpop.permute.xlu0 %4079
        %4083 = vrot.lane.b32.xlu0 %v3596, 116
        %v4084 = vpop.permute.xlu0 %4083
        %4087 = vrot.lane.b32.xlu0 %v3597, 118
        %v4088 = vpop.permute.xlu0 %4087
        %4091 = vrot.lane.b32.xlu0 %v3598, 120
        %v4092 = vpop.permute.xlu0 %4091
        %4095 = vrot.lane.b32.xlu0 %v3599, 122
        %v4096 = vpop.permute.xlu0 %4095
        %4099 = vrot.lane.b32.xlu0 %v3600, 124
        %v4100 = vpop.permute.xlu0 %4099
        %4103 = vrot.lane.b32.xlu0 %v3601, 126
        %v4104 = vpop.permute.xlu0 %4103
        %vm4106 = vcmask 15360
        %v4107 = vsel %vm4106, %v1554, %v3604
        %vm4108 = vcmask 31744
        %v4109 = vsel %vm4108, %v4107, %v3608
        %vm4110 = vcmask 48128
        %v4111 = vsel %vm4110, %v4109, %v3612
        %vm4112 = vcmask 64512
        %v4113 = vsel %vm4112, %v4111, %v3616
        %vm4114 = vcmask 80896
        %v4115 = vsel %vm4114, %v4113, %v3620
        %vm4116 = vcmask 97280
        %v4117 = vsel %vm4116, %v4115, %v3624
        %vm4118 = vcmask 113664
        %v4119 = vsel %vm4118, %v4117, %v3628
        %vm4120 = vcmask 130048
        %v4121 = vsel %vm4120, %v4119, %v3632
        %vm4122 = vcmask 146432
        %v4123 = vsel %vm4122, %v4121, %v3636
        %vm4124 = vcmask 162816
        %v4125 = vsel %vm4124, %v4123, %v3640
        %vm4126 = vcmask 179200
        %v4127 = vsel %vm4126, %v4125, %v3644
        %vm4128 = vcmask 195584
        %v4129 = vsel %vm4128, %v4127, %v3648
        %vm4130 = vcmask 211968
        %v4131 = vsel %vm4130, %v4129, %v3652
        %vm4132 = vcmask 228352
        %v4133 = vsel %vm4132, %v4131, %v3656
        %vm4134 = vcmask 244736
        %v4135 = vsel %vm4134, %v4133, %v3660
        %vm4136 = vcmask 261120
        %v4137 = vsel %vm4136, %v4135, %v3664
        %vm4138 = vcmask 277504
        %v4139 = vsel %vm4138, %v4137, %v3668
        %vm4140 = vcmask 293888
        %v4141 = vsel %vm4140, %v4139, %v3672
        %vm4142 = vcmask 310272
        %v4143 = vsel %vm4142, %v4141, %v3676
        %vm4144 = vcmask 326656
        %v4145 = vsel %vm4144, %v4143, %v3680
        %vm4146 = vcmask 343040
        %v4147 = vsel %vm4146, %v4145, %v3684
        %vm4148 = vcmask 359424
        %v4149 = vsel %vm4148, %v4147, %v3688
        %vm4150 = vcmask 375808
        %v4151 = vsel %vm4150, %v4149, %v3692
        %vm4152 = vcmask 392192
        %v4153 = vsel %vm4152, %v4151, %v3696
        %vm4154 = vcmask 408576
        %v4155 = vsel %vm4154, %v4153, %v3700
        %vm4156 = vcmask 424960
        %v4157 = vsel %vm4156, %v4155, %v3704
        %vm4158 = vcmask 441344
        %v4159 = vsel %vm4158, %v4157, %v3708
        %vm4160 = vcmask 457728
        %v4161 = vsel %vm4160, %v4159, %v3712
        %vm4162 = vcmask 474112
        %v4163 = vsel %vm4162, %v4161, %v3716
        %vm4164 = vcmask 490496
        %v4165 = vsel %vm4164, %v4163, %v3720
        %vm4166 = vcmask 506880
        %v4167 = vsel %vm4166, %v4165, %v3724
        %vm4168 = vcmask 523264
        %v4169 = vsel %vm4168, %v4167, %v3728
        %vm4170 = vcmask 539648
        %v4171 = vsel %vm4170, %v4169, %v3732
        %vm4172 = vcmask 556032
        %v4173 = vsel %vm4172, %v4171, %v3736
        %vm4174 = vcmask 572416
        %v4175 = vsel %vm4174, %v4173, %v3740
        %vm4176 = vcmask 588800
        %v4177 = vsel %vm4176, %v4175, %v3744
        %vm4178 = vcmask 605184
        %v4179 = vsel %vm4178, %v4177, %v3748
        %vm4180 = vcmask 621568
        %v4181 = vsel %vm4180, %v4179, %v3752
        %vm4182 = vcmask 637952
        %v4183 = vsel %vm4182, %v4181, %v3756
        %vm4184 = vcmask 654336
        %v4185 = vsel %vm4184, %v4183, %v3760
        %vm4186 = vcmask 670720
        %v4187 = vsel %vm4186, %v4185, %v3764
        %vm4188 = vcmask 687104
        %v4189 = vsel %vm4188, %v4187, %v3768
        %vm4190 = vcmask 703488
        %v4191 = vsel %vm4190, %v4189, %v3772
        %vm4192 = vcmask 719872
        %v4193 = vsel %vm4192, %v4191, %v3776
        %vm4194 = vcmask 736256
        %v4195 = vsel %vm4194, %v4193, %v3780
        %vm4196 = vcmask 752640
        %v4197 = vsel %vm4196, %v4195, %v3784
        %vm4198 = vcmask 769024
        %v4199 = vsel %vm4198, %v4197, %v3788
        %vm4200 = vcmask 785408
        %v4201 = vsel %vm4200, %v4199, %v3792
        %vm4202 = vcmask 801792
        %v4203 = vsel %vm4202, %v4201, %v3796
        %vm4204 = vcmask 818176
        %v4205 = vsel %vm4204, %v4203, %v3800
        %vm4206 = vcmask 834560
        %v4207 = vsel %vm4206, %v4205, %v3804
        %vm4208 = vcmask 850944
        %v4209 = vsel %vm4208, %v4207, %v3808
        %vm4210 = vcmask 867328
        %v4211 = vsel %vm4210, %v4209, %v3812
        %vm4212 = vcmask 883712
        %v4213 = vsel %vm4212, %v4211, %v3816
        %vm4214 = vcmask 900096
        %v4215 = vsel %vm4214, %v4213, %v3820
        %vm4216 = vcmask 916480
        %v4217 = vsel %vm4216, %v4215, %v3824
        %vm4218 = vcmask 932864
        %v4219 = vsel %vm4218, %v4217, %v3828
        %vm4220 = vcmask 949248
        %v4221 = vsel %vm4220, %v4219, %v3832
        %vm4222 = vcmask 965632
        %v4223 = vsel %vm4222, %v4221, %v3836
        %vm4224 = vcmask 982016
        %v4225 = vsel %vm4224, %v4223, %v3840
        %vm4226 = vcmask 998400
        %v4227 = vsel %vm4226, %v4225, %v3844
        %vm4228 = vcmask 1014784
        %v4229 = vsel %vm4228, %v4227, %v3848
        %vm4230 = vcmask 1031168
        %v4231 = vsel %vm4230, %v4229, %v3852
        %v4232 = vsel %vm4106, %v2642, %v3856
        %v4233 = vsel %vm4108, %v4232, %v3860
        %v4234 = vsel %vm4110, %v4233, %v3864
        %v4235 = vsel %vm4112, %v4234, %v3868
        %v4236 = vsel %vm4114, %v4235, %v3872
        %v4237 = vsel %vm4116, %v4236, %v3876
        %v4238 = vsel %vm4118, %v4237, %v3880
        %v4239 = vsel %vm4120, %v4238, %v3884
        %v4240 = vsel %vm4122, %v4239, %v3888
        %v4241 = vsel %vm4124, %v4240, %v3892
        %v4242 = vsel %vm4126, %v4241, %v3896
        %v4243 = vsel %vm4128, %v4242, %v3900
        %v4244 = vsel %vm4130, %v4243, %v3904
        %v4245 = vsel %vm4132, %v4244, %v3908
        %v4246 = vsel %vm4134, %v4245, %v3912
        %v4247 = vsel %vm4136, %v4246, %v3916
        %v4248 = vsel %vm4138, %v4247, %v3920
        %v4249 = vsel %vm4140, %v4248, %v3924
        %v4250 = vsel %vm4142, %v4249, %v3928
        %v4251 = vsel %vm4144, %v4250, %v3932
        %v4252 = vsel %vm4146, %v4251, %v3936
        %v4253 = vsel %vm4148, %v4252, %v3940
        %v4254 = vsel %vm4150, %v4253, %v3944
        %v4255 = vsel %vm4152, %v4254, %v3948
        %v4256 = vsel %vm4154, %v4255, %v3952
        %v4257 = vsel %vm4156, %v4256, %v3956
        %v4258 = vsel %vm4158, %v4257, %v3960
        %v4259 = vsel %vm4160, %v4258, %v3964
        %v4260 = vsel %vm4162, %v4259, %v3968
        %v4261 = vsel %vm4164, %v4260, %v3972
        %v4262 = vsel %vm4166, %v4261, %v3976
        %v4263 = vsel %vm4168, %v4262, %v3980
        %v4264 = vsel %vm4170, %v4263, %v3984
        %v4265 = vsel %vm4172, %v4264, %v3988
        %v4266 = vsel %vm4174, %v4265, %v3992
        %v4267 = vsel %vm4176, %v4266, %v3996
        %v4268 = vsel %vm4178, %v4267, %v4000
        %v4269 = vsel %vm4180, %v4268, %v4004
        %v4270 = vsel %vm4182, %v4269, %v4008
        %v4271 = vsel %vm4184, %v4270, %v4012
        %v4272 = vsel %vm4186, %v4271, %v4016
        %v4273 = vsel %vm4188, %v4272, %v4020
        %v4274 = vsel %vm4190, %v4273, %v4024
        %v4275 = vsel %vm4192, %v4274, %v4028
        %v4276 = vsel %vm4194, %v4275, %v4032
        %v4277 = vsel %vm4196, %v4276, %v4036
        %v4278 = vsel %vm4198, %v4277, %v4040
        %v4279 = vsel %vm4200, %v4278, %v4044
        %v4280 = vsel %vm4202, %v4279, %v4048
        %v4281 = vsel %vm4204, %v4280, %v4052
        %v4282 = vsel %vm4206, %v4281, %v4056
        %v4283 = vsel %vm4208, %v4282, %v4060
        %v4284 = vsel %vm4210, %v4283, %v4064
        %v4285 = vsel %vm4212, %v4284, %v4068
        %v4286 = vsel %vm4214, %v4285, %v4072
        %v4287 = vsel %vm4216, %v4286, %v4076
        %v4288 = vsel %vm4218, %v4287, %v4080
        %v4289 = vsel %vm4220, %v4288, %v4084
        %v4290 = vsel %vm4222, %v4289, %v4088
        %v4291 = vsel %vm4224, %v4290, %v4092
        %v4292 = vsel %vm4226, %v4291, %v4096
        %v4293 = vsel %vm4228, %v4292, %v4100
        %v4294 = vsel %vm4230, %v4293, %v4104
        %4295 = vst [vmem:[%s217] sm:$0xff] %v4231
        %4296 = vst [vmem:[%s217 + $0x8] sm:$0xff] %v4294
        %s4297 = sand.u32 %s100, 1
        %s4298 = scalar_lea.sflag [#allocation4], %s4297
        %s4299 = sand.u32 %s100, 1
        %s4300 = smul.addr %s4299, 16
        %s4301 = scalar_lea.vmem [#allocation7], %s4300
        // Predicated region
        $region37: #{tpu_custom_call.1} parent=27 // pred_check
          %p4302 = pneg %p110
        $region38: #{tpu_custom_call.1} parent=27 // pred_check_branch
          %4304 = sbr.rel (%p4302) target = $region40
        $region39: #{tpu_custom_call.1} parent=27 // pred_region
          %s4305 = smul.u32 2, %s27
          %s4307 = ssub.s32 256, 256
          %4308 = vsyncadd %s4298, %s4307
          %s4309 = smul.addr %s26, 4
          %s4310 = sadd.s32 %s4305, %s4309
          %s4311 = smul.addr %s4310, 128
          %s4312 = scalar_lea.hbm %s2, %s4311
          %s4314 = sshll.u32 %s4301, 4
          %s4315 = int_to_ptr.vmem [resolvable:$true] %s4314
          %4317 = dma.vmem_to_hbm [thread:$0]  %s4315, 256, %s4312, %s4298
        $region40: #{tpu_custom_call.1} parent=27 // pred_fallthru
          _
      $region28: #{tpu_custom_call.1} parent=5 // pred_fallthru
        _
      %p4318 = scmp.le.s32.totalorder 2, %s17
      // Predicated region
      $region41: #{tpu_custom_call.1} parent=5 // pred_check
        %p4319 = pneg %p4318
      $region42: #{tpu_custom_call.1} parent=5 // pred_check_branch
        %4321 = sbr.rel (%p4319) target = $region44
      $region43: #{tpu_custom_call.1} parent=5 // pred_region
        %s4322 = ssub.s32 %s17, 2
        // Predicated region
        $region45: #{tpu_custom_call.1} parent=43 // pred_check
          %p4323 = pneg %p116
        $region46: #{tpu_custom_call.1} parent=43 // pred_check_branch
          %4325 = sbr.rel (%p4323) target = $region48
        $region47: #{tpu_custom_call.1} parent=43 // pred_region
          %s4326 = sand.u32 %s101, 1
          %s4327 = scalar_lea.sflag [#allocation4], %s4326
          %s4328 = sand.u32 %s101, 1
          %s4329 = smul.addr %s4328, 16
          %s4330 = scalar_lea.vmem [#allocation7], %s4329
          %4331 = dma.done %s4327, 256
        $region48: #{tpu_custom_call.1} parent=43 // pred_fallthru
          _
      $region44: #{tpu_custom_call.1} parent=5 // pred_fallthru
        _
    $region6: #{tpu_custom_call.1} parent=1 // loop_footer
      %s21 = sadd.s32 1, %s17
    $region7: #{tpu_custom_call.1} parent=1 // loop_footer_branch
      %16 = sbr.rel target = $region3
    $region8: #{tpu_custom_call.1} parent=1 // loop_exit
      _
    %4332 = vsyncpa [#allocation3], 1
    %s4333 = scalar_lea.sflag [#allocation3], 1
    %4334 = vsyncpa %s4333, 1
    %4335 = vsyncpa [#allocation6], 1
    %s4336 = scalar_lea.sflag [#allocation6], 1
    %4337 = vsyncpa %s4336, 1
    %4338 = vsyncpa [#allocation4], 1
    %s4339 = scalar_lea.sflag [#allocation4], 1
    %4340 = vsyncpa %s4339, 1

// kernel: _idwt_1d_impl.1
$region0: #{_idwt_1d_impl.1}
  #allocation0 [shape = 'u32[]', space=smem, size = 0x4, offset = 0x4, fixed_abs, tag = 'smem constant byte address 0x4 - core index']
  #allocation1 [shape = 'u32[144,128]{1,0:T(1,128)}', space=vmem, size = 0x12000, scoped, tag = 'internal scratch']
  %s0 = inlined_call_operand.vmem [shape: f32[1,128], index: 0, kind: input, shape index: {}]
  %s1 = inlined_call_operand.vmem [shape: f32[1,128], index: 1, kind: input, shape index: {}]
  %s2 = inlined_call_operand.vmem [shape: f32[1,128], index: 2, kind: output, shape index: {0}]
  %s3 = inlined_call_operand.vmem [shape: f32[1,128], index: 3, kind: output, shape index: {1}]
  %4 = xla_tuple %s2, %s3
  %s5 = sld [smem:[#allocation0]]
  $region26: #{_idwt_1d_impl.1} parent=0
    _
  %s7 = ssub.s32 1, %s5
  %s8 = scalar_select 0, %s7, %s5
  // Predicated region
  $region2: #{_idwt_1d_impl.1} parent=0 // pred_check
    _
  $region3: #{_idwt_1d_impl.1} parent=0 // pred_check_branch
    %10 = sbr.rel (0) target = $region5
  $region4: #{_idwt_1d_impl.1} parent=0 // pred_region
    _
  $region5: #{_idwt_1d_impl.1} parent=0 // pred_fallthru
    _
  // Predicated region
  $region6: #{_idwt_1d_impl.1} parent=0 // pred_check
    _
  $region7: #{_idwt_1d_impl.1} parent=0 // pred_check_branch
    %12 = sbr.rel (0) target = $region9
  $region8: #{_idwt_1d_impl.1} parent=0 // pred_region
    _
  $region9: #{_idwt_1d_impl.1} parent=0 // pred_fallthru
    _
  %v13 = vld [vmem:[%s0] sm:$0x1]
  %v14 = vld [vmem:[%s1] sm:$0x1]
  %v15 = vadd.f32 %v13, %v14
  %v16 = vmul.f32 %v15, 0.70710677
  %17 = vst [vmem:[%s2] sm:$0x1] %v16
  %v18 = vsub.f32 %v13, %v14
  %v19 = vmul.f32 %v18, 0.70710677
  %20 = vst [vmem:[%s3] sm:$0x1] %v19
  // Predicated region
  $region10: #{_idwt_1d_impl.1} parent=0 // pred_check
    _
  $region11: #{_idwt_1d_impl.1} parent=0 // pred_check_branch
    %22 = sbr.rel (0) target = $region13
  $region12: #{_idwt_1d_impl.1} parent=0 // pred_region
    _
  $region13: #{_idwt_1d_impl.1} parent=0 // pred_fallthru
    _
  // Predicated region
  $region14: #{_idwt_1d_impl.1} parent=0 // pred_check
    _
  $region15: #{_idwt_1d_impl.1} parent=0 // pred_check_branch
    %24 = sbr.rel (0) target = $region17
  $region16: #{_idwt_1d_impl.1} parent=0 // pred_region
    _
  $region17: #{_idwt_1d_impl.1} parent=0 // pred_fallthru
    _
  // Predicated region
  $region18: #{_idwt_1d_impl.1} parent=0 // pred_check
    _
  $region19: #{_idwt_1d_impl.1} parent=0 // pred_check_branch
    %26 = sbr.rel (0) target = $region21
  $region20: #{_idwt_1d_impl.1} parent=0 // pred_region
    _
  $region21: #{_idwt_1d_impl.1} parent=0 // pred_fallthru
    _
  // Predicated region
  $region22: #{_idwt_1d_impl.1} parent=0 // pred_check
    _
  $region23: #{_idwt_1d_impl.1} parent=0 // pred_check_branch
    %28 = sbr.rel (0) target = $region25
  $region24: #{_idwt_1d_impl.1} parent=0 // pred_region
    _
  $region25: #{_idwt_1d_impl.1} parent=0 // pred_fallthru
    _

</llo_original>
